<compile_context>
chip_gen: v5e
topology: v5e:2x2
jax: 0.10.0
libtpu: 0.0.40
codegen_flags: <defaults>
</compile_context>

<pallas_src>
import functools

import jax
import jax.numpy as jnp
import numpy as np
from jax import lax
from jax.experimental import pallas as pl
from jax.experimental.pallas import tpu as pltpu


def _round_up(x, m):
    return ((x + m - 1) // m) * m


def _pad_gate_dim(w, h, h_pad):
    """Pad the trailing 4*h gate dim to 4*h_pad, per gate block (i,f,g,o)."""
    if h_pad == h:
        return w
    lead = w.shape[:-1]
    w4 = w.reshape(*lead, 4, h)
    pad = [(0, 0)] * (w4.ndim - 1) + [(0, h_pad - h)]
    return jnp.pad(w4, pad).reshape(*lead, 4 * h_pad)


def _vmem_cap_bytes():
    """Physical VMEM capacity (fallback: 64 MiB, the v7x per-core size)."""
    try:
        info = pltpu.get_tpu_info()
        cap = getattr(info, "vmem_capacity_bytes", None)
        if cap:
            return int(cap)
    except Exception:
        pass
    return 64 * 1024 * 1024


def _sigmoid_tanh(x):
    # sigmoid(x) == 0.5*tanh(0.5*x) + 0.5: one EUP push instead of exp+recip;
    # the extra mul/add land on the 4-wide VALU slots which have slack.
    return 0.5 * jnp.tanh(0.5 * x) + 0.5


def _encoder_kernel(*refs, n_layers, seq_len, b_tile, h_pad, chunk_t,
                    split_gate_matmul, unroll_steps):
    """Fused multi-layer LSTM encoder for one batch tile.

    refs layout:
      refs[0]                      : x      (1, T*B_tile, E_pad)  layer-0 input
      refs[1 + 3l + 0]             : W_ih_l (in_pad_l, 4*H_pad)
      refs[1 + 3l + 1]             : W_hh_l (H_pad, 4*H_pad)
      refs[1 + 3l + 2]             : bias_l (1, 4*H_pad)  f32 (b_ih + b_hh)
      refs[1 + 3*n_layers]         : hidden (n_layers, 1, B_tile, H_pad)  out
      refs[2 + 3*n_layers]         : cell   (n_layers, 1, B_tile, H_pad)  out
      refs[3 + 3*n_layers]         : gates  VMEM scratch (chunk_t*B_tile, 4*H_pad) f32
      refs[4 + 3*n_layers]         : seq    VMEM scratch (T*B_tile, H_pad) matmul dtype
    """
    x_ref = refs[0]
    w_refs = refs[1:1 + 3 * n_layers]
    hidden_ref = refs[1 + 3 * n_layers]
    cell_ref = refs[2 + 3 * n_layers]
    gates_sc = refs[3 + 3 * n_layers]
    seq_sc = refs[4 + 3 * n_layers]

    T, B, H = seq_len, b_tile, h_pad
    n_chunks = -(-T // chunk_t)

    for layer in range(n_layers):
        wih_ref = w_refs[3 * layer]
        whh_ref = w_refs[3 * layer + 1]
        bias_ref = w_refs[3 * layer + 2]
        last_layer = layer == n_layers - 1

        def step(row_l, seq_row, carry):
            """row_l: row inside gates_sc (current chunk); seq_row: row in seq_sc."""
            h, c = carry
            h_mm = h.astype(whh_ref.dtype)
            if split_gate_matmul:
                # Per-gate (H_pad, H_pad) matmuls: live MXU result is (B, H)
                # at a time (16 vregs at B=128), and each gate's EUP work
                # overlaps the next gate's MXU push.
                pre = []
                for g4 in range(4):
                    col = g4 * H
                    wg = whh_ref[:, pl.ds(col, H)]
                    gx = gates_sc[pl.ds(row_l, B), pl.ds(col, H)]
                    pre.append(gx + jnp.dot(
                        h_mm, wg, preferred_element_type=jnp.float32))
                i_g = _sigmoid_tanh(pre[0])
                f_g = _sigmoid_tanh(pre[1])
                g_g = jnp.tanh(pre[2])
                o_g = _sigmoid_tanh(pre[3])
            else:
                # Small batch tile: one fused (B, 4H) matmul is cheapest.
                g = gates_sc[pl.ds(row_l, B), :] + jnp.dot(
                    h_mm, whh_ref[...], preferred_element_type=jnp.float32)
                # Gate order matches PyTorch: i, f, g, o.  Slices are 128-lane
                # aligned because H == H_pad is a multiple of 128.
                i_g = _sigmoid_tanh(g[:, 0 * H:1 * H])
                f_g = _sigmoid_tanh(g[:, 1 * H:2 * H])
                g_g = jnp.tanh(g[:, 2 * H:3 * H])
                o_g = _sigmoid_tanh(g[:, 3 * H:4 * H])
            c_new = f_g * c + i_g * g_g
            h_new = o_g * jnp.tanh(c_new)
            if not last_layer:
                # Only layers whose sequence output is consumed store it
                # (inter-layer activation stays in VMEM, no HBM round trip).
                seq_sc[pl.ds(seq_row, B), :] = h_new.astype(seq_sc.dtype)
            return h_new, c_new

        carry = (jnp.zeros((B, H), jnp.float32),
                 jnp.zeros((B, H), jnp.float32))

        for c_idx in range(n_chunks):
            t0 = c_idx * chunk_t
            tc = min(chunk_t, T - t0)
            rows_c = tc * B
            r0 = t0 * B

            # ---- Hoisted input->gates projection for this chunk: one
            #      MXU-friendly (rows_c, in) x (in, 4H) matmul (off the
            #      serial recurrence path).
            if layer == 0:
                chunk_in = x_ref[0, pl.ds(r0, rows_c), :]
            else:
                # Previous layer's outputs; this chunk's rows have not been
                # overwritten yet (we overwrite them only below, after use).
                chunk_in = seq_sc[pl.ds(r0, rows_c), :]
            wih = wih_ref[...]
            gates_sc[:rows_c, :] = (
                jnp.dot(chunk_in.astype(wih.dtype), wih,
                        preferred_element_type=jnp.float32) + bias_ref[...])

            # ---- Serial recurrence over this chunk's timesteps.
            def chunk_body(tl, cy, _t0=t0):
                row_l = pl.multiple_of(tl * B, B)
                seq_row = pl.multiple_of((_t0 + tl) * B, B)
                return step(row_l, seq_row, cy)

            if unroll_steps and tc <= 32:
                carry = lax.fori_loop(0, tc, chunk_body, carry, unroll=True)
            else:
                carry = lax.fori_loop(0, tc, chunk_body, carry)

        h_fin, c_fin = carry
        # ---- Final-state stores happen exactly once per layer.
        hidden_ref[layer, 0] = h_fin.astype(hidden_ref.dtype)
        cell_ref[layer, 0] = c_fin.astype(cell_ref.dtype)


def encoder_forward(x, params, matmul_dtype=jnp.bfloat16,
                    gates_chunk_bytes=4 * 1024 * 1024, b_tile_max=128):
    """Equivalent of Encoder.forward: returns (hidden, cell), each of shape
    (n_layers, B, hid_dim).

    matmul_dtype=jnp.bfloat16 (default) uses the bf16 MXU fast path (f32
    accumulation and f32 gate math are kept); matmul_dtype=jnp.float32 gives
    tight parity with the PyTorch reference.
    """
    T, B, E = x.shape
    n_layers = len(params)
    H = params[0]["w_hh"].shape[1]

    H_pad = _round_up(H, 128)            # lane-aligned gate blocks
    E_pad = _round_up(E, 8)
    B_pad = _round_up(B, 8)              # sublane-dense batch
    if B_pad > b_tile_max:
        b_tile = b_tile_max
        B_pad = _round_up(B_pad, b_tile)
    else:
        b_tile = B_pad
    nb = B_pad // b_tile                 # parallel grid axis (megacore)
    # TODO(synk): on v7x, allowing nb=2 for mid-size batches would use the
    # second TensorCore; kept single-tile here for latency-bound small batch.

    itm = jnp.dtype(matmul_dtype).itemsize
    out_itm = jnp.dtype(x.dtype).itemsize

    # gates scratch is O(chunk_t) in VMEM instead of O(T).
    bytes_per_t = b_tile * 4 * H_pad * 4
    chunk_t = max(1, min(T, gates_chunk_bytes // bytes_per_t))

    split_gate_matmul = b_tile >= 64
    unroll_steps = (b_tile * H_pad) <= 128 * 128

    # ---- layout plumbing (plain XLA, one-time): x -> (nb, T*b_tile, E_pad),
    #      cast once to the matmul dtype (halves x DMA on the bf16 path).
    xp = jnp.pad(x, ((0, 0), (0, B_pad - B), (0, E_pad - E)))
    xp = (xp.reshape(T, nb, b_tile, E_pad)
            .transpose(1, 0, 2, 3)
            .reshape(nb, T * b_tile, E_pad)
            .astype(matmul_dtype))

    # ---- weight prep: transpose, pad gate dim to H_pad per gate, pad in-dim,
    #      combine biases (f32), cast matmuls' weights to matmul_dtype.
    # Padded gate columns have zero weights/bias and padded h/c start at 0, so
    # padded lanes provably stay 0 and are sliced off below.
    weight_args = []
    in_pads = []
    # Whole-array VMEM specs: single-buffered, resident across grid steps.
    resident_vmem = pl.BlockSpec(memory_space=pltpu.MemorySpace.VMEM)
    if nb == 1:
        x_spec = resident_vmem
    else:
        x_spec = pl.BlockSpec((1, T * b_tile, E_pad), lambda j: (j, 0, 0))
    in_specs = [x_spec]
    for layer, p in enumerate(params):
        in_dim = E if layer == 0 else H
        in_pad = E_pad if layer == 0 else H_pad
        in_pads.append(in_pad)
        wih = _pad_gate_dim(p["w_ih"].T, H, H_pad)          # (in_dim, 4H_pad)
        wih = jnp.pad(wih, ((0, in_pad - in_dim), (0, 0))).astype(matmul_dtype)
        whh = _pad_gate_dim(p["w_hh"].T, H, H_pad)          # (H, 4H_pad)
        whh = jnp.pad(whh, ((0, H_pad - H), (0, 0))).astype(matmul_dtype)
        bias = _pad_gate_dim((p["b_ih"] + p["b_hh"]).reshape(1, 4 * H), H, H_pad)
        bias = bias.astype(jnp.float32)
        weight_args += [wih, whh, bias]
        in_specs += [resident_vmem, resident_vmem, resident_vmem]
        # TODO(synk): for very deep/wide LSTMs, manual 2-layer weight
        # double-buffering via pl.ANY + make_async_copy would cut residency
        # from n_layers x to 2x; not needed at these sizes.

    out_shapes = (
        jax.ShapeDtypeStruct((n_layers, nb, b_tile, H_pad), x.dtype),
        jax.ShapeDtypeStruct((n_layers, nb, b_tile, H_pad), x.dtype),
    )
    out_specs = [
        pl.BlockSpec((n_layers, 1, b_tile, H_pad), lambda j: (0, j, 0, 0)),
        pl.BlockSpec((n_layers, 1, b_tile, H_pad), lambda j: (0, j, 0, 0)),
    ]

    seq_rows = T * b_tile if n_layers > 1 else 8   # last layer's seq never stored
    scratch_shapes = [
        pltpu.VMEM((chunk_t * b_tile, 4 * H_pad), jnp.float32),  # gates chunk
        pltpu.VMEM((seq_rows, H_pad), matmul_dtype),             # layer outputs
    ]

    # ---- VMEM budget: actual working set + headroom, capped below physical.
    x_bytes = T * b_tile * E_pad * itm * (2 if nb > 1 else 1)
    w_bytes = sum((ip + H_pad) * 4 * H_pad * itm + 4 * H_pad * 4 for ip in in_pads)
    o_bytes = 2 * n_layers * b_tile * H_pad * out_itm * 2
    s_bytes = chunk_t * b_tile * 4 * H_pad * 4 + seq_rows * H_pad * itm
    need = x_bytes + w_bytes + o_bytes + s_bytes
    cap = int(_vmem_cap_bytes() * 0.85)
    vmem_limit = min(cap, max(32 << 20, int(need * 1.5) + (4 << 20)))

    flops = sum(2 * T * B_pad * (ip + H_pad) * 4 * H_pad for ip in in_pads)
    transcendentals = n_layers * T * B_pad * H_pad * 5
    bytes_accessed = (T * B_pad * E_pad * itm
                      + sum((ip + H_pad) * 4 * H_pad * itm + 4 * H_pad * 4
                            for ip in in_pads)
                      + 2 * n_layers * B_pad * H_pad * out_itm)
    cost = pl.CostEstimate(flops=int(flops),
                           transcendentals=int(transcendentals),
                           bytes_accessed=int(bytes_accessed))

    kernel = functools.partial(
        _encoder_kernel, n_layers=n_layers, seq_len=T, b_tile=b_tile,
        h_pad=H_pad, chunk_t=chunk_t, split_gate_matmul=split_gate_matmul,
        unroll_steps=unroll_steps)

    grid_spec = pltpu.PrefetchScalarGridSpec(
        num_scalar_prefetch=0,
        grid=(nb,),
        in_specs=in_specs,
        out_specs=out_specs,
        scratch_shapes=scratch_shapes,
    )

    hidden_p, cell_p = pl.pallas_call(
        kernel,
        out_shape=out_shapes,
        grid_spec=grid_spec,
        cost_estimate=cost,
        compiler_params=pltpu.CompilerParams(
            dimension_semantics=("parallel",),
            vmem_limit_bytes=vmem_limit),
    )(xp, *weight_args)

    hidden = hidden_p.reshape(n_layers, B_pad, H_pad)[:, :B, :H]
    cell = cell_p.reshape(n_layers, B_pad, H_pad)[:, :B, :H]
    return hidden, cell


def init_encoder_params(key, embed_dim, hid_dim, n_layers, dtype=jnp.float32):
    """Deterministic LSTM parameters with PyTorch shapes/init scale."""
    params = []
    k = 1.0 / np.sqrt(hid_dim)
    for layer in range(n_layers):
        in_dim = embed_dim if layer == 0 else hid_dim
        key, k1, k2, k3, k4 = jax.random.split(key, 5)
        params.append(dict(
            w_ih=jax.random.uniform(k1, (4 * hid_dim, in_dim), dtype, -k, k),
            w_hh=jax.random.uniform(k2, (4 * hid_dim, hid_dim), dtype, -k, k),
            b_ih=jax.random.uniform(k3, (4 * hid_dim,), dtype, -k, k),
            b_hh=jax.random.uniform(k4, (4 * hid_dim,), dtype, -k, k),
        ))
    return params


# ---------- pure-JAX reference (for correctness check) ----------
def _ref_lstm_layer(x, w_ih, w_hh, b_ih, b_hh):
    T, B, _ = x.shape
    H = w_hh.shape[1]

    def step(carry, x_t):
        h, c = carry
        gates = x_t @ w_ih.T + h @ w_hh.T + b_ih + b_hh
        i = jax.nn.sigmoid(gates[:, 0 * H:1 * H])
        f = jax.nn.sigmoid(gates[:, 1 * H:2 * H])
        g = jnp.tanh(gates[:, 2 * H:3 * H])
        o = jax.nn.sigmoid(gates[:, 3 * H:4 * H])
        c_new = f * c + i * g
        h_new = o * jnp.tanh(c_new)
        return (h_new, c_new), h_new

    init = (jnp.zeros((B, H), x.dtype), jnp.zeros((B, H), x.dtype))
    (h_n, c_n), outs = lax.scan(step, init, x)
    return outs, h_n, c_n


def _ref_encoder(x, params):
    hs, cs = [], []
    layer_in = x
    for p in params:
        outs, h_n, c_n = _ref_lstm_layer(layer_in, p["w_ih"], p["w_hh"],
                                         p["b_ih"], p["b_hh"])
        hs.append(h_n)
        cs.append(c_n)
        layer_in = outs
    return jnp.stack(hs, 0), jnp.stack(cs, 0)


if __name__ == "__main__":
    # x: (seq_len=8, batch=2, embed_dim=16), hid_dim=32, n_layers=2
    seq_len, batch, embed_dim, hid_dim, n_layers = 8, 2, 16, 32, 2

    key = jax.random.PRNGKey(0)
    key, kx = jax.random.split(key)
    x = jax.random.normal(kx, (seq_len, batch, embed_dim), jnp.float32)
    params = init_encoder_params(key, embed_dim, hid_dim, n_layers)

    ref_hidden, ref_cell = _ref_encoder(x, params)

    # f32 matmul path: tight parity with the pure-JAX (== PyTorch) reference.
    hidden, cell = jax.block_until_ready(
        encoder_forward(x, params, matmul_dtype=jnp.float32))
    assert hidden.shape == (n_layers, batch, hid_dim)
    assert cell.shape == (n_layers, batch, hid_dim)
    np.testing.assert_allclose(np.asarray(hidden), np.asarray(ref_hidden),
                               rtol=2e-4, atol=2e-4)
    np.testing.assert_allclose(np.asarray(cell), np.asarray(ref_cell),
                               rtol=2e-4, atol=2e-4)

    # f32 path with forced time-chunking of the gates scratch (chunk_t = 3).
    forced_budget = 3 * (8 * 4 * 128 * 4)   # 3 timesteps worth of gates
    hidden_c, cell_c = jax.block_until_ready(
        encoder_forward(x, params, matmul_dtype=jnp.float32,
                        gates_chunk_bytes=forced_budget))
    np.testing.assert_allclose(np.asarray(hidden_c), np.asarray(ref_hidden),
                               rtol=2e-4, atol=2e-4)
    np.testing.assert_allclose(np.asarray(cell_c), np.asarray(ref_cell),
                               rtol=2e-4, atol=2e-4)

    # Default bf16-matmul fast path (MXU peak): loose sanity check only.
    hidden_bf, cell_bf = jax.block_until_ready(encoder_forward(x, params))
    assert np.max(np.abs(np.asarray(hidden_bf) - np.asarray(ref_hidden))) < 0.25
    assert np.max(np.abs(np.asarray(cell_bf) - np.asarray(ref_cell))) < 0.25

    print("KERNEL_OK")
</pallas_src>

<mosaic_0001>
module attributes {stable_mosaic.version = 11 : i64} {
  func.func @_encoder_kernel(%arg0: i32, %arg1: memref<1x64x16xf32, #tpu.memory_space<vmem>>, %arg2: memref<16x512xf32, #tpu.memory_space<vmem>>, %arg3: memref<128x512xf32, #tpu.memory_space<vmem>>, %arg4: memref<1x512xf32, #tpu.memory_space<vmem>>, %arg5: memref<128x512xf32, #tpu.memory_space<vmem>>, %arg6: memref<128x512xf32, #tpu.memory_space<vmem>>, %arg7: memref<1x512xf32, #tpu.memory_space<vmem>>, %arg8: memref<2x1x8x128xf32, #tpu.memory_space<vmem>>, %arg9: memref<2x1x8x128xf32, #tpu.memory_space<vmem>>, %arg10: memref<64x512xf32, #tpu.memory_space<vmem>>, %arg11: memref<64x128xf32, #tpu.memory_space<vmem>>) attributes {dimension_semantics = [#tpu.dimension_semantics<parallel>], iteration_bounds = array<i64: 1>, scalar_prefetch = 0 : i64, scratch_operands = 2 : i64, tpu.core_type = #tpu.core_type<tc>, window_params = [{pipeline_mode = #tpu.pipeline_mode<synchronous>, transform_indices = @transform_0, window_bounds = array<i64: 1, 64, 16>}, {pipeline_mode = #tpu.pipeline_mode<synchronous>, transform_indices = @transform_1, window_bounds = array<i64: 16, 512>}, {pipeline_mode = #tpu.pipeline_mode<synchronous>, transform_indices = @transform_2, window_bounds = array<i64: 128, 512>}, {pipeline_mode = #tpu.pipeline_mode<synchronous>, transform_indices = @transform_3, window_bounds = array<i64: 1, 512>}, {pipeline_mode = #tpu.pipeline_mode<synchronous>, transform_indices = @transform_4, window_bounds = array<i64: 128, 512>}, {pipeline_mode = #tpu.pipeline_mode<synchronous>, transform_indices = @transform_5, window_bounds = array<i64: 128, 512>}, {pipeline_mode = #tpu.pipeline_mode<synchronous>, transform_indices = @transform_6, window_bounds = array<i64: 1, 512>}, {transform_indices = @transform_7, window_bounds = array<i64: 2, 1, 8, 128>}, {transform_indices = @transform_8, window_bounds = array<i64: 2, 1, 8, 128>}]} {
    %cst = arith.constant 0.000000e+00 : f32
    %0 = vector.broadcast %cst : f32 to vector<8x128xf32>
    %cst_0 = arith.constant 0.000000e+00 : f32
    %1 = vector.broadcast %cst_0 : f32 to vector<8x128xf32>
    %c0 = arith.constant 0 : index
    %c0_1 = arith.constant 0 : index
    %c0_2 = arith.constant 0 : index
    %2 = vector.load %arg1[%c0, %c0_1, %c0_2] : memref<1x64x16xf32, #tpu.memory_space<vmem>>, vector<1x64x16xf32>
    %3 = vector.shape_cast %2 : vector<1x64x16xf32> to vector<64x16xf32>
    %c0_3 = arith.constant 0 : index
    %c0_4 = arith.constant 0 : index
    %4 = vector.load %arg2[%c0_3, %c0_4] : memref<16x512xf32, #tpu.memory_space<vmem>>, vector<16x512xf32>
    %cst_5 = arith.constant dense<0.000000e+00> : vector<64x512xf32>
    %5 = tpu.matmul %3, %4, %cst_5 {dimension_numbers = #tpu.dot_dimension_numbers<[1], [0], [0], [1], [0, 0, 1, 1], [], []>} : vector<64x16xf32>, vector<16x512xf32>, vector<64x512xf32> -> vector<64x512xf32>
    %c0_6 = arith.constant 0 : index
    %c0_7 = arith.constant 0 : index
    %6 = vector.load %arg4[%c0_6, %c0_7] : memref<1x512xf32, #tpu.memory_space<vmem>>, vector<1x512xf32>
    %7 = vector.broadcast %6 : vector<1x512xf32> to vector<64x512xf32>
    %8 = arith.addf %5, %7 : vector<64x512xf32>
    %c0_8 = arith.constant 0 : index
    %c0_9 = arith.constant 0 : index
    %9 = vector.load %arg10[%c0_8, %c0_9] : memref<64x512xf32, #tpu.memory_space<vmem>>, vector<64x512xf32>
    tpu.vector_store %arg10[%c0_8, %c0_9], %8 {strides = array<i32>} : memref<64x512xf32, #tpu.memory_space<vmem>>, vector<64x512xf32>,
    %c0_i32 = arith.constant 0 : i32
    %c8_i32 = arith.constant 8 : i32
    %10 = arith.muli %c0_i32, %c8_i32 : i32
    %11 = tpu.assume_multiple %10, 8 : i32
    %c0_i32_10 = arith.constant 0 : i32
    %12 = arith.addi %c0_i32_10, %c0_i32 : i32
    %c8_i32_11 = arith.constant 8 : i32
    %13 = arith.muli %12, %c8_i32_11 : i32
    %14 = tpu.assume_multiple %13, 8 : i32
    %15 = arith.index_cast %11 : i32 to index
    %c0_12 = arith.constant 0 : index
    %16 = vector.load %arg10[%15, %c0_12] : memref<64x512xf32, #tpu.memory_space<vmem>>, vector<8x512xf32>
    %c0_13 = arith.constant 0 : index
    %c0_14 = arith.constant 0 : index
    %17 = vector.load %arg3[%c0_13, %c0_14] : memref<128x512xf32, #tpu.memory_space<vmem>>, vector<128x512xf32>
    %cst_15 = arith.constant dense<0.000000e+00> : vector<8x512xf32>
    %18 = tpu.matmul %0, %17, %cst_15 {dimension_numbers = #tpu.dot_dimension_numbers<[1], [0], [0], [1], [0, 0, 1, 1], [], []>} : vector<8x128xf32>, vector<128x512xf32>, vector<8x512xf32> -> vector<8x512xf32>
    %19 = arith.addf %16, %18 : vector<8x512xf32>
    %20 = vector.extract_strided_slice %19 {offsets = [0, 0], sizes = [8, 128], strides = [1, 1]} : vector<8x512xf32> to vector<8x128xf32>
    %cst_16 = arith.constant 5.000000e-01 : f32
    %21 = vector.broadcast %cst_16 : f32 to vector<8x128xf32>
    %22 = arith.mulf %21, %20 : vector<8x128xf32>
    %23 = math.tanh %22 : vector<8x128xf32>
    %cst_17 = arith.constant 5.000000e-01 : f32
    %24 = vector.broadcast %cst_17 : f32 to vector<8x128xf32>
    %25 = arith.mulf %24, %23 : vector<8x128xf32>
    %cst_18 = arith.constant 5.000000e-01 : f32
    %26 = vector.broadcast %cst_18 : f32 to vector<8x128xf32>
    %27 = arith.addf %25, %26 : vector<8x128xf32>
    %28 = vector.extract_strided_slice %19 {offsets = [0, 128], sizes = [8, 128], strides = [1, 1]} : vector<8x512xf32> to vector<8x128xf32>
    %cst_19 = arith.constant 5.000000e-01 : f32
    %29 = vector.broadcast %cst_19 : f32 to vector<8x128xf32>
    %30 = arith.mulf %29, %28 : vector<8x128xf32>
    %31 = math.tanh %30 : vector<8x128xf32>
    %cst_20 = arith.constant 5.000000e-01 : f32
    %32 = vector.broadcast %cst_20 : f32 to vector<8x128xf32>
    %33 = arith.mulf %32, %31 : vector<8x128xf32>
    %cst_21 = arith.constant 5.000000e-01 : f32
    %34 = vector.broadcast %cst_21 : f32 to vector<8x128xf32>
    %35 = arith.addf %33, %34 : vector<8x128xf32>
    %36 = vector.extract_strided_slice %19 {offsets = [0, 256], sizes = [8, 128], strides = [1, 1]} : vector<8x512xf32> to vector<8x128xf32>
    %37 = math.tanh %36 : vector<8x128xf32>
    %38 = vector.extract_strided_slice %19 {offsets = [0, 384], sizes = [8, 128], strides = [1, 1]} : vector<8x512xf32> to vector<8x128xf32>
    %cst_22 = arith.constant 5.000000e-01 : f32
    %39 = vector.broadcast %cst_22 : f32 to vector<8x128xf32>
    %40 = arith.mulf %39, %38 : vector<8x128xf32>
    %41 = math.tanh %40 : vector<8x128xf32>
    %cst_23 = arith.constant 5.000000e-01 : f32
    %42 = vector.broadcast %cst_23 : f32 to vector<8x128xf32>
    %43 = arith.mulf %42, %41 : vector<8x128xf32>
    %cst_24 = arith.constant 5.000000e-01 : f32
    %44 = vector.broadcast %cst_24 : f32 to vector<8x128xf32>
    %45 = arith.addf %43, %44 : vector<8x128xf32>
    %46 = arith.mulf %35, %1 : vector<8x128xf32>
    %47 = arith.mulf %27, %37 : vector<8x128xf32>
    %48 = arith.addf %46, %47 : vector<8x128xf32>
    %49 = math.tanh %48 : vector<8x128xf32>
    %50 = arith.mulf %45, %49 : vector<8x128xf32>
    %51 = arith.index_cast %14 : i32 to index
    %c0_25 = arith.constant 0 : index
    %52 = vector.load %arg11[%51, %c0_25] : memref<64x128xf32, #tpu.memory_space<vmem>>, vector<8x128xf32>
    tpu.vector_store %arg11[%51, %c0_25], %50 {strides = array<i32>} : memref<64x128xf32, #tpu.memory_space<vmem>>, vector<8x128xf32>,
    %c1_i32 = arith.constant 1 : i32
    %c8_i32_26 = arith.constant 8 : i32
    %53 = arith.muli %c1_i32, %c8_i32_26 : i32
    %54 = tpu.assume_multiple %53, 8 : i32
    %c0_i32_27 = arith.constant 0 : i32
    %55 = arith.addi %c0_i32_27, %c1_i32 : i32
    %c8_i32_28 = arith.constant 8 : i32
    %56 = arith.muli %55, %c8_i32_28 : i32
    %57 = tpu.assume_multiple %56, 8 : i32
    %58 = arith.index_cast %54 : i32 to index
    %c0_29 = arith.constant 0 : index
    %59 = vector.load %arg10[%58, %c0_29] : memref<64x512xf32, #tpu.memory_space<vmem>>, vector<8x512xf32>
    %c0_30 = arith.constant 0 : index
    %c0_31 = arith.constant 0 : index
    %60 = vector.load %arg3[%c0_30, %c0_31] : memref<128x512xf32, #tpu.memory_space<vmem>>, vector<128x512xf32>
    %cst_32 = arith.constant dense<0.000000e+00> : vector<8x512xf32>
    %61 = tpu.matmul %50, %60, %cst_32 {dimension_numbers = #tpu.dot_dimension_numbers<[1], [0], [0], [1], [0, 0, 1, 1], [], []>} : vector<8x128xf32>, vector<128x512xf32>, vector<8x512xf32> -> vector<8x512xf32>
    %62 = arith.addf %59, %61 : vector<8x512xf32>
    %63 = vector.extract_strided_slice %62 {offsets = [0, 0], sizes = [8, 128], strides = [1, 1]} : vector<8x512xf32> to vector<8x128xf32>
    %cst_33 = arith.constant 5.000000e-01 : f32
    %64 = vector.broadcast %cst_33 : f32 to vector<8x128xf32>
    %65 = arith.mulf %64, %63 : vector<8x128xf32>
    %66 = math.tanh %65 : vector<8x128xf32>
    %cst_34 = arith.constant 5.000000e-01 : f32
    %67 = vector.broadcast %cst_34 : f32 to vector<8x128xf32>
    %68 = arith.mulf %67, %66 : vector<8x128xf32>
    %cst_35 = arith.constant 5.000000e-01 : f32
    %69 = vector.broadcast %cst_35 : f32 to vector<8x128xf32>
    %70 = arith.addf %68, %69 : vector<8x128xf32>
    %71 = vector.extract_strided_slice %62 {offsets = [0, 128], sizes = [8, 128], strides = [1, 1]} : vector<8x512xf32> to vector<8x128xf32>
    %cst_36 = arith.constant 5.000000e-01 : f32
    %72 = vector.broadcast %cst_36 : f32 to vector<8x128xf32>
    %73 = arith.mulf %72, %71 : vector<8x128xf32>
    %74 = math.tanh %73 : vector<8x128xf32>
    %cst_37 = arith.constant 5.000000e-01 : f32
    %75 = vector.broadcast %cst_37 : f32 to vector<8x128xf32>
    %76 = arith.mulf %75, %74 : vector<8x128xf32>
    %cst_38 = arith.constant 5.000000e-01 : f32
    %77 = vector.broadcast %cst_38 : f32 to vector<8x128xf32>
    %78 = arith.addf %76, %77 : vector<8x128xf32>
    %79 = vector.extract_strided_slice %62 {offsets = [0, 256], sizes = [8, 128], strides = [1, 1]} : vector<8x512xf32> to vector<8x128xf32>
    %80 = math.tanh %79 : vector<8x128xf32>
    %81 = vector.extract_strided_slice %62 {offsets = [0, 384], sizes = [8, 128], strides = [1, 1]} : vector<8x512xf32> to vector<8x128xf32>
    %cst_39 = arith.constant 5.000000e-01 : f32
    %82 = vector.broadcast %cst_39 : f32 to vector<8x128xf32>
    %83 = arith.mulf %82, %81 : vector<8x128xf32>
    %84 = math.tanh %83 : vector<8x128xf32>
    %cst_40 = arith.constant 5.000000e-01 : f32
    %85 = vector.broadcast %cst_40 : f32 to vector<8x128xf32>
    %86 = arith.mulf %85, %84 : vector<8x128xf32>
    %cst_41 = arith.constant 5.000000e-01 : f32
    %87 = vector.broadcast %cst_41 : f32 to vector<8x128xf32>
    %88 = arith.addf %86, %87 : vector<8x128xf32>
    %89 = arith.mulf %78, %48 : vector<8x128xf32>
    %90 = arith.mulf %70, %80 : vector<8x128xf32>
    %91 = arith.addf %89, %90 : vector<8x128xf32>
    %92 = math.tanh %91 : vector<8x128xf32>
    %93 = arith.mulf %88, %92 : vector<8x128xf32>
    %94 = arith.index_cast %57 : i32 to index
    %c0_42 = arith.constant 0 : index
    %95 = vector.load %arg11[%94, %c0_42] : memref<64x128xf32, #tpu.memory_space<vmem>>, vector<8x128xf32>
    tpu.vector_store %arg11[%94, %c0_42], %93 {strides = array<i32>} : memref<64x128xf32, #tpu.memory_space<vmem>>, vector<8x128xf32>,
    %c2_i32 = arith.constant 2 : i32
    %c8_i32_43 = arith.constant 8 : i32
    %96 = arith.muli %c2_i32, %c8_i32_43 : i32
    %97 = tpu.assume_multiple %96, 8 : i32
    %c0_i32_44 = arith.constant 0 : i32
    %98 = arith.addi %c0_i32_44, %c2_i32 : i32
    %c8_i32_45 = arith.constant 8 : i32
    %99 = arith.muli %98, %c8_i32_45 : i32
    %100 = tpu.assume_multiple %99, 8 : i32
    %101 = arith.index_cast %97 : i32 to index
    %c0_46 = arith.constant 0 : index
    %102 = vector.load %arg10[%101, %c0_46] : memref<64x512xf32, #tpu.memory_space<vmem>>, vector<8x512xf32>
    %c0_47 = arith.constant 0 : index
    %c0_48 = arith.constant 0 : index
    %103 = vector.load %arg3[%c0_47, %c0_48] : memref<128x512xf32, #tpu.memory_space<vmem>>, vector<128x512xf32>
    %cst_49 = arith.constant dense<0.000000e+00> : vector<8x512xf32>
    %104 = tpu.matmul %93, %103, %cst_49 {dimension_numbers = #tpu.dot_dimension_numbers<[1], [0], [0], [1], [0, 0, 1, 1], [], []>} : vector<8x128xf32>, vector<128x512xf32>, vector<8x512xf32> -> vector<8x512xf32>
    %105 = arith.addf %102, %104 : vector<8x512xf32>
    %106 = vector.extract_strided_slice %105 {offsets = [0, 0], sizes = [8, 128], strides = [1, 1]} : vector<8x512xf32> to vector<8x128xf32>
    %cst_50 = arith.constant 5.000000e-01 : f32
    %107 = vector.broadcast %cst_50 : f32 to vector<8x128xf32>
    %108 = arith.mulf %107, %106 : vector<8x128xf32>
    %109 = math.tanh %108 : vector<8x128xf32>
    %cst_51 = arith.constant 5.000000e-01 : f32
    %110 = vector.broadcast %cst_51 : f32 to vector<8x128xf32>
    %111 = arith.mulf %110, %109 : vector<8x128xf32>
    %cst_52 = arith.constant 5.000000e-01 : f32
    %112 = vector.broadcast %cst_52 : f32 to vector<8x128xf32>
    %113 = arith.addf %111, %112 : vector<8x128xf32>
    %114 = vector.extract_strided_slice %105 {offsets = [0, 128], sizes = [8, 128], strides = [1, 1]} : vector<8x512xf32> to vector<8x128xf32>
    %cst_53 = arith.constant 5.000000e-01 : f32
    %115 = vector.broadcast %cst_53 : f32 to vector<8x128xf32>
    %116 = arith.mulf %115, %114 : vector<8x128xf32>
    %117 = math.tanh %116 : vector<8x128xf32>
    %cst_54 = arith.constant 5.000000e-01 : f32
    %118 = vector.broadcast %cst_54 : f32 to vector<8x128xf32>
    %119 = arith.mulf %118, %117 : vector<8x128xf32>
    %cst_55 = arith.constant 5.000000e-01 : f32
    %120 = vector.broadcast %cst_55 : f32 to vector<8x128xf32>
    %121 = arith.addf %119, %120 : vector<8x128xf32>
    %122 = vector.extract_strided_slice %105 {offsets = [0, 256], sizes = [8, 128], strides = [1, 1]} : vector<8x512xf32> to vector<8x128xf32>
    %123 = math.tanh %122 : vector<8x128xf32>
    %124 = vector.extract_strided_slice %105 {offsets = [0, 384], sizes = [8, 128], strides = [1, 1]} : vector<8x512xf32> to vector<8x128xf32>
    %cst_56 = arith.constant 5.000000e-01 : f32
    %125 = vector.broadcast %cst_56 : f32 to vector<8x128xf32>
    %126 = arith.mulf %125, %124 : vector<8x128xf32>
    %127 = math.tanh %126 : vector<8x128xf32>
    %cst_57 = arith.constant 5.000000e-01 : f32
    %128 = vector.broadcast %cst_57 : f32 to vector<8x128xf32>
    %129 = arith.mulf %128, %127 : vector<8x128xf32>
    %cst_58 = arith.constant 5.000000e-01 : f32
    %130 = vector.broadcast %cst_58 : f32 to vector<8x128xf32>
    %131 = arith.addf %129, %130 : vector<8x128xf32>
    %132 = arith.mulf %121, %91 : vector<8x128xf32>
    %133 = arith.mulf %113, %123 : vector<8x128xf32>
    %134 = arith.addf %132, %133 : vector<8x128xf32>
    %135 = math.tanh %134 : vector<8x128xf32>
    %136 = arith.mulf %131, %135 : vector<8x128xf32>
    %137 = arith.index_cast %100 : i32 to index
    %c0_59 = arith.constant 0 : index
    %138 = vector.load %arg11[%137, %c0_59] : memref<64x128xf32, #tpu.memory_space<vmem>>, vector<8x128xf32>
    tpu.vector_store %arg11[%137, %c0_59], %136 {strides = array<i32>} : memref<64x128xf32, #tpu.memory_space<vmem>>, vector<8x128xf32>,
    %c3_i32 = arith.constant 3 : i32
    %c8_i32_60 = arith.constant 8 : i32
    %139 = arith.muli %c3_i32, %c8_i32_60 : i32
    %140 = tpu.assume_multiple %139, 8 : i32
    %c0_i32_61 = arith.constant 0 : i32
    %141 = arith.addi %c0_i32_61, %c3_i32 : i32
    %c8_i32_62 = arith.constant 8 : i32
    %142 = arith.muli %141, %c8_i32_62 : i32
    %143 = tpu.assume_multiple %142, 8 : i32
    %144 = arith.index_cast %140 : i32 to index
    %c0_63 = arith.constant 0 : index
    %145 = vector.load %arg10[%144, %c0_63] : memref<64x512xf32, #tpu.memory_space<vmem>>, vector<8x512xf32>
    %c0_64 = arith.constant 0 : index
    %c0_65 = arith.constant 0 : index
    %146 = vector.load %arg3[%c0_64, %c0_65] : memref<128x512xf32, #tpu.memory_space<vmem>>, vector<128x512xf32>
    %cst_66 = arith.constant dense<0.000000e+00> : vector<8x512xf32>
    %147 = tpu.matmul %136, %146, %cst_66 {dimension_numbers = #tpu.dot_dimension_numbers<[1], [0], [0], [1], [0, 0, 1, 1], [], []>} : vector<8x128xf32>, vector<128x512xf32>, vector<8x512xf32> -> vector<8x512xf32>
    %148 = arith.addf %145, %147 : vector<8x512xf32>
    %149 = vector.extract_strided_slice %148 {offsets = [0, 0], sizes = [8, 128], strides = [1, 1]} : vector<8x512xf32> to vector<8x128xf32>
    %cst_67 = arith.constant 5.000000e-01 : f32
    %150 = vector.broadcast %cst_67 : f32 to vector<8x128xf32>
    %151 = arith.mulf %150, %149 : vector<8x128xf32>
    %152 = math.tanh %151 : vector<8x128xf32>
    %cst_68 = arith.constant 5.000000e-01 : f32
    %153 = vector.broadcast %cst_68 : f32 to vector<8x128xf32>
    %154 = arith.mulf %153, %152 : vector<8x128xf32>
    %cst_69 = arith.constant 5.000000e-01 : f32
    %155 = vector.broadcast %cst_69 : f32 to vector<8x128xf32>
    %156 = arith.addf %154, %155 : vector<8x128xf32>
    %157 = vector.extract_strided_slice %148 {offsets = [0, 128], sizes = [8, 128], strides = [1, 1]} : vector<8x512xf32> to vector<8x128xf32>
    %cst_70 = arith.constant 5.000000e-01 : f32
    %158 = vector.broadcast %cst_70 : f32 to vector<8x128xf32>
    %159 = arith.mulf %158, %157 : vector<8x128xf32>
    %160 = math.tanh %159 : vector<8x128xf32>
    %cst_71 = arith.constant 5.000000e-01 : f32
    %161 = vector.broadcast %cst_71 : f32 to vector<8x128xf32>
    %162 = arith.mulf %161, %160 : vector<8x128xf32>
    %cst_72 = arith.constant 5.000000e-01 : f32
    %163 = vector.broadcast %cst_72 : f32 to vector<8x128xf32>
    %164 = arith.addf %162, %163 : vector<8x128xf32>
    %165 = vector.extract_strided_slice %148 {offsets = [0, 256], sizes = [8, 128], strides = [1, 1]} : vector<8x512xf32> to vector<8x128xf32>
    %166 = math.tanh %165 : vector<8x128xf32>
    %167 = vector.extract_strided_slice %148 {offsets = [0, 384], sizes = [8, 128], strides = [1, 1]} : vector<8x512xf32> to vector<8x128xf32>
    %cst_73 = arith.constant 5.000000e-01 : f32
    %168 = vector.broadcast %cst_73 : f32 to vector<8x128xf32>
    %169 = arith.mulf %168, %167 : vector<8x128xf32>
    %170 = math.tanh %169 : vector<8x128xf32>
    %cst_74 = arith.constant 5.000000e-01 : f32
    %171 = vector.broadcast %cst_74 : f32 to vector<8x128xf32>
    %172 = arith.mulf %171, %170 : vector<8x128xf32>
    %cst_75 = arith.constant 5.000000e-01 : f32
    %173 = vector.broadcast %cst_75 : f32 to vector<8x128xf32>
    %174 = arith.addf %172, %173 : vector<8x128xf32>
    %175 = arith.mulf %164, %134 : vector<8x128xf32>
    %176 = arith.mulf %156, %166 : vector<8x128xf32>
    %177 = arith.addf %175, %176 : vector<8x128xf32>
    %178 = math.tanh %177 : vector<8x128xf32>
    %179 = arith.mulf %174, %178 : vector<8x128xf32>
    %180 = arith.index_cast %143 : i32 to index
    %c0_76 = arith.constant 0 : index
    %181 = vector.load %arg11[%180, %c0_76] : memref<64x128xf32, #tpu.memory_space<vmem>>, vector<8x128xf32>
    tpu.vector_store %arg11[%180, %c0_76], %179 {strides = array<i32>} : memref<64x128xf32, #tpu.memory_space<vmem>>, vector<8x128xf32>,
    %c4_i32 = arith.constant 4 : i32
    %c8_i32_77 = arith.constant 8 : i32
    %182 = arith.muli %c4_i32, %c8_i32_77 : i32
    %183 = tpu.assume_multiple %182, 8 : i32
    %c0_i32_78 = arith.constant 0 : i32
    %184 = arith.addi %c0_i32_78, %c4_i32 : i32
    %c8_i32_79 = arith.constant 8 : i32
    %185 = arith.muli %184, %c8_i32_79 : i32
    %186 = tpu.assume_multiple %185, 8 : i32
    %187 = arith.index_cast %183 : i32 to index
    %c0_80 = arith.constant 0 : index
    %188 = vector.load %arg10[%187, %c0_80] : memref<64x512xf32, #tpu.memory_space<vmem>>, vector<8x512xf32>
    %c0_81 = arith.constant 0 : index
    %c0_82 = arith.constant 0 : index
    %189 = vector.load %arg3[%c0_81, %c0_82] : memref<128x512xf32, #tpu.memory_space<vmem>>, vector<128x512xf32>
    %cst_83 = arith.constant dense<0.000000e+00> : vector<8x512xf32>
    %190 = tpu.matmul %179, %189, %cst_83 {dimension_numbers = #tpu.dot_dimension_numbers<[1], [0], [0], [1], [0, 0, 1, 1], [], []>} : vector<8x128xf32>, vector<128x512xf32>, vector<8x512xf32> -> vector<8x512xf32>
    %191 = arith.addf %188, %190 : vector<8x512xf32>
    %192 = vector.extract_strided_slice %191 {offsets = [0, 0], sizes = [8, 128], strides = [1, 1]} : vector<8x512xf32> to vector<8x128xf32>
    %cst_84 = arith.constant 5.000000e-01 : f32
    %193 = vector.broadcast %cst_84 : f32 to vector<8x128xf32>
    %194 = arith.mulf %193, %192 : vector<8x128xf32>
    %195 = math.tanh %194 : vector<8x128xf32>
    %cst_85 = arith.constant 5.000000e-01 : f32
    %196 = vector.broadcast %cst_85 : f32 to vector<8x128xf32>
    %197 = arith.mulf %196, %195 : vector<8x128xf32>
    %cst_86 = arith.constant 5.000000e-01 : f32
    %198 = vector.broadcast %cst_86 : f32 to vector<8x128xf32>
    %199 = arith.addf %197, %198 : vector<8x128xf32>
    %200 = vector.extract_strided_slice %191 {offsets = [0, 128], sizes = [8, 128], strides = [1, 1]} : vector<8x512xf32> to vector<8x128xf32>
    %cst_87 = arith.constant 5.000000e-01 : f32
    %201 = vector.broadcast %cst_87 : f32 to vector<8x128xf32>
    %202 = arith.mulf %201, %200 : vector<8x128xf32>
    %203 = math.tanh %202 : vector<8x128xf32>
    %cst_88 = arith.constant 5.000000e-01 : f32
    %204 = vector.broadcast %cst_88 : f32 to vector<8x128xf32>
    %205 = arith.mulf %204, %203 : vector<8x128xf32>
    %cst_89 = arith.constant 5.000000e-01 : f32
    %206 = vector.broadcast %cst_89 : f32 to vector<8x128xf32>
    %207 = arith.addf %205, %206 : vector<8x128xf32>
    %208 = vector.extract_strided_slice %191 {offsets = [0, 256], sizes = [8, 128], strides = [1, 1]} : vector<8x512xf32> to vector<8x128xf32>
    %209 = math.tanh %208 : vector<8x128xf32>
    %210 = vector.extract_strided_slice %191 {offsets = [0, 384], sizes = [8, 128], strides = [1, 1]} : vector<8x512xf32> to vector<8x128xf32>
    %cst_90 = arith.constant 5.000000e-01 : f32
    %211 = vector.broadcast %cst_90 : f32 to vector<8x128xf32>
    %212 = arith.mulf %211, %210 : vector<8x128xf32>
    %213 = math.tanh %212 : vector<8x128xf32>
    %cst_91 = arith.constant 5.000000e-01 : f32
    %214 = vector.broadcast %cst_91 : f32 to vector<8x128xf32>
    %215 = arith.mulf %214, %213 : vector<8x128xf32>
    %cst_92 = arith.constant 5.000000e-01 : f32
    %216 = vector.broadcast %cst_92 : f32 to vector<8x128xf32>
    %217 = arith.addf %215, %216 : vector<8x128xf32>
    %218 = arith.mulf %207, %177 : vector<8x128xf32>
    %219 = arith.mulf %199, %209 : vector<8x128xf32>
    %220 = arith.addf %218, %219 : vector<8x128xf32>
    %221 = math.tanh %220 : vector<8x128xf32>
    %222 = arith.mulf %217, %221 : vector<8x128xf32>
    %223 = arith.index_cast %186 : i32 to index
    %c0_93 = arith.constant 0 : index
    %224 = vector.load %arg11[%223, %c0_93] : memref<64x128xf32, #tpu.memory_space<vmem>>, vector<8x128xf32>
    tpu.vector_store %arg11[%223, %c0_93], %222 {strides = array<i32>} : memref<64x128xf32, #tpu.memory_space<vmem>>, vector<8x128xf32>,
    %c5_i32 = arith.constant 5 : i32
    %c8_i32_94 = arith.constant 8 : i32
    %225 = arith.muli %c5_i32, %c8_i32_94 : i32
    %226 = tpu.assume_multiple %225, 8 : i32
    %c0_i32_95 = arith.constant 0 : i32
    %227 = arith.addi %c0_i32_95, %c5_i32 : i32
    %c8_i32_96 = arith.constant 8 : i32
    %228 = arith.muli %227, %c8_i32_96 : i32
    %229 = tpu.assume_multiple %228, 8 : i32
    %230 = arith.index_cast %226 : i32 to index
    %c0_97 = arith.constant 0 : index
    %231 = vector.load %arg10[%230, %c0_97] : memref<64x512xf32, #tpu.memory_space<vmem>>, vector<8x512xf32>
    %c0_98 = arith.constant 0 : index
    %c0_99 = arith.constant 0 : index
    %232 = vector.load %arg3[%c0_98, %c0_99] : memref<128x512xf32, #tpu.memory_space<vmem>>, vector<128x512xf32>
    %cst_100 = arith.constant dense<0.000000e+00> : vector<8x512xf32>
    %233 = tpu.matmul %222, %232, %cst_100 {dimension_numbers = #tpu.dot_dimension_numbers<[1], [0], [0], [1], [0, 0, 1, 1], [], []>} : vector<8x128xf32>, vector<128x512xf32>, vector<8x512xf32> -> vector<8x512xf32>
    %234 = arith.addf %231, %233 : vector<8x512xf32>
    %235 = vector.extract_strided_slice %234 {offsets = [0, 0], sizes = [8, 128], strides = [1, 1]} : vector<8x512xf32> to vector<8x128xf32>
    %cst_101 = arith.constant 5.000000e-01 : f32
    %236 = vector.broadcast %cst_101 : f32 to vector<8x128xf32>
    %237 = arith.mulf %236, %235 : vector<8x128xf32>
    %238 = math.tanh %237 : vector<8x128xf32>
    %cst_102 = arith.constant 5.000000e-01 : f32
    %239 = vector.broadcast %cst_102 : f32 to vector<8x128xf32>
    %240 = arith.mulf %239, %238 : vector<8x128xf32>
    %cst_103 = arith.constant 5.000000e-01 : f32
    %241 = vector.broadcast %cst_103 : f32 to vector<8x128xf32>
    %242 = arith.addf %240, %241 : vector<8x128xf32>
    %243 = vector.extract_strided_slice %234 {offsets = [0, 128], sizes = [8, 128], strides = [1, 1]} : vector<8x512xf32> to vector<8x128xf32>
    %cst_104 = arith.constant 5.000000e-01 : f32
    %244 = vector.broadcast %cst_104 : f32 to vector<8x128xf32>
    %245 = arith.mulf %244, %243 : vector<8x128xf32>
    %246 = math.tanh %245 : vector<8x128xf32>
    %cst_105 = arith.constant 5.000000e-01 : f32
    %247 = vector.broadcast %cst_105 : f32 to vector<8x128xf32>
    %248 = arith.mulf %247, %246 : vector<8x128xf32>
    %cst_106 = arith.constant 5.000000e-01 : f32
    %249 = vector.broadcast %cst_106 : f32 to vector<8x128xf32>
    %250 = arith.addf %248, %249 : vector<8x128xf32>
    %251 = vector.extract_strided_slice %234 {offsets = [0, 256], sizes = [8, 128], strides = [1, 1]} : vector<8x512xf32> to vector<8x128xf32>
    %252 = math.tanh %251 : vector<8x128xf32>
    %253 = vector.extract_strided_slice %234 {offsets = [0, 384], sizes = [8, 128], strides = [1, 1]} : vector<8x512xf32> to vector<8x128xf32>
    %cst_107 = arith.constant 5.000000e-01 : f32
    %254 = vector.broadcast %cst_107 : f32 to vector<8x128xf32>
    %255 = arith.mulf %254, %253 : vector<8x128xf32>
    %256 = math.tanh %255 : vector<8x128xf32>
    %cst_108 = arith.constant 5.000000e-01 : f32
    %257 = vector.broadcast %cst_108 : f32 to vector<8x128xf32>
    %258 = arith.mulf %257, %256 : vector<8x128xf32>
    %cst_109 = arith.constant 5.000000e-01 : f32
    %259 = vector.broadcast %cst_109 : f32 to vector<8x128xf32>
    %260 = arith.addf %258, %259 : vector<8x128xf32>
    %261 = arith.mulf %250, %220 : vector<8x128xf32>
    %262 = arith.mulf %242, %252 : vector<8x128xf32>
    %263 = arith.addf %261, %262 : vector<8x128xf32>
    %264 = math.tanh %263 : vector<8x128xf32>
    %265 = arith.mulf %260, %264 : vector<8x128xf32>
    %266 = arith.index_cast %229 : i32 to index
    %c0_110 = arith.constant 0 : index
    %267 = vector.load %arg11[%266, %c0_110] : memref<64x128xf32, #tpu.memory_space<vmem>>, vector<8x128xf32>
    tpu.vector_store %arg11[%266, %c0_110], %265 {strides = array<i32>} : memref<64x128xf32, #tpu.memory_space<vmem>>, vector<8x128xf32>,
    %c6_i32 = arith.constant 6 : i32
    %c8_i32_111 = arith.constant 8 : i32
    %268 = arith.muli %c6_i32, %c8_i32_111 : i32
    %269 = tpu.assume_multiple %268, 8 : i32
    %c0_i32_112 = arith.constant 0 : i32
    %270 = arith.addi %c0_i32_112, %c6_i32 : i32
    %c8_i32_113 = arith.constant 8 : i32
    %271 = arith.muli %270, %c8_i32_113 : i32
    %272 = tpu.assume_multiple %271, 8 : i32
    %273 = arith.index_cast %269 : i32 to index
    %c0_114 = arith.constant 0 : index
    %274 = vector.load %arg10[%273, %c0_114] : memref<64x512xf32, #tpu.memory_space<vmem>>, vector<8x512xf32>
    %c0_115 = arith.constant 0 : index
    %c0_116 = arith.constant 0 : index
    %275 = vector.load %arg3[%c0_115, %c0_116] : memref<128x512xf32, #tpu.memory_space<vmem>>, vector<128x512xf32>
    %cst_117 = arith.constant dense<0.000000e+00> : vector<8x512xf32>
    %276 = tpu.matmul %265, %275, %cst_117 {dimension_numbers = #tpu.dot_dimension_numbers<[1], [0], [0], [1], [0, 0, 1, 1], [], []>} : vector<8x128xf32>, vector<128x512xf32>, vector<8x512xf32> -> vector<8x512xf32>
    %277 = arith.addf %274, %276 : vector<8x512xf32>
    %278 = vector.extract_strided_slice %277 {offsets = [0, 0], sizes = [8, 128], strides = [1, 1]} : vector<8x512xf32> to vector<8x128xf32>
    %cst_118 = arith.constant 5.000000e-01 : f32
    %279 = vector.broadcast %cst_118 : f32 to vector<8x128xf32>
    %280 = arith.mulf %279, %278 : vector<8x128xf32>
    %281 = math.tanh %280 : vector<8x128xf32>
    %cst_119 = arith.constant 5.000000e-01 : f32
    %282 = vector.broadcast %cst_119 : f32 to vector<8x128xf32>
    %283 = arith.mulf %282, %281 : vector<8x128xf32>
    %cst_120 = arith.constant 5.000000e-01 : f32
    %284 = vector.broadcast %cst_120 : f32 to vector<8x128xf32>
    %285 = arith.addf %283, %284 : vector<8x128xf32>
    %286 = vector.extract_strided_slice %277 {offsets = [0, 128], sizes = [8, 128], strides = [1, 1]} : vector<8x512xf32> to vector<8x128xf32>
    %cst_121 = arith.constant 5.000000e-01 : f32
    %287 = vector.broadcast %cst_121 : f32 to vector<8x128xf32>
    %288 = arith.mulf %287, %286 : vector<8x128xf32>
    %289 = math.tanh %288 : vector<8x128xf32>
    %cst_122 = arith.constant 5.000000e-01 : f32
    %290 = vector.broadcast %cst_122 : f32 to vector<8x128xf32>
    %291 = arith.mulf %290, %289 : vector<8x128xf32>
    %cst_123 = arith.constant 5.000000e-01 : f32
    %292 = vector.broadcast %cst_123 : f32 to vector<8x128xf32>
    %293 = arith.addf %291, %292 : vector<8x128xf32>
    %294 = vector.extract_strided_slice %277 {offsets = [0, 256], sizes = [8, 128], strides = [1, 1]} : vector<8x512xf32> to vector<8x128xf32>
    %295 = math.tanh %294 : vector<8x128xf32>
    %296 = vector.extract_strided_slice %277 {offsets = [0, 384], sizes = [8, 128], strides = [1, 1]} : vector<8x512xf32> to vector<8x128xf32>
    %cst_124 = arith.constant 5.000000e-01 : f32
    %297 = vector.broadcast %cst_124 : f32 to vector<8x128xf32>
    %298 = arith.mulf %297, %296 : vector<8x128xf32>
    %299 = math.tanh %298 : vector<8x128xf32>
    %cst_125 = arith.constant 5.000000e-01 : f32
    %300 = vector.broadcast %cst_125 : f32 to vector<8x128xf32>
    %301 = arith.mulf %300, %299 : vector<8x128xf32>
    %cst_126 = arith.constant 5.000000e-01 : f32
    %302 = vector.broadcast %cst_126 : f32 to vector<8x128xf32>
    %303 = arith.addf %301, %302 : vector<8x128xf32>
    %304 = arith.mulf %293, %263 : vector<8x128xf32>
    %305 = arith.mulf %285, %295 : vector<8x128xf32>
    %306 = arith.addf %304, %305 : vector<8x128xf32>
    %307 = math.tanh %306 : vector<8x128xf32>
    %308 = arith.mulf %303, %307 : vector<8x128xf32>
    %309 = arith.index_cast %272 : i32 to index
    %c0_127 = arith.constant 0 : index
    %310 = vector.load %arg11[%309, %c0_127] : memref<64x128xf32, #tpu.memory_space<vmem>>, vector<8x128xf32>
    tpu.vector_store %arg11[%309, %c0_127], %308 {strides = array<i32>} : memref<64x128xf32, #tpu.memory_space<vmem>>, vector<8x128xf32>,
    %c7_i32 = arith.constant 7 : i32
    %c8_i32_128 = arith.constant 8 : i32
    %311 = arith.muli %c7_i32, %c8_i32_128 : i32
    %312 = tpu.assume_multiple %311, 8 : i32
    %c0_i32_129 = arith.constant 0 : i32
    %313 = arith.addi %c0_i32_129, %c7_i32 : i32
    %c8_i32_130 = arith.constant 8 : i32
    %314 = arith.muli %313, %c8_i32_130 : i32
    %315 = tpu.assume_multiple %314, 8 : i32
    %316 = arith.index_cast %312 : i32 to index
    %c0_131 = arith.constant 0 : index
    %317 = vector.load %arg10[%316, %c0_131] : memref<64x512xf32, #tpu.memory_space<vmem>>, vector<8x512xf32>
    %c0_132 = arith.constant 0 : index
    %c0_133 = arith.constant 0 : index
    %318 = vector.load %arg3[%c0_132, %c0_133] : memref<128x512xf32, #tpu.memory_space<vmem>>, vector<128x512xf32>
    %cst_134 = arith.constant dense<0.000000e+00> : vector<8x512xf32>
    %319 = tpu.matmul %308, %318, %cst_134 {dimension_numbers = #tpu.dot_dimension_numbers<[1], [0], [0], [1], [0, 0, 1, 1], [], []>} : vector<8x128xf32>, vector<128x512xf32>, vector<8x512xf32> -> vector<8x512xf32>
    %320 = arith.addf %317, %319 : vector<8x512xf32>
    %321 = vector.extract_strided_slice %320 {offsets = [0, 0], sizes = [8, 128], strides = [1, 1]} : vector<8x512xf32> to vector<8x128xf32>
    %cst_135 = arith.constant 5.000000e-01 : f32
    %322 = vector.broadcast %cst_135 : f32 to vector<8x128xf32>
    %323 = arith.mulf %322, %321 : vector<8x128xf32>
    %324 = math.tanh %323 : vector<8x128xf32>
    %cst_136 = arith.constant 5.000000e-01 : f32
    %325 = vector.broadcast %cst_136 : f32 to vector<8x128xf32>
    %326 = arith.mulf %325, %324 : vector<8x128xf32>
    %cst_137 = arith.constant 5.000000e-01 : f32
    %327 = vector.broadcast %cst_137 : f32 to vector<8x128xf32>
    %328 = arith.addf %326, %327 : vector<8x128xf32>
    %329 = vector.extract_strided_slice %320 {offsets = [0, 128], sizes = [8, 128], strides = [1, 1]} : vector<8x512xf32> to vector<8x128xf32>
    %cst_138 = arith.constant 5.000000e-01 : f32
    %330 = vector.broadcast %cst_138 : f32 to vector<8x128xf32>
    %331 = arith.mulf %330, %329 : vector<8x128xf32>
    %332 = math.tanh %331 : vector<8x128xf32>
    %cst_139 = arith.constant 5.000000e-01 : f32
    %333 = vector.broadcast %cst_139 : f32 to vector<8x128xf32>
    %334 = arith.mulf %333, %332 : vector<8x128xf32>
    %cst_140 = arith.constant 5.000000e-01 : f32
    %335 = vector.broadcast %cst_140 : f32 to vector<8x128xf32>
    %336 = arith.addf %334, %335 : vector<8x128xf32>
    %337 = vector.extract_strided_slice %320 {offsets = [0, 256], sizes = [8, 128], strides = [1, 1]} : vector<8x512xf32> to vector<8x128xf32>
    %338 = math.tanh %337 : vector<8x128xf32>
    %339 = vector.extract_strided_slice %320 {offsets = [0, 384], sizes = [8, 128], strides = [1, 1]} : vector<8x512xf32> to vector<8x128xf32>
    %cst_141 = arith.constant 5.000000e-01 : f32
    %340 = vector.broadcast %cst_141 : f32 to vector<8x128xf32>
    %341 = arith.mulf %340, %339 : vector<8x128xf32>
    %342 = math.tanh %341 : vector<8x128xf32>
    %cst_142 = arith.constant 5.000000e-01 : f32
    %343 = vector.broadcast %cst_142 : f32 to vector<8x128xf32>
    %344 = arith.mulf %343, %342 : vector<8x128xf32>
    %cst_143 = arith.constant 5.000000e-01 : f32
    %345 = vector.broadcast %cst_143 : f32 to vector<8x128xf32>
    %346 = arith.addf %344, %345 : vector<8x128xf32>
    %347 = arith.mulf %336, %306 : vector<8x128xf32>
    %348 = arith.mulf %328, %338 : vector<8x128xf32>
    %349 = arith.addf %347, %348 : vector<8x128xf32>
    %350 = math.tanh %349 : vector<8x128xf32>
    %351 = arith.mulf %346, %350 : vector<8x128xf32>
    %352 = arith.index_cast %315 : i32 to index
    %c0_144 = arith.constant 0 : index
    %353 = vector.load %arg11[%352, %c0_144] : memref<64x128xf32, #tpu.memory_space<vmem>>, vector<8x128xf32>
    tpu.vector_store %arg11[%352, %c0_144], %351 {strides = array<i32>} : memref<64x128xf32, #tpu.memory_space<vmem>>, vector<8x128xf32>,
    %c8_i32_145 = arith.constant 8 : i32
    %c0_146 = arith.constant 0 : index
    %c0_147 = arith.constant 0 : index
    %c0_148 = arith.constant 0 : index
    %c0_149 = arith.constant 0 : index
    %354 = vector.load %arg8[%c0_146, %c0_147, %c0_148, %c0_149] : memref<2x1x8x128xf32, #tpu.memory_space<vmem>>, vector<1x1x8x128xf32>
    %355 = vector.shape_cast %354 : vector<1x1x8x128xf32> to vector<8x128xf32>
    %356 = vector.shape_cast %351 : vector<8x128xf32> to vector<1x1x8x128xf32>
    tpu.vector_store %arg8[%c0_146, %c0_147, %c0_148, %c0_149], %356 {strides = array<i32>} : memref<2x1x8x128xf32, #tpu.memory_space<vmem>>, vector<1x1x8x128xf32>,
    %c0_150 = arith.constant 0 : index
    %c0_151 = arith.constant 0 : index
    %c0_152 = arith.constant 0 : index
    %c0_153 = arith.constant 0 : index
    %357 = vector.load %arg9[%c0_150, %c0_151, %c0_152, %c0_153] : memref<2x1x8x128xf32, #tpu.memory_space<vmem>>, vector<1x1x8x128xf32>
    %358 = vector.shape_cast %357 : vector<1x1x8x128xf32> to vector<8x128xf32>
    %359 = vector.shape_cast %349 : vector<8x128xf32> to vector<1x1x8x128xf32>
    tpu.vector_store %arg9[%c0_150, %c0_151, %c0_152, %c0_153], %359 {strides = array<i32>} : memref<2x1x8x128xf32, #tpu.memory_space<vmem>>, vector<1x1x8x128xf32>,
    %cst_154 = arith.constant 0.000000e+00 : f32
    %360 = vector.broadcast %cst_154 : f32 to vector<8x128xf32>
    %cst_155 = arith.constant 0.000000e+00 : f32
    %361 = vector.broadcast %cst_155 : f32 to vector<8x128xf32>
    %c0_156 = arith.constant 0 : index
    %c0_157 = arith.constant 0 : index
    %362 = vector.load %arg11[%c0_156, %c0_157] : memref<64x128xf32, #tpu.memory_space<vmem>>, vector<64x128xf32>
    %c0_158 = arith.constant 0 : index
    %c0_159 = arith.constant 0 : index
    %363 = vector.load %arg5[%c0_158, %c0_159] : memref<128x512xf32, #tpu.memory_space<vmem>>, vector<128x512xf32>
    %cst_160 = arith.constant dense<0.000000e+00> : vector<64x512xf32>
    %364 = tpu.matmul %362, %363, %cst_160 {dimension_numbers = #tpu.dot_dimension_numbers<[1], [0], [0], [1], [0, 0, 1, 1], [], []>} : vector<64x128xf32>, vector<128x512xf32>, vector<64x512xf32> -> vector<64x512xf32>
    %c0_161 = arith.constant 0 : index
    %c0_162 = arith.constant 0 : index
    %365 = vector.load %arg7[%c0_161, %c0_162] : memref<1x512xf32, #tpu.memory_space<vmem>>, vector<1x512xf32>
    %366 = vector.broadcast %365 : vector<1x512xf32> to vector<64x512xf32>
    %367 = arith.addf %364, %366 : vector<64x512xf32>
    %c0_163 = arith.constant 0 : index
    %c0_164 = arith.constant 0 : index
    %368 = vector.load %arg10[%c0_163, %c0_164] : memref<64x512xf32, #tpu.memory_space<vmem>>, vector<64x512xf32>
    tpu.vector_store %arg10[%c0_163, %c0_164], %367 {strides = array<i32>} : memref<64x512xf32, #tpu.memory_space<vmem>>, vector<64x512xf32>,
    %c0_i32_165 = arith.constant 0 : i32
    %c8_i32_166 = arith.constant 8 : i32
    %369 = arith.muli %c0_i32_165, %c8_i32_166 : i32
    %370 = tpu.assume_multiple %369, 8 : i32
    %371 = arith.index_cast %370 : i32 to index
    %c0_167 = arith.constant 0 : index
    %372 = vector.load %arg10[%371, %c0_167] : memref<64x512xf32, #tpu.memory_space<vmem>>, vector<8x512xf32>
    %c0_168 = arith.constant 0 : index
    %c0_169 = arith.constant 0 : index
    %373 = vector.load %arg6[%c0_168, %c0_169] : memref<128x512xf32, #tpu.memory_space<vmem>>, vector<128x512xf32>
    %cst_170 = arith.constant dense<0.000000e+00> : vector<8x512xf32>
    %374 = tpu.matmul %360, %373, %cst_170 {dimension_numbers = #tpu.dot_dimension_numbers<[1], [0], [0], [1], [0, 0, 1, 1], [], []>} : vector<8x128xf32>, vector<128x512xf32>, vector<8x512xf32> -> vector<8x512xf32>
    %375 = arith.addf %372, %374 : vector<8x512xf32>
    %376 = vector.extract_strided_slice %375 {offsets = [0, 0], sizes = [8, 128], strides = [1, 1]} : vector<8x512xf32> to vector<8x128xf32>
    %cst_171 = arith.constant 5.000000e-01 : f32
    %377 = vector.broadcast %cst_171 : f32 to vector<8x128xf32>
    %378 = arith.mulf %377, %376 : vector<8x128xf32>
    %379 = math.tanh %378 : vector<8x128xf32>
    %cst_172 = arith.constant 5.000000e-01 : f32
    %380 = vector.broadcast %cst_172 : f32 to vector<8x128xf32>
    %381 = arith.mulf %380, %379 : vector<8x128xf32>
    %cst_173 = arith.constant 5.000000e-01 : f32
    %382 = vector.broadcast %cst_173 : f32 to vector<8x128xf32>
    %383 = arith.addf %381, %382 : vector<8x128xf32>
    %384 = vector.extract_strided_slice %375 {offsets = [0, 128], sizes = [8, 128], strides = [1, 1]} : vector<8x512xf32> to vector<8x128xf32>
    %cst_174 = arith.constant 5.000000e-01 : f32
    %385 = vector.broadcast %cst_174 : f32 to vector<8x128xf32>
    %386 = arith.mulf %385, %384 : vector<8x128xf32>
    %387 = math.tanh %386 : vector<8x128xf32>
    %cst_175 = arith.constant 5.000000e-01 : f32
    %388 = vector.broadcast %cst_175 : f32 to vector<8x128xf32>
    %389 = arith.mulf %388, %387 : vector<8x128xf32>
    %cst_176 = arith.constant 5.000000e-01 : f32
    %390 = vector.broadcast %cst_176 : f32 to vector<8x128xf32>
    %391 = arith.addf %389, %390 : vector<8x128xf32>
    %392 = vector.extract_strided_slice %375 {offsets = [0, 256], sizes = [8, 128], strides = [1, 1]} : vector<8x512xf32> to vector<8x128xf32>
    %393 = math.tanh %392 : vector<8x128xf32>
    %394 = vector.extract_strided_slice %375 {offsets = [0, 384], sizes = [8, 128], strides = [1, 1]} : vector<8x512xf32> to vector<8x128xf32>
    %cst_177 = arith.constant 5.000000e-01 : f32
    %395 = vector.broadcast %cst_177 : f32 to vector<8x128xf32>
    %396 = arith.mulf %395, %394 : vector<8x128xf32>
    %397 = math.tanh %396 : vector<8x128xf32>
    %cst_178 = arith.constant 5.000000e-01 : f32
    %398 = vector.broadcast %cst_178 : f32 to vector<8x128xf32>
    %399 = arith.mulf %398, %397 : vector<8x128xf32>
    %cst_179 = arith.constant 5.000000e-01 : f32
    %400 = vector.broadcast %cst_179 : f32 to vector<8x128xf32>
    %401 = arith.addf %399, %400 : vector<8x128xf32>
    %402 = arith.mulf %391, %361 : vector<8x128xf32>
    %403 = arith.mulf %383, %393 : vector<8x128xf32>
    %404 = arith.addf %402, %403 : vector<8x128xf32>
    %405 = math.tanh %404 : vector<8x128xf32>
    %406 = arith.mulf %401, %405 : vector<8x128xf32>
    %c1_i32_180 = arith.constant 1 : i32
    %c8_i32_181 = arith.constant 8 : i32
    %407 = arith.muli %c1_i32_180, %c8_i32_181 : i32
    %408 = tpu.assume_multiple %407, 8 : i32
    %409 = arith.index_cast %408 : i32 to index
    %c0_182 = arith.constant 0 : index
    %410 = vector.load %arg10[%409, %c0_182] : memref<64x512xf32, #tpu.memory_space<vmem>>, vector<8x512xf32>
    %c0_183 = arith.constant 0 : index
    %c0_184 = arith.constant 0 : index
    %411 = vector.load %arg6[%c0_183, %c0_184] : memref<128x512xf32, #tpu.memory_space<vmem>>, vector<128x512xf32>
    %cst_185 = arith.constant dense<0.000000e+00> : vector<8x512xf32>
    %412 = tpu.matmul %406, %411, %cst_185 {dimension_numbers = #tpu.dot_dimension_numbers<[1], [0], [0], [1], [0, 0, 1, 1], [], []>} : vector<8x128xf32>, vector<128x512xf32>, vector<8x512xf32> -> vector<8x512xf32>
    %413 = arith.addf %410, %412 : vector<8x512xf32>
    %414 = vector.extract_strided_slice %413 {offsets = [0, 0], sizes = [8, 128], strides = [1, 1]} : vector<8x512xf32> to vector<8x128xf32>
    %cst_186 = arith.constant 5.000000e-01 : f32
    %415 = vector.broadcast %cst_186 : f32 to vector<8x128xf32>
    %416 = arith.mulf %415, %414 : vector<8x128xf32>
    %417 = math.tanh %416 : vector<8x128xf32>
    %cst_187 = arith.constant 5.000000e-01 : f32
    %418 = vector.broadcast %cst_187 : f32 to vector<8x128xf32>
    %419 = arith.mulf %418, %417 : vector<8x128xf32>
    %cst_188 = arith.constant 5.000000e-01 : f32
    %420 = vector.broadcast %cst_188 : f32 to vector<8x128xf32>
    %421 = arith.addf %419, %420 : vector<8x128xf32>
    %422 = vector.extract_strided_slice %413 {offsets = [0, 128], sizes = [8, 128], strides = [1, 1]} : vector<8x512xf32> to vector<8x128xf32>
    %cst_189 = arith.constant 5.000000e-01 : f32
    %423 = vector.broadcast %cst_189 : f32 to vector<8x128xf32>
    %424 = arith.mulf %423, %422 : vector<8x128xf32>
    %425 = math.tanh %424 : vector<8x128xf32>
    %cst_190 = arith.constant 5.000000e-01 : f32
    %426 = vector.broadcast %cst_190 : f32 to vector<8x128xf32>
    %427 = arith.mulf %426, %425 : vector<8x128xf32>
    %cst_191 = arith.constant 5.000000e-01 : f32
    %428 = vector.broadcast %cst_191 : f32 to vector<8x128xf32>
    %429 = arith.addf %427, %428 : vector<8x128xf32>
    %430 = vector.extract_strided_slice %413 {offsets = [0, 256], sizes = [8, 128], strides = [1, 1]} : vector<8x512xf32> to vector<8x128xf32>
    %431 = math.tanh %430 : vector<8x128xf32>
    %432 = vector.extract_strided_slice %413 {offsets = [0, 384], sizes = [8, 128], strides = [1, 1]} : vector<8x512xf32> to vector<8x128xf32>
    %cst_192 = arith.constant 5.000000e-01 : f32
    %433 = vector.broadcast %cst_192 : f32 to vector<8x128xf32>
    %434 = arith.mulf %433, %432 : vector<8x128xf32>
    %435 = math.tanh %434 : vector<8x128xf32>
    %cst_193 = arith.constant 5.000000e-01 : f32
    %436 = vector.broadcast %cst_193 : f32 to vector<8x128xf32>
    %437 = arith.mulf %436, %435 : vector<8x128xf32>
    %cst_194 = arith.constant 5.000000e-01 : f32
    %438 = vector.broadcast %cst_194 : f32 to vector<8x128xf32>
    %439 = arith.addf %437, %438 : vector<8x128xf32>
    %440 = arith.mulf %429, %404 : vector<8x128xf32>
    %441 = arith.mulf %421, %431 : vector<8x128xf32>
    %442 = arith.addf %440, %441 : vector<8x128xf32>
    %443 = math.tanh %442 : vector<8x128xf32>
    %444 = arith.mulf %439, %443 : vector<8x128xf32>
    %c2_i32_195 = arith.constant 2 : i32
    %c8_i32_196 = arith.constant 8 : i32
    %445 = arith.muli %c2_i32_195, %c8_i32_196 : i32
    %446 = tpu.assume_multiple %445, 8 : i32
    %447 = arith.index_cast %446 : i32 to index
    %c0_197 = arith.constant 0 : index
    %448 = vector.load %arg10[%447, %c0_197] : memref<64x512xf32, #tpu.memory_space<vmem>>, vector<8x512xf32>
    %c0_198 = arith.constant 0 : index
    %c0_199 = arith.constant 0 : index
    %449 = vector.load %arg6[%c0_198, %c0_199] : memref<128x512xf32, #tpu.memory_space<vmem>>, vector<128x512xf32>
    %cst_200 = arith.constant dense<0.000000e+00> : vector<8x512xf32>
    %450 = tpu.matmul %444, %449, %cst_200 {dimension_numbers = #tpu.dot_dimension_numbers<[1], [0], [0], [1], [0, 0, 1, 1], [], []>} : vector<8x128xf32>, vector<128x512xf32>, vector<8x512xf32> -> vector<8x512xf32>
    %451 = arith.addf %448, %450 : vector<8x512xf32>
    %452 = vector.extract_strided_slice %451 {offsets = [0, 0], sizes = [8, 128], strides = [1, 1]} : vector<8x512xf32> to vector<8x128xf32>
    %cst_201 = arith.constant 5.000000e-01 : f32
    %453 = vector.broadcast %cst_201 : f32 to vector<8x128xf32>
    %454 = arith.mulf %453, %452 : vector<8x128xf32>
    %455 = math.tanh %454 : vector<8x128xf32>
    %cst_202 = arith.constant 5.000000e-01 : f32
    %456 = vector.broadcast %cst_202 : f32 to vector<8x128xf32>
    %457 = arith.mulf %456, %455 : vector<8x128xf32>
    %cst_203 = arith.constant 5.000000e-01 : f32
    %458 = vector.broadcast %cst_203 : f32 to vector<8x128xf32>
    %459 = arith.addf %457, %458 : vector<8x128xf32>
    %460 = vector.extract_strided_slice %451 {offsets = [0, 128], sizes = [8, 128], strides = [1, 1]} : vector<8x512xf32> to vector<8x128xf32>
    %cst_204 = arith.constant 5.000000e-01 : f32
    %461 = vector.broadcast %cst_204 : f32 to vector<8x128xf32>
    %462 = arith.mulf %461, %460 : vector<8x128xf32>
    %463 = math.tanh %462 : vector<8x128xf32>
    %cst_205 = arith.constant 5.000000e-01 : f32
    %464 = vector.broadcast %cst_205 : f32 to vector<8x128xf32>
    %465 = arith.mulf %464, %463 : vector<8x128xf32>
    %cst_206 = arith.constant 5.000000e-01 : f32
    %466 = vector.broadcast %cst_206 : f32 to vector<8x128xf32>
    %467 = arith.addf %465, %466 : vector<8x128xf32>
    %468 = vector.extract_strided_slice %451 {offsets = [0, 256], sizes = [8, 128], strides = [1, 1]} : vector<8x512xf32> to vector<8x128xf32>
    %469 = math.tanh %468 : vector<8x128xf32>
    %470 = vector.extract_strided_slice %451 {offsets = [0, 384], sizes = [8, 128], strides = [1, 1]} : vector<8x512xf32> to vector<8x128xf32>
    %cst_207 = arith.constant 5.000000e-01 : f32
    %471 = vector.broadcast %cst_207 : f32 to vector<8x128xf32>
    %472 = arith.mulf %471, %470 : vector<8x128xf32>
    %473 = math.tanh %472 : vector<8x128xf32>
    %cst_208 = arith.constant 5.000000e-01 : f32
    %474 = vector.broadcast %cst_208 : f32 to vector<8x128xf32>
    %475 = arith.mulf %474, %473 : vector<8x128xf32>
    %cst_209 = arith.constant 5.000000e-01 : f32
    %476 = vector.broadcast %cst_209 : f32 to vector<8x128xf32>
    %477 = arith.addf %475, %476 : vector<8x128xf32>
    %478 = arith.mulf %467, %442 : vector<8x128xf32>
    %479 = arith.mulf %459, %469 : vector<8x128xf32>
    %480 = arith.addf %478, %479 : vector<8x128xf32>
    %481 = math.tanh %480 : vector<8x128xf32>
    %482 = arith.mulf %477, %481 : vector<8x128xf32>
    %c3_i32_210 = arith.constant 3 : i32
    %c8_i32_211 = arith.constant 8 : i32
    %483 = arith.muli %c3_i32_210, %c8_i32_211 : i32
    %484 = tpu.assume_multiple %483, 8 : i32
    %485 = arith.index_cast %484 : i32 to index
    %c0_212 = arith.constant 0 : index
    %486 = vector.load %arg10[%485, %c0_212] : memref<64x512xf32, #tpu.memory_space<vmem>>, vector<8x512xf32>
    %c0_213 = arith.constant 0 : index
    %c0_214 = arith.constant 0 : index
    %487 = vector.load %arg6[%c0_213, %c0_214] : memref<128x512xf32, #tpu.memory_space<vmem>>, vector<128x512xf32>
    %cst_215 = arith.constant dense<0.000000e+00> : vector<8x512xf32>
    %488 = tpu.matmul %482, %487, %cst_215 {dimension_numbers = #tpu.dot_dimension_numbers<[1], [0], [0], [1], [0, 0, 1, 1], [], []>} : vector<8x128xf32>, vector<128x512xf32>, vector<8x512xf32> -> vector<8x512xf32>
    %489 = arith.addf %486, %488 : vector<8x512xf32>
    %490 = vector.extract_strided_slice %489 {offsets = [0, 0], sizes = [8, 128], strides = [1, 1]} : vector<8x512xf32> to vector<8x128xf32>
    %cst_216 = arith.constant 5.000000e-01 : f32
    %491 = vector.broadcast %cst_216 : f32 to vector<8x128xf32>
    %492 = arith.mulf %491, %490 : vector<8x128xf32>
    %493 = math.tanh %492 : vector<8x128xf32>
    %cst_217 = arith.constant 5.000000e-01 : f32
    %494 = vector.broadcast %cst_217 : f32 to vector<8x128xf32>
    %495 = arith.mulf %494, %493 : vector<8x128xf32>
    %cst_218 = arith.constant 5.000000e-01 : f32
    %496 = vector.broadcast %cst_218 : f32 to vector<8x128xf32>
    %497 = arith.addf %495, %496 : vector<8x128xf32>
    %498 = vector.extract_strided_slice %489 {offsets = [0, 128], sizes = [8, 128], strides = [1, 1]} : vector<8x512xf32> to vector<8x128xf32>
    %cst_219 = arith.constant 5.000000e-01 : f32
    %499 = vector.broadcast %cst_219 : f32 to vector<8x128xf32>
    %500 = arith.mulf %499, %498 : vector<8x128xf32>
    %501 = math.tanh %500 : vector<8x128xf32>
    %cst_220 = arith.constant 5.000000e-01 : f32
    %502 = vector.broadcast %cst_220 : f32 to vector<8x128xf32>
    %503 = arith.mulf %502, %501 : vector<8x128xf32>
    %cst_221 = arith.constant 5.000000e-01 : f32
    %504 = vector.broadcast %cst_221 : f32 to vector<8x128xf32>
    %505 = arith.addf %503, %504 : vector<8x128xf32>
    %506 = vector.extract_strided_slice %489 {offsets = [0, 256], sizes = [8, 128], strides = [1, 1]} : vector<8x512xf32> to vector<8x128xf32>
    %507 = math.tanh %506 : vector<8x128xf32>
    %508 = vector.extract_strided_slice %489 {offsets = [0, 384], sizes = [8, 128], strides = [1, 1]} : vector<8x512xf32> to vector<8x128xf32>
    %cst_222 = arith.constant 5.000000e-01 : f32
    %509 = vector.broadcast %cst_222 : f32 to vector<8x128xf32>
    %510 = arith.mulf %509, %508 : vector<8x128xf32>
    %511 = math.tanh %510 : vector<8x128xf32>
    %cst_223 = arith.constant 5.000000e-01 : f32
    %512 = vector.broadcast %cst_223 : f32 to vector<8x128xf32>
    %513 = arith.mulf %512, %511 : vector<8x128xf32>
    %cst_224 = arith.constant 5.000000e-01 : f32
    %514 = vector.broadcast %cst_224 : f32 to vector<8x128xf32>
    %515 = arith.addf %513, %514 : vector<8x128xf32>
    %516 = arith.mulf %505, %480 : vector<8x128xf32>
    %517 = arith.mulf %497, %507 : vector<8x128xf32>
    %518 = arith.addf %516, %517 : vector<8x128xf32>
    %519 = math.tanh %518 : vector<8x128xf32>
    %520 = arith.mulf %515, %519 : vector<8x128xf32>
    %c4_i32_225 = arith.constant 4 : i32
    %c8_i32_226 = arith.constant 8 : i32
    %521 = arith.muli %c4_i32_225, %c8_i32_226 : i32
    %522 = tpu.assume_multiple %521, 8 : i32
    %523 = arith.index_cast %522 : i32 to index
    %c0_227 = arith.constant 0 : index
    %524 = vector.load %arg10[%523, %c0_227] : memref<64x512xf32, #tpu.memory_space<vmem>>, vector<8x512xf32>
    %c0_228 = arith.constant 0 : index
    %c0_229 = arith.constant 0 : index
    %525 = vector.load %arg6[%c0_228, %c0_229] : memref<128x512xf32, #tpu.memory_space<vmem>>, vector<128x512xf32>
    %cst_230 = arith.constant dense<0.000000e+00> : vector<8x512xf32>
    %526 = tpu.matmul %520, %525, %cst_230 {dimension_numbers = #tpu.dot_dimension_numbers<[1], [0], [0], [1], [0, 0, 1, 1], [], []>} : vector<8x128xf32>, vector<128x512xf32>, vector<8x512xf32> -> vector<8x512xf32>
    %527 = arith.addf %524, %526 : vector<8x512xf32>
    %528 = vector.extract_strided_slice %527 {offsets = [0, 0], sizes = [8, 128], strides = [1, 1]} : vector<8x512xf32> to vector<8x128xf32>
    %cst_231 = arith.constant 5.000000e-01 : f32
    %529 = vector.broadcast %cst_231 : f32 to vector<8x128xf32>
    %530 = arith.mulf %529, %528 : vector<8x128xf32>
    %531 = math.tanh %530 : vector<8x128xf32>
    %cst_232 = arith.constant 5.000000e-01 : f32
    %532 = vector.broadcast %cst_232 : f32 to vector<8x128xf32>
    %533 = arith.mulf %532, %531 : vector<8x128xf32>
    %cst_233 = arith.constant 5.000000e-01 : f32
    %534 = vector.broadcast %cst_233 : f32 to vector<8x128xf32>
    %535 = arith.addf %533, %534 : vector<8x128xf32>
    %536 = vector.extract_strided_slice %527 {offsets = [0, 128], sizes = [8, 128], strides = [1, 1]} : vector<8x512xf32> to vector<8x128xf32>
    %cst_234 = arith.constant 5.000000e-01 : f32
    %537 = vector.broadcast %cst_234 : f32 to vector<8x128xf32>
    %538 = arith.mulf %537, %536 : vector<8x128xf32>
    %539 = math.tanh %538 : vector<8x128xf32>
    %cst_235 = arith.constant 5.000000e-01 : f32
    %540 = vector.broadcast %cst_235 : f32 to vector<8x128xf32>
    %541 = arith.mulf %540, %539 : vector<8x128xf32>
    %cst_236 = arith.constant 5.000000e-01 : f32
    %542 = vector.broadcast %cst_236 : f32 to vector<8x128xf32>
    %543 = arith.addf %541, %542 : vector<8x128xf32>
    %544 = vector.extract_strided_slice %527 {offsets = [0, 256], sizes = [8, 128], strides = [1, 1]} : vector<8x512xf32> to vector<8x128xf32>
    %545 = math.tanh %544 : vector<8x128xf32>
    %546 = vector.extract_strided_slice %527 {offsets = [0, 384], sizes = [8, 128], strides = [1, 1]} : vector<8x512xf32> to vector<8x128xf32>
    %cst_237 = arith.constant 5.000000e-01 : f32
    %547 = vector.broadcast %cst_237 : f32 to vector<8x128xf32>
    %548 = arith.mulf %547, %546 : vector<8x128xf32>
    %549 = math.tanh %548 : vector<8x128xf32>
    %cst_238 = arith.constant 5.000000e-01 : f32
    %550 = vector.broadcast %cst_238 : f32 to vector<8x128xf32>
    %551 = arith.mulf %550, %549 : vector<8x128xf32>
    %cst_239 = arith.constant 5.000000e-01 : f32
    %552 = vector.broadcast %cst_239 : f32 to vector<8x128xf32>
    %553 = arith.addf %551, %552 : vector<8x128xf32>
    %554 = arith.mulf %543, %518 : vector<8x128xf32>
    %555 = arith.mulf %535, %545 : vector<8x128xf32>
    %556 = arith.addf %554, %555 : vector<8x128xf32>
    %557 = math.tanh %556 : vector<8x128xf32>
    %558 = arith.mulf %553, %557 : vector<8x128xf32>
    %c5_i32_240 = arith.constant 5 : i32
    %c8_i32_241 = arith.constant 8 : i32
    %559 = arith.muli %c5_i32_240, %c8_i32_241 : i32
    %560 = tpu.assume_multiple %559, 8 : i32
    %561 = arith.index_cast %560 : i32 to index
    %c0_242 = arith.constant 0 : index
    %562 = vector.load %arg10[%561, %c0_242] : memref<64x512xf32, #tpu.memory_space<vmem>>, vector<8x512xf32>
    %c0_243 = arith.constant 0 : index
    %c0_244 = arith.constant 0 : index
    %563 = vector.load %arg6[%c0_243, %c0_244] : memref<128x512xf32, #tpu.memory_space<vmem>>, vector<128x512xf32>
    %cst_245 = arith.constant dense<0.000000e+00> : vector<8x512xf32>
    %564 = tpu.matmul %558, %563, %cst_245 {dimension_numbers = #tpu.dot_dimension_numbers<[1], [0], [0], [1], [0, 0, 1, 1], [], []>} : vector<8x128xf32>, vector<128x512xf32>, vector<8x512xf32> -> vector<8x512xf32>
    %565 = arith.addf %562, %564 : vector<8x512xf32>
    %566 = vector.extract_strided_slice %565 {offsets = [0, 0], sizes = [8, 128], strides = [1, 1]} : vector<8x512xf32> to vector<8x128xf32>
    %cst_246 = arith.constant 5.000000e-01 : f32
    %567 = vector.broadcast %cst_246 : f32 to vector<8x128xf32>
    %568 = arith.mulf %567, %566 : vector<8x128xf32>
    %569 = math.tanh %568 : vector<8x128xf32>
    %cst_247 = arith.constant 5.000000e-01 : f32
    %570 = vector.broadcast %cst_247 : f32 to vector<8x128xf32>
    %571 = arith.mulf %570, %569 : vector<8x128xf32>
    %cst_248 = arith.constant 5.000000e-01 : f32
    %572 = vector.broadcast %cst_248 : f32 to vector<8x128xf32>
    %573 = arith.addf %571, %572 : vector<8x128xf32>
    %574 = vector.extract_strided_slice %565 {offsets = [0, 128], sizes = [8, 128], strides = [1, 1]} : vector<8x512xf32> to vector<8x128xf32>
    %cst_249 = arith.constant 5.000000e-01 : f32
    %575 = vector.broadcast %cst_249 : f32 to vector<8x128xf32>
    %576 = arith.mulf %575, %574 : vector<8x128xf32>
    %577 = math.tanh %576 : vector<8x128xf32>
    %cst_250 = arith.constant 5.000000e-01 : f32
    %578 = vector.broadcast %cst_250 : f32 to vector<8x128xf32>
    %579 = arith.mulf %578, %577 : vector<8x128xf32>
    %cst_251 = arith.constant 5.000000e-01 : f32
    %580 = vector.broadcast %cst_251 : f32 to vector<8x128xf32>
    %581 = arith.addf %579, %580 : vector<8x128xf32>
    %582 = vector.extract_strided_slice %565 {offsets = [0, 256], sizes = [8, 128], strides = [1, 1]} : vector<8x512xf32> to vector<8x128xf32>
    %583 = math.tanh %582 : vector<8x128xf32>
    %584 = vector.extract_strided_slice %565 {offsets = [0, 384], sizes = [8, 128], strides = [1, 1]} : vector<8x512xf32> to vector<8x128xf32>
    %cst_252 = arith.constant 5.000000e-01 : f32
    %585 = vector.broadcast %cst_252 : f32 to vector<8x128xf32>
    %586 = arith.mulf %585, %584 : vector<8x128xf32>
    %587 = math.tanh %586 : vector<8x128xf32>
    %cst_253 = arith.constant 5.000000e-01 : f32
    %588 = vector.broadcast %cst_253 : f32 to vector<8x128xf32>
    %589 = arith.mulf %588, %587 : vector<8x128xf32>
    %cst_254 = arith.constant 5.000000e-01 : f32
    %590 = vector.broadcast %cst_254 : f32 to vector<8x128xf32>
    %591 = arith.addf %589, %590 : vector<8x128xf32>
    %592 = arith.mulf %581, %556 : vector<8x128xf32>
    %593 = arith.mulf %573, %583 : vector<8x128xf32>
    %594 = arith.addf %592, %593 : vector<8x128xf32>
    %595 = math.tanh %594 : vector<8x128xf32>
    %596 = arith.mulf %591, %595 : vector<8x128xf32>
    %c6_i32_255 = arith.constant 6 : i32
    %c8_i32_256 = arith.constant 8 : i32
    %597 = arith.muli %c6_i32_255, %c8_i32_256 : i32
    %598 = tpu.assume_multiple %597, 8 : i32
    %599 = arith.index_cast %598 : i32 to index
    %c0_257 = arith.constant 0 : index
    %600 = vector.load %arg10[%599, %c0_257] : memref<64x512xf32, #tpu.memory_space<vmem>>, vector<8x512xf32>
    %c0_258 = arith.constant 0 : index
    %c0_259 = arith.constant 0 : index
    %601 = vector.load %arg6[%c0_258, %c0_259] : memref<128x512xf32, #tpu.memory_space<vmem>>, vector<128x512xf32>
    %cst_260 = arith.constant dense<0.000000e+00> : vector<8x512xf32>
    %602 = tpu.matmul %596, %601, %cst_260 {dimension_numbers = #tpu.dot_dimension_numbers<[1], [0], [0], [1], [0, 0, 1, 1], [], []>} : vector<8x128xf32>, vector<128x512xf32>, vector<8x512xf32> -> vector<8x512xf32>
    %603 = arith.addf %600, %602 : vector<8x512xf32>
    %604 = vector.extract_strided_slice %603 {offsets = [0, 0], sizes = [8, 128], strides = [1, 1]} : vector<8x512xf32> to vector<8x128xf32>
    %cst_261 = arith.constant 5.000000e-01 : f32
    %605 = vector.broadcast %cst_261 : f32 to vector<8x128xf32>
    %606 = arith.mulf %605, %604 : vector<8x128xf32>
    %607 = math.tanh %606 : vector<8x128xf32>
    %cst_262 = arith.constant 5.000000e-01 : f32
    %608 = vector.broadcast %cst_262 : f32 to vector<8x128xf32>
    %609 = arith.mulf %608, %607 : vector<8x128xf32>
    %cst_263 = arith.constant 5.000000e-01 : f32
    %610 = vector.broadcast %cst_263 : f32 to vector<8x128xf32>
    %611 = arith.addf %609, %610 : vector<8x128xf32>
    %612 = vector.extract_strided_slice %603 {offsets = [0, 128], sizes = [8, 128], strides = [1, 1]} : vector<8x512xf32> to vector<8x128xf32>
    %cst_264 = arith.constant 5.000000e-01 : f32
    %613 = vector.broadcast %cst_264 : f32 to vector<8x128xf32>
    %614 = arith.mulf %613, %612 : vector<8x128xf32>
    %615 = math.tanh %614 : vector<8x128xf32>
    %cst_265 = arith.constant 5.000000e-01 : f32
    %616 = vector.broadcast %cst_265 : f32 to vector<8x128xf32>
    %617 = arith.mulf %616, %615 : vector<8x128xf32>
    %cst_266 = arith.constant 5.000000e-01 : f32
    %618 = vector.broadcast %cst_266 : f32 to vector<8x128xf32>
    %619 = arith.addf %617, %618 : vector<8x128xf32>
    %620 = vector.extract_strided_slice %603 {offsets = [0, 256], sizes = [8, 128], strides = [1, 1]} : vector<8x512xf32> to vector<8x128xf32>
    %621 = math.tanh %620 : vector<8x128xf32>
    %622 = vector.extract_strided_slice %603 {offsets = [0, 384], sizes = [8, 128], strides = [1, 1]} : vector<8x512xf32> to vector<8x128xf32>
    %cst_267 = arith.constant 5.000000e-01 : f32
    %623 = vector.broadcast %cst_267 : f32 to vector<8x128xf32>
    %624 = arith.mulf %623, %622 : vector<8x128xf32>
    %625 = math.tanh %624 : vector<8x128xf32>
    %cst_268 = arith.constant 5.000000e-01 : f32
    %626 = vector.broadcast %cst_268 : f32 to vector<8x128xf32>
    %627 = arith.mulf %626, %625 : vector<8x128xf32>
    %cst_269 = arith.constant 5.000000e-01 : f32
    %628 = vector.broadcast %cst_269 : f32 to vector<8x128xf32>
    %629 = arith.addf %627, %628 : vector<8x128xf32>
    %630 = arith.mulf %619, %594 : vector<8x128xf32>
    %631 = arith.mulf %611, %621 : vector<8x128xf32>
    %632 = arith.addf %630, %631 : vector<8x128xf32>
    %633 = math.tanh %632 : vector<8x128xf32>
    %634 = arith.mulf %629, %633 : vector<8x128xf32>
    %c7_i32_270 = arith.constant 7 : i32
    %c8_i32_271 = arith.constant 8 : i32
    %635 = arith.muli %c7_i32_270, %c8_i32_271 : i32
    %636 = tpu.assume_multiple %635, 8 : i32
    %637 = arith.index_cast %636 : i32 to index
    %c0_272 = arith.constant 0 : index
    %638 = vector.load %arg10[%637, %c0_272] : memref<64x512xf32, #tpu.memory_space<vmem>>, vector<8x512xf32>
    %c0_273 = arith.constant 0 : index
    %c0_274 = arith.constant 0 : index
    %639 = vector.load %arg6[%c0_273, %c0_274] : memref<128x512xf32, #tpu.memory_space<vmem>>, vector<128x512xf32>
    %cst_275 = arith.constant dense<0.000000e+00> : vector<8x512xf32>
    %640 = tpu.matmul %634, %639, %cst_275 {dimension_numbers = #tpu.dot_dimension_numbers<[1], [0], [0], [1], [0, 0, 1, 1], [], []>} : vector<8x128xf32>, vector<128x512xf32>, vector<8x512xf32> -> vector<8x512xf32>
    %641 = arith.addf %638, %640 : vector<8x512xf32>
    %642 = vector.extract_strided_slice %641 {offsets = [0, 0], sizes = [8, 128], strides = [1, 1]} : vector<8x512xf32> to vector<8x128xf32>
    %cst_276 = arith.constant 5.000000e-01 : f32
    %643 = vector.broadcast %cst_276 : f32 to vector<8x128xf32>
    %644 = arith.mulf %643, %642 : vector<8x128xf32>
    %645 = math.tanh %644 : vector<8x128xf32>
    %cst_277 = arith.constant 5.000000e-01 : f32
    %646 = vector.broadcast %cst_277 : f32 to vector<8x128xf32>
    %647 = arith.mulf %646, %645 : vector<8x128xf32>
    %cst_278 = arith.constant 5.000000e-01 : f32
    %648 = vector.broadcast %cst_278 : f32 to vector<8x128xf32>
    %649 = arith.addf %647, %648 : vector<8x128xf32>
    %650 = vector.extract_strided_slice %641 {offsets = [0, 128], sizes = [8, 128], strides = [1, 1]} : vector<8x512xf32> to vector<8x128xf32>
    %cst_279 = arith.constant 5.000000e-01 : f32
    %651 = vector.broadcast %cst_279 : f32 to vector<8x128xf32>
    %652 = arith.mulf %651, %650 : vector<8x128xf32>
    %653 = math.tanh %652 : vector<8x128xf32>
    %cst_280 = arith.constant 5.000000e-01 : f32
    %654 = vector.broadcast %cst_280 : f32 to vector<8x128xf32>
    %655 = arith.mulf %654, %653 : vector<8x128xf32>
    %cst_281 = arith.constant 5.000000e-01 : f32
    %656 = vector.broadcast %cst_281 : f32 to vector<8x128xf32>
    %657 = arith.addf %655, %656 : vector<8x128xf32>
    %658 = vector.extract_strided_slice %641 {offsets = [0, 256], sizes = [8, 128], strides = [1, 1]} : vector<8x512xf32> to vector<8x128xf32>
    %659 = math.tanh %658 : vector<8x128xf32>
    %660 = vector.extract_strided_slice %641 {offsets = [0, 384], sizes = [8, 128], strides = [1, 1]} : vector<8x512xf32> to vector<8x128xf32>
    %cst_282 = arith.constant 5.000000e-01 : f32
    %661 = vector.broadcast %cst_282 : f32 to vector<8x128xf32>
    %662 = arith.mulf %661, %660 : vector<8x128xf32>
    %663 = math.tanh %662 : vector<8x128xf32>
    %cst_283 = arith.constant 5.000000e-01 : f32
    %664 = vector.broadcast %cst_283 : f32 to vector<8x128xf32>
    %665 = arith.mulf %664, %663 : vector<8x128xf32>
    %cst_284 = arith.constant 5.000000e-01 : f32
    %666 = vector.broadcast %cst_284 : f32 to vector<8x128xf32>
    %667 = arith.addf %665, %666 : vector<8x128xf32>
    %668 = arith.mulf %657, %632 : vector<8x128xf32>
    %669 = arith.mulf %649, %659 : vector<8x128xf32>
    %670 = arith.addf %668, %669 : vector<8x128xf32>
    %671 = math.tanh %670 : vector<8x128xf32>
    %672 = arith.mulf %667, %671 : vector<8x128xf32>
    %c8_i32_285 = arith.constant 8 : i32
    %c1 = arith.constant 1 : index
    %c0_286 = arith.constant 0 : index
    %c0_287 = arith.constant 0 : index
    %c0_288 = arith.constant 0 : index
    %673 = vector.load %arg8[%c1, %c0_286, %c0_287, %c0_288] : memref<2x1x8x128xf32, #tpu.memory_space<vmem>>, vector<1x1x8x128xf32>
    %674 = vector.shape_cast %673 : vector<1x1x8x128xf32> to vector<8x128xf32>
    %675 = vector.shape_cast %672 : vector<8x128xf32> to vector<1x1x8x128xf32>
    tpu.vector_store %arg8[%c1, %c0_286, %c0_287, %c0_288], %675 {strides = array<i32>} : memref<2x1x8x128xf32, #tpu.memory_space<vmem>>, vector<1x1x8x128xf32>,
    %c1_289 = arith.constant 1 : index
    %c0_290 = arith.constant 0 : index
    %c0_291 = arith.constant 0 : index
    %c0_292 = arith.constant 0 : index
    %676 = vector.load %arg9[%c1_289, %c0_290, %c0_291, %c0_292] : memref<2x1x8x128xf32, #tpu.memory_space<vmem>>, vector<1x1x8x128xf32>
    %677 = vector.shape_cast %676 : vector<1x1x8x128xf32> to vector<8x128xf32>
    %678 = vector.shape_cast %670 : vector<8x128xf32> to vector<1x1x8x128xf32>
    tpu.vector_store %arg9[%c1_289, %c0_290, %c0_291, %c0_292], %678 {strides = array<i32>} : memref<2x1x8x128xf32, #tpu.memory_space<vmem>>, vector<1x1x8x128xf32>,
    return
  }
  func.func @transform_0(%arg0: i32) -> (i32, i32, i32) {
    %c0_i32 = arith.constant 0 : i32
    %c0_i32_0 = arith.constant 0 : i32
    %c0_i32_1 = arith.constant 0 : i32
    %c0_i32_2 = arith.constant 0 : i32
    return %c0_i32, %c0_i32_0, %c0_i32_1 : i32, i32, i32
  }
  func.func @transform_1(%arg0: i32) -> (i32, i32) {
    %c0_i32 = arith.constant 0 : i32
    %c0_i32_0 = arith.constant 0 : i32
    %c0_i32_1 = arith.constant 0 : i32
    return %c0_i32, %c0_i32_0 : i32, i32
  }
  func.func @transform_2(%arg0: i32) -> (i32, i32) {
    %c0_i32 = arith.constant 0 : i32
    %c0_i32_0 = arith.constant 0 : i32
    %c0_i32_1 = arith.constant 0 : i32
    return %c0_i32, %c0_i32_0 : i32, i32
  }
  func.func @transform_3(%arg0: i32) -> (i32, i32) {
    %c0_i32 = arith.constant 0 : i32
    %c0_i32_0 = arith.constant 0 : i32
    %c0_i32_1 = arith.constant 0 : i32
    return %c0_i32, %c0_i32_0 : i32, i32
  }
  func.func @transform_4(%arg0: i32) -> (i32, i32) {
    %c0_i32 = arith.constant 0 : i32
    %c0_i32_0 = arith.constant 0 : i32
    %c0_i32_1 = arith.constant 0 : i32
    return %c0_i32, %c0_i32_0 : i32, i32
  }
  func.func @transform_5(%arg0: i32) -> (i32, i32) {
    %c0_i32 = arith.constant 0 : i32
    %c0_i32_0 = arith.constant 0 : i32
    %c0_i32_1 = arith.constant 0 : i32
    return %c0_i32, %c0_i32_0 : i32, i32
  }
  func.func @transform_6(%arg0: i32) -> (i32, i32) {
    %c0_i32 = arith.constant 0 : i32
    %c0_i32_0 = arith.constant 0 : i32
    %c0_i32_1 = arith.constant 0 : i32
    return %c0_i32, %c0_i32_0 : i32, i32
  }
  func.func @transform_7(%arg0: i32) -> (i32, i32, i32, i32) {
    %c0_i32 = arith.constant 0 : i32
    %c0_i32_0 = arith.constant 0 : i32
    %c0_i32_1 = arith.constant 0 : i32
    %c0_i32_2 = arith.constant 0 : i32
    return %c0_i32, %arg0, %c0_i32_0, %c0_i32_1 : i32, i32, i32, i32
  }
  func.func @transform_8(%arg0: i32) -> (i32, i32, i32, i32) {
    %c0_i32 = arith.constant 0 : i32
    %c0_i32_0 = arith.constant 0 : i32
    %c0_i32_1 = arith.constant 0 : i32
    %c0_i32_2 = arith.constant 0 : i32
    return %c0_i32, %arg0, %c0_i32_0, %c0_i32_1 : i32, i32, i32, i32
  }
}

</mosaic_0001>

<llo_original>
// kernel: tpu_custom_call.1
$region0: #{tpu_custom_call.1}
  #allocation0 [shape = 'u32[]', space=smem, size = 0x4, offset = 0x4, fixed_abs, tag = 'smem constant byte address 0x4 - core index']
  #allocation1 [shape = 'u32[72,128]{1,0:T(1,128)}', space=vmem, size = 0x9000, scoped, tag = 'internal scratch']
  #allocation2 [shape = 'f32[64,512]{1,0:T(8,128)}', space=vmem, size = 0x20000, scoped, tag = 'scratch operand']
  #allocation3 [shape = 'f32[64,128]{1,0:T(8,128)}', space=vmem, size = 0x8000, scoped, tag = 'scratch operand']
  %s0 = inlined_call_operand.vmem [shape: f32[1,64,16], index: 0, kind: input, shape index: {}]
  %s1 = inlined_call_operand.vmem [shape: f32[16,512], index: 1, kind: input, shape index: {}]
  %s2 = inlined_call_operand.hbm [shape: f32[128,512], index: 2, kind: input, shape index: {}]
  %s3 = inlined_call_operand.vmem [shape: f32[1,512], index: 3, kind: input, shape index: {}]
  %s4 = inlined_call_operand.hbm [shape: f32[128,512], index: 4, kind: input, shape index: {}]
  %s5 = inlined_call_operand.hbm [shape: f32[128,512], index: 5, kind: input, shape index: {}]
  %s6 = inlined_call_operand.vmem [shape: f32[1,512], index: 6, kind: input, shape index: {}]
  %s7 = inlined_call_operand.hbm [shape: f32[2,1,8,128], index: 7, kind: output, shape index: {0}]
  %s8 = inlined_call_operand.hbm [shape: f32[2,1,8,128], index: 8, kind: output, shape index: {1}]
  %9 = xla_tuple %s7, %s8
  %s10 = sld [smem:[#allocation0]]
  $region58: #{tpu_custom_call.1} parent=0
    _
  %s12 = ssub.s32 1, %s10
  %s13 = scalar_select 0, %s12, %s10
  $region1: #{tpu_custom_call.1} parent=0
    #allocation4 [shape = 'u8[262144]{0}', space=vmem, size = 0x40000, scoped, tag = 'input window, operand 2, single buffered']
    #allocation5 [shape = 's32[1]{0}', space=sflag, size = 0x4, scoped, tag = 'scoped memory for tpu_custom_call.1']
    #allocation6 [shape = 's32[1]{0}', space=sflag, size = 0x4, scoped, tag = 'scoped memory for tpu_custom_call.1']
    #allocation7 [shape = 'u8[262144]{0}', space=vmem, size = 0x40000, scoped, tag = 'input window, operand 4, single buffered']
    #allocation8 [shape = 's32[1]{0}', space=sflag, size = 0x4, scoped, tag = 'scoped memory for tpu_custom_call.1']
    #allocation9 [shape = 'u8[262144]{0}', space=vmem, size = 0x40000, scoped, tag = 'input window, operand 5, single buffered']
    #allocation10 [shape = 'u8[8192]{0}', space=vmem, size = 0x2000, scoped, tag = 'output window, operand 0, single buffered']
    #allocation11 [shape = 'u8[8192]{0}', space=vmem, size = 0x2000, scoped, tag = 'output window, operand 1, single buffered']
    #allocation12 [shape = 's32[1]{0}', space=sflag, size = 0x4, scoped, tag = 'scoped memory for tpu_custom_call.1']
    %14 = vsyncpa [#allocation5], 0
    %15 = vsyncpa [#allocation8], 0
    %16 = vsyncpa [#allocation6], 0
    %17 = vsyncpa [#allocation12], 0
    // Predicated region
    $region2: #{tpu_custom_call.1} parent=1 // pred_check
      _
    $region3: #{tpu_custom_call.1} parent=1 // pred_check_branch
      %19 = sbr.rel (0) target = $region5
    $region4: #{tpu_custom_call.1} parent=1 // pred_region
      _
    $region5: #{tpu_custom_call.1} parent=1 // pred_fallthru
      _
    // Predicated region
    $region6: #{tpu_custom_call.1} parent=1 // pred_check
      _
    $region7: #{tpu_custom_call.1} parent=1 // pred_check_branch
      %21 = sbr.rel (0) target = $region9
    $region8: #{tpu_custom_call.1} parent=1 // pred_region
      _
    $region9: #{tpu_custom_call.1} parent=1 // pred_fallthru
      _
    // Predicated region
    $region10: #{tpu_custom_call.1} parent=1 // pred_check
      _
    $region11: #{tpu_custom_call.1} parent=1 // pred_check_branch
      %23 = sbr.rel (0) target = $region13
    $region12: #{tpu_custom_call.1} parent=1 // pred_region
      %25 = vsyncadd [#allocation5], 0
      %s26 = sshll.u32 %s2, 4
      %s27 = int_to_ptr.hbm [resolvable:$true] %s26
      %s28 = sshll.u32 [#allocation4], 4
      %s29 = int_to_ptr.vmem [resolvable:$true] %s28
      %34 = dma.hbm_to_vmem [thread:$0]  %s27, 8192, %s29, [#allocation5], 512, 512, 32
    $region13: #{tpu_custom_call.1} parent=1 // pred_fallthru
      _
    // Predicated region
    $region14: #{tpu_custom_call.1} parent=1 // pred_check
      _
    $region15: #{tpu_custom_call.1} parent=1 // pred_check_branch
      %36 = sbr.rel (0) target = $region17
    $region16: #{tpu_custom_call.1} parent=1 // pred_region
      _
    $region17: #{tpu_custom_call.1} parent=1 // pred_fallthru
      _
    // Predicated region
    $region18: #{tpu_custom_call.1} parent=1 // pred_check
      _
    $region19: #{tpu_custom_call.1} parent=1 // pred_check_branch
      %38 = sbr.rel (0) target = $region21
    $region20: #{tpu_custom_call.1} parent=1 // pred_region
      %40 = vsyncadd [#allocation8], 0
      %s41 = sshll.u32 %s4, 4
      %s42 = int_to_ptr.hbm [resolvable:$true] %s41
      %s43 = sshll.u32 [#allocation7], 4
      %s44 = int_to_ptr.vmem [resolvable:$true] %s43
      %49 = dma.hbm_to_vmem [thread:$0]  %s42, 8192, %s44, [#allocation8], 512, 512, 32
    $region21: #{tpu_custom_call.1} parent=1 // pred_fallthru
      _
    // Predicated region
    $region22: #{tpu_custom_call.1} parent=1 // pred_check
      _
    $region23: #{tpu_custom_call.1} parent=1 // pred_check_branch
      %51 = sbr.rel (0) target = $region25
    $region24: #{tpu_custom_call.1} parent=1 // pred_region
      %53 = vsyncadd [#allocation8], 0
      %s54 = sshll.u32 %s5, 4
      %s55 = int_to_ptr.hbm [resolvable:$true] %s54
      %s56 = sshll.u32 [#allocation9], 4
      %s57 = int_to_ptr.vmem [resolvable:$true] %s56
      %62 = dma.hbm_to_vmem [thread:$0]  %s55, 8192, %s57, [#allocation8], 512, 512, 32
    $region25: #{tpu_custom_call.1} parent=1 // pred_fallthru
      _
    // Predicated region
    $region26: #{tpu_custom_call.1} parent=1 // pred_check
      _
    $region27: #{tpu_custom_call.1} parent=1 // pred_check_branch
      %64 = sbr.rel (0) target = $region29
    $region28: #{tpu_custom_call.1} parent=1 // pred_region
      _
    $region29: #{tpu_custom_call.1} parent=1 // pred_fallthru
      _
    // Predicated region
    $region30: #{tpu_custom_call.1} parent=1 // pred_check
      _
    $region31: #{tpu_custom_call.1} parent=1 // pred_check_branch
      %66 = sbr.rel (0) target = $region33
    $region32: #{tpu_custom_call.1} parent=1 // pred_region
      %68 = dma.done [#allocation5], 8192
    $region33: #{tpu_custom_call.1} parent=1 // pred_fallthru
      _
    // Predicated region
    $region34: #{tpu_custom_call.1} parent=1 // pred_check
      _
    $region35: #{tpu_custom_call.1} parent=1 // pred_check_branch
      %70 = sbr.rel (0) target = $region37
    $region36: #{tpu_custom_call.1} parent=1 // pred_region
      %72 = dma.done [#allocation8], 8192
    $region37: #{tpu_custom_call.1} parent=1 // pred_fallthru
      _
    // Predicated region
    $region38: #{tpu_custom_call.1} parent=1 // pred_check
      _
    $region39: #{tpu_custom_call.1} parent=1 // pred_check_branch
      %74 = sbr.rel (0) target = $region41
    $region40: #{tpu_custom_call.1} parent=1 // pred_region
      %76 = dma.done [#allocation8], 8192
    $region41: #{tpu_custom_call.1} parent=1 // pred_fallthru
      _
    %v77 = vld [vmem:[%s0] sm:$0xff]
    %v78 = vld [vmem:[%s0 + $0x8] sm:$0xff]
    %v79 = vld [vmem:[%s0 + $0x10] sm:$0xff]
    %v80 = vld [vmem:[%s0 + $0x18] sm:$0xff]
    %v81 = vld [vmem:[%s0 + $0x20] sm:$0xff]
    %v82 = vld [vmem:[%s0 + $0x28] sm:$0xff]
    %v83 = vld [vmem:[%s0 + $0x30] sm:$0xff]
    %v84 = vld [vmem:[%s0 + $0x38] sm:$0xff]
    %v85 = vld [vmem:[%s1] sm:$0xff]
    %v86 = vld [vmem:[%s1 + $0x8] sm:$0xff]
    %v87 = vld [vmem:[%s1 + $0x10] sm:$0xff]
    %v88 = vld [vmem:[%s1 + $0x18] sm:$0xff]
    %v89 = vld [vmem:[%s1 + $0x20] sm:$0xff]
    %v90 = vld [vmem:[%s1 + $0x28] sm:$0xff]
    %v91 = vld [vmem:[%s1 + $0x30] sm:$0xff]
    %v92 = vld [vmem:[%s1 + $0x38] sm:$0xff]
    %v93 = vld [vmem:[%s3] sm:$0xf]
    %v95 = vperm.slane %v93, 0
    %v96 = vperm.slane %v93, 1
    %v97 = vperm.slane %v93, 2
    %v98 = vperm.slane %v93, 3
    %vm103 = vcmask 130048
    %v105 = vsel %vm103, %v77, 0
    %v108 = vsel %vm103, %v78, 0
    %v111 = vsel %vm103, %v79, 0
    %v114 = vsel %vm103, %v80, 0
    %v117 = vsel %vm103, %v81, 0
    %v120 = vsel %vm103, %v82, 0
    %v123 = vsel %vm103, %v83, 0
    %v126 = vsel %vm103, %v84, 0
    %128 = vmatpush.msra.mxu0 0.0
    %129 = vmatpush.msra.mxu0 0.0
    %130 = vmatpush.msra.mxu0 0.0
    %131 = vmatpush.msra.mxu0 0.0
    %132 = vmatpush.msra.mxu0 0.0
    %133 = vmatpush.msra.mxu0 0.0
    %134 = vmatpush.msra.mxu0 0.0
    %135 = vmatpush.msra.mxu0 0.0
    %136 = vmatpush.msra.mxu0 0.0
    %137 = vmatpush.msra.mxu0 0.0
    %138 = vmatpush.msra.mxu0 0.0
    %139 = vmatpush.msra.mxu0 0.0
    %140 = vmatpush.msra.mxu0 0.0
    %141 = vmatpush.msra.mxu0 0.0
    %142 = vmatpush.msra.mxu0 %v89
    %143 = vmatpush.msra.mxu0 %v85
    %144 = vmatmul.f32.gmra.mxu0 %v105
    %v145 = vpop.f32.mrf.mxu0
    %v146 = vadd.f32 %v95, %v145
    %147 = vmatmul.f32.gmra.mxu0 %v108
    %v148 = vpop.f32.mrf.mxu0
    %v149 = vadd.f32 %v95, %v148
    %150 = vmatmul.f32.gmra.mxu0 %v111
    %v151 = vpop.f32.mrf.mxu0
    %v152 = vadd.f32 %v95, %v151
    %153 = vmatmul.f32.gmra.mxu0 %v114
    %v154 = vpop.f32.mrf.mxu0
    %v155 = vadd.f32 %v95, %v154
    %156 = vmatmul.f32.gmra.mxu0 %v117
    %v157 = vpop.f32.mrf.mxu0
    %v158 = vadd.f32 %v95, %v157
    %159 = vmatmul.f32.gmra.mxu0 %v120
    %v160 = vpop.f32.mrf.mxu0
    %v161 = vadd.f32 %v95, %v160
    %162 = vmatmul.f32.gmra.mxu0 %v123
    %v163 = vpop.f32.mrf.mxu0
    %v164 = vadd.f32 %v95, %v163
    %165 = vmatmul.f32.gmra.mxu0 %v126
    %v166 = vpop.f32.mrf.mxu0
    %v167 = vadd.f32 %v95, %v166
    %168 = vdwg.mxu0
    %169 = vmatpush.msra.mxu0 0.0
    %170 = vmatpush.msra.mxu0 0.0
    %171 = vmatpush.msra.mxu0 0.0
    %172 = vmatpush.msra.mxu0 0.0
    %173 = vmatpush.msra.mxu0 0.0
    %174 = vmatpush.msra.mxu0 0.0
    %175 = vmatpush.msra.mxu0 0.0
    %176 = vmatpush.msra.mxu0 0.0
    %177 = vmatpush.msra.mxu0 0.0
    %178 = vmatpush.msra.mxu0 0.0
    %179 = vmatpush.msra.mxu0 0.0
    %180 = vmatpush.msra.mxu0 0.0
    %181 = vmatpush.msra.mxu0 0.0
    %182 = vmatpush.msra.mxu0 0.0
    %183 = vmatpush.msra.mxu0 %v90
    %184 = vmatpush.msra.mxu0 %v86
    %185 = vmatmul.f32.gmra.mxu0 %v105
    %v186 = vpop.f32.mrf.mxu0
    %v187 = vadd.f32 %v96, %v186
    %188 = vmatmul.f32.gmra.mxu0 %v108
    %v189 = vpop.f32.mrf.mxu0
    %v190 = vadd.f32 %v96, %v189
    %191 = vmatmul.f32.gmra.mxu0 %v111
    %v192 = vpop.f32.mrf.mxu0
    %v193 = vadd.f32 %v96, %v192
    %194 = vmatmul.f32.gmra.mxu0 %v114
    %v195 = vpop.f32.mrf.mxu0
    %v196 = vadd.f32 %v96, %v195
    %197 = vmatmul.f32.gmra.mxu0 %v117
    %v198 = vpop.f32.mrf.mxu0
    %v199 = vadd.f32 %v96, %v198
    %200 = vmatmul.f32.gmra.mxu0 %v120
    %v201 = vpop.f32.mrf.mxu0
    %v202 = vadd.f32 %v96, %v201
    %203 = vmatmul.f32.gmra.mxu0 %v123
    %v204 = vpop.f32.mrf.mxu0
    %v205 = vadd.f32 %v96, %v204
    %206 = vmatmul.f32.gmra.mxu0 %v126
    %v207 = vpop.f32.mrf.mxu0
    %v208 = vadd.f32 %v96, %v207
    %209 = vdwg.mxu0
    %210 = vmatpush.msra.mxu0 0.0
    %211 = vmatpush.msra.mxu0 0.0
    %212 = vmatpush.msra.mxu0 0.0
    %213 = vmatpush.msra.mxu0 0.0
    %214 = vmatpush.msra.mxu0 0.0
    %215 = vmatpush.msra.mxu0 0.0
    %216 = vmatpush.msra.mxu0 0.0
    %217 = vmatpush.msra.mxu0 0.0
    %218 = vmatpush.msra.mxu0 0.0
    %219 = vmatpush.msra.mxu0 0.0
    %220 = vmatpush.msra.mxu0 0.0
    %221 = vmatpush.msra.mxu0 0.0
    %222 = vmatpush.msra.mxu0 0.0
    %223 = vmatpush.msra.mxu0 0.0
    %224 = vmatpush.msra.mxu0 %v91
    %225 = vmatpush.msra.mxu0 %v87
    %226 = vmatmul.f32.gmra.mxu0 %v105
    %v227 = vpop.f32.mrf.mxu0
    %v228 = vadd.f32 %v97, %v227
    %229 = vmatmul.f32.gmra.mxu0 %v108
    %v230 = vpop.f32.mrf.mxu0
    %v231 = vadd.f32 %v97, %v230
    %232 = vmatmul.f32.gmra.mxu0 %v111
    %v233 = vpop.f32.mrf.mxu0
    %v234 = vadd.f32 %v97, %v233
    %235 = vmatmul.f32.gmra.mxu0 %v114
    %v236 = vpop.f32.mrf.mxu0
    %v237 = vadd.f32 %v97, %v236
    %238 = vmatmul.f32.gmra.mxu0 %v117
    %v239 = vpop.f32.mrf.mxu0
    %v240 = vadd.f32 %v97, %v239
    %241 = vmatmul.f32.gmra.mxu0 %v120
    %v242 = vpop.f32.mrf.mxu0
    %v243 = vadd.f32 %v97, %v242
    %244 = vmatmul.f32.gmra.mxu0 %v123
    %v245 = vpop.f32.mrf.mxu0
    %v246 = vadd.f32 %v97, %v245
    %247 = vmatmul.f32.gmra.mxu0 %v126
    %v248 = vpop.f32.mrf.mxu0
    %v249 = vadd.f32 %v97, %v248
    %250 = vdwg.mxu0
    %251 = vmatpush.msra.mxu0 0.0
    %252 = vmatpush.msra.mxu0 0.0
    %253 = vmatpush.msra.mxu0 0.0
    %254 = vmatpush.msra.mxu0 0.0
    %255 = vmatpush.msra.mxu0 0.0
    %256 = vmatpush.msra.mxu0 0.0
    %257 = vmatpush.msra.mxu0 0.0
    %258 = vmatpush.msra.mxu0 0.0
    %259 = vmatpush.msra.mxu0 0.0
    %260 = vmatpush.msra.mxu0 0.0
    %261 = vmatpush.msra.mxu0 0.0
    %262 = vmatpush.msra.mxu0 0.0
    %263 = vmatpush.msra.mxu0 0.0
    %264 = vmatpush.msra.mxu0 0.0
    %265 = vmatpush.msra.mxu0 %v92
    %266 = vmatpush.msra.mxu0 %v88
    %267 = vmatmul.f32.gmra.mxu0 %v105
    %v268 = vpop.f32.mrf.mxu0
    %v269 = vadd.f32 %v98, %v268
    %270 = vmatmul.f32.gmra.mxu0 %v108
    %v271 = vpop.f32.mrf.mxu0
    %v272 = vadd.f32 %v98, %v271
    %273 = vmatmul.f32.gmra.mxu0 %v111
    %v274 = vpop.f32.mrf.mxu0
    %v275 = vadd.f32 %v98, %v274
    %276 = vmatmul.f32.gmra.mxu0 %v114
    %v277 = vpop.f32.mrf.mxu0
    %v278 = vadd.f32 %v98, %v277
    %279 = vmatmul.f32.gmra.mxu0 %v117
    %v280 = vpop.f32.mrf.mxu0
    %v281 = vadd.f32 %v98, %v280
    %282 = vmatmul.f32.gmra.mxu0 %v120
    %v283 = vpop.f32.mrf.mxu0
    %v284 = vadd.f32 %v98, %v283
    %285 = vmatmul.f32.gmra.mxu0 %v123
    %v286 = vpop.f32.mrf.mxu0
    %v287 = vadd.f32 %v98, %v286
    %288 = vmatmul.f32.gmra.mxu0 %v126
    %v289 = vpop.f32.mrf.mxu0
    %v290 = vadd.f32 %v98, %v289
    %291 = vdwg.mxu0
    %292 = vst [vmem:[#allocation2] sm:$0xff] %v146
    %293 = vst [vmem:[#allocation2 + $0x8] sm:$0xff] %v187
    %294 = vst [vmem:[#allocation2 + $0x10] sm:$0xff] %v228
    %295 = vst [vmem:[#allocation2 + $0x18] sm:$0xff] %v269
    %296 = vst [vmem:[#allocation2 + $0x20] sm:$0xff] %v149
    %297 = vst [vmem:[#allocation2 + $0x28] sm:$0xff] %v190
    %298 = vst [vmem:[#allocation2 + $0x30] sm:$0xff] %v231
    %299 = vst [vmem:[#allocation2 + $0x38] sm:$0xff] %v272
    %300 = vst [vmem:[#allocation2 + $0x40] sm:$0xff] %v152
    %301 = vst [vmem:[#allocation2 + $0x48] sm:$0xff] %v193
    %302 = vst [vmem:[#allocation2 + $0x50] sm:$0xff] %v234
    %303 = vst [vmem:[#allocation2 + $0x58] sm:$0xff] %v275
    %304 = vst [vmem:[#allocation2 + $0x60] sm:$0xff] %v155
    %305 = vst [vmem:[#allocation2 + $0x68] sm:$0xff] %v196
    %306 = vst [vmem:[#allocation2 + $0x70] sm:$0xff] %v237
    %307 = vst [vmem:[#allocation2 + $0x78] sm:$0xff] %v278
    %308 = vst [vmem:[#allocation2 + $0x80] sm:$0xff] %v158
    %309 = vst [vmem:[#allocation2 + $0x88] sm:$0xff] %v199
    %310 = vst [vmem:[#allocation2 + $0x90] sm:$0xff] %v240
    %311 = vst [vmem:[#allocation2 + $0x98] sm:$0xff] %v281
    %312 = vst [vmem:[#allocation2 + $0xa0] sm:$0xff] %v161
    %313 = vst [vmem:[#allocation2 + $0xa8] sm:$0xff] %v202
    %314 = vst [vmem:[#allocation2 + $0xb0] sm:$0xff] %v243
    %315 = vst [vmem:[#allocation2 + $0xb8] sm:$0xff] %v284
    %316 = vst [vmem:[#allocation2 + $0xc0] sm:$0xff] %v164
    %317 = vst [vmem:[#allocation2 + $0xc8] sm:$0xff] %v205
    %318 = vst [vmem:[#allocation2 + $0xd0] sm:$0xff] %v246
    %319 = vst [vmem:[#allocation2 + $0xd8] sm:$0xff] %v287
    %320 = vst [vmem:[#allocation2 + $0xe0] sm:$0xff] %v167
    %321 = vst [vmem:[#allocation2 + $0xe8] sm:$0xff] %v208
    %322 = vst [vmem:[#allocation2 + $0xf0] sm:$0xff] %v249
    %323 = vst [vmem:[#allocation2 + $0xf8] sm:$0xff] %v290
    %s324 = smul.u32 0, 4
    %s325 = smul.addr %s324, 8
    %s326 = scalar_lea.vmem [#allocation2], %s325
    %v327 = vld [vmem:[%s326] sm:$0xff]
    %v328 = vld [vmem:[%s326 + $0x8] sm:$0xff]
    %v329 = vld [vmem:[%s326 + $0x10] sm:$0xff]
    %v330 = vld [vmem:[%s326 + $0x18] sm:$0xff]
    %v331 = vld [vmem:[#allocation4] sm:$0xff]
    %v332 = vld [vmem:[#allocation4 + $0x8] sm:$0xff]
    %v333 = vld [vmem:[#allocation4 + $0x10] sm:$0xff]
    %v334 = vld [vmem:[#allocation4 + $0x18] sm:$0xff]
    %v335 = vld [vmem:[#allocation4 + $0x20] sm:$0xff]
    %v336 = vld [vmem:[#allocation4 + $0x28] sm:$0xff]
    %v337 = vld [vmem:[#allocation4 + $0x30] sm:$0xff]
    %v338 = vld [vmem:[#allocation4 + $0x38] sm:$0xff]
    %v339 = vld [vmem:[#allocation4 + $0x40] sm:$0xff]
    %v340 = vld [vmem:[#allocation4 + $0x48] sm:$0xff]
    %v341 = vld [vmem:[#allocation4 + $0x50] sm:$0xff]
    %v342 = vld [vmem:[#allocation4 + $0x58] sm:$0xff]
    %v343 = vld [vmem:[#allocation4 + $0x60] sm:$0xff]
    %v344 = vld [vmem:[#allocation4 + $0x68] sm:$0xff]
    %v345 = vld [vmem:[#allocation4 + $0x70] sm:$0xff]
    %v346 = vld [vmem:[#allocation4 + $0x78] sm:$0xff]
    %v347 = vld [vmem:[#allocation4 + $0x80] sm:$0xff]
    %v348 = vld [vmem:[#allocation4 + $0x88] sm:$0xff]
    %v349 = vld [vmem:[#allocation4 + $0x90] sm:$0xff]
    %v350 = vld [vmem:[#allocation4 + $0x98] sm:$0xff]
    %v351 = vld [vmem:[#allocation4 + $0xa0] sm:$0xff]
    %v352 = vld [vmem:[#allocation4 + $0xa8] sm:$0xff]
    %v353 = vld [vmem:[#allocation4 + $0xb0] sm:$0xff]
    %v354 = vld [vmem:[#allocation4 + $0xb8] sm:$0xff]
    %v355 = vld [vmem:[#allocation4 + $0xc0] sm:$0xff]
    %v356 = vld [vmem:[#allocation4 + $0xc8] sm:$0xff]
    %v357 = vld [vmem:[#allocation4 + $0xd0] sm:$0xff]
    %v358 = vld [vmem:[#allocation4 + $0xd8] sm:$0xff]
    %v359 = vld [vmem:[#allocation4 + $0xe0] sm:$0xff]
    %v360 = vld [vmem:[#allocation4 + $0xe8] sm:$0xff]
    %v361 = vld [vmem:[#allocation4 + $0xf0] sm:$0xff]
    %v362 = vld [vmem:[#allocation4 + $0xf8] sm:$0xff]
    %v363 = vld [vmem:[#allocation4 + $0x100] sm:$0xff]
    %v364 = vld [vmem:[#allocation4 + $0x108] sm:$0xff]
    %v365 = vld [vmem:[#allocation4 + $0x110] sm:$0xff]
    %v366 = vld [vmem:[#allocation4 + $0x118] sm:$0xff]
    %v367 = vld [vmem:[#allocation4 + $0x120] sm:$0xff]
    %v368 = vld [vmem:[#allocation4 + $0x128] sm:$0xff]
    %v369 = vld [vmem:[#allocation4 + $0x130] sm:$0xff]
    %v370 = vld [vmem:[#allocation4 + $0x138] sm:$0xff]
    %v371 = vld [vmem:[#allocation4 + $0x140] sm:$0xff]
    %v372 = vld [vmem:[#allocation4 + $0x148] sm:$0xff]
    %v373 = vld [vmem:[#allocation4 + $0x150] sm:$0xff]
    %v374 = vld [vmem:[#allocation4 + $0x158] sm:$0xff]
    %v375 = vld [vmem:[#allocation4 + $0x160] sm:$0xff]
    %v376 = vld [vmem:[#allocation4 + $0x168] sm:$0xff]
    %v377 = vld [vmem:[#allocation4 + $0x170] sm:$0xff]
    %v378 = vld [vmem:[#allocation4 + $0x178] sm:$0xff]
    %v379 = vld [vmem:[#allocation4 + $0x180] sm:$0xff]
    %v380 = vld [vmem:[#allocation4 + $0x188] sm:$0xff]
    %v381 = vld [vmem:[#allocation4 + $0x190] sm:$0xff]
    %v382 = vld [vmem:[#allocation4 + $0x198] sm:$0xff]
    %v383 = vld [vmem:[#allocation4 + $0x1a0] sm:$0xff]
    %v384 = vld [vmem:[#allocation4 + $0x1a8] sm:$0xff]
    %v385 = vld [vmem:[#allocation4 + $0x1b0] sm:$0xff]
    %v386 = vld [vmem:[#allocation4 + $0x1b8] sm:$0xff]
    %v387 = vld [vmem:[#allocation4 + $0x1c0] sm:$0xff]
    %v388 = vld [vmem:[#allocation4 + $0x1c8] sm:$0xff]
    %v389 = vld [vmem:[#allocation4 + $0x1d0] sm:$0xff]
    %v390 = vld [vmem:[#allocation4 + $0x1d8] sm:$0xff]
    %v391 = vld [vmem:[#allocation4 + $0x1e0] sm:$0xff]
    %v392 = vld [vmem:[#allocation4 + $0x1e8] sm:$0xff]
    %v393 = vld [vmem:[#allocation4 + $0x1f0] sm:$0xff]
    %v394 = vld [vmem:[#allocation4 + $0x1f8] sm:$0xff]
    %395 = vmatpush.msra.mxu0 %v391
    %396 = vmatpush.msra.mxu0 %v387
    %397 = vmatpush.msra.mxu0 %v383
    %398 = vmatpush.msra.mxu0 %v379
    %399 = vmatpush.msra.mxu0 %v375
    %400 = vmatpush.msra.mxu0 %v371
    %401 = vmatpush.msra.mxu0 %v367
    %402 = vmatpush.msra.mxu0 %v363
    %403 = vmatpush.msra.mxu0 %v359
    %404 = vmatpush.msra.mxu0 %v355
    %405 = vmatpush.msra.mxu0 %v351
    %406 = vmatpush.msra.mxu0 %v347
    %407 = vmatpush.msra.mxu0 %v343
    %408 = vmatpush.msra.mxu0 %v339
    %409 = vmatpush.msra.mxu0 %v335
    %410 = vmatpush.msra.mxu0 %v331
    %411 = vmatmul.f32.gmra.mxu0 0.0
    %v412 = vpop.f32.mrf.mxu0
    %v413 = vadd.f32 0.0, %v412
    %414 = vdwg.mxu0
    %415 = vmatpush.msra.mxu0 %v392
    %416 = vmatpush.msra.mxu0 %v388
    %417 = vmatpush.msra.mxu0 %v384
    %418 = vmatpush.msra.mxu0 %v380
    %419 = vmatpush.msra.mxu0 %v376
    %420 = vmatpush.msra.mxu0 %v372
    %421 = vmatpush.msra.mxu0 %v368
    %422 = vmatpush.msra.mxu0 %v364
    %423 = vmatpush.msra.mxu0 %v360
    %424 = vmatpush.msra.mxu0 %v356
    %425 = vmatpush.msra.mxu0 %v352
    %426 = vmatpush.msra.mxu0 %v348
    %427 = vmatpush.msra.mxu0 %v344
    %428 = vmatpush.msra.mxu0 %v340
    %429 = vmatpush.msra.mxu0 %v336
    %430 = vmatpush.msra.mxu0 %v332
    %431 = vmatmul.f32.gmra.mxu0 0.0
    %v432 = vpop.f32.mrf.mxu0
    %v433 = vadd.f32 0.0, %v432
    %434 = vdwg.mxu0
    %435 = vmatpush.msra.mxu0 %v393
    %436 = vmatpush.msra.mxu0 %v389
    %437 = vmatpush.msra.mxu0 %v385
    %438 = vmatpush.msra.mxu0 %v381
    %439 = vmatpush.msra.mxu0 %v377
    %440 = vmatpush.msra.mxu0 %v373
    %441 = vmatpush.msra.mxu0 %v369
    %442 = vmatpush.msra.mxu0 %v365
    %443 = vmatpush.msra.mxu0 %v361
    %444 = vmatpush.msra.mxu0 %v357
    %445 = vmatpush.msra.mxu0 %v353
    %446 = vmatpush.msra.mxu0 %v349
    %447 = vmatpush.msra.mxu0 %v345
    %448 = vmatpush.msra.mxu0 %v341
    %449 = vmatpush.msra.mxu0 %v337
    %450 = vmatpush.msra.mxu0 %v333
    %451 = vmatmul.f32.gmra.mxu0 0.0
    %v452 = vpop.f32.mrf.mxu0
    %v453 = vadd.f32 0.0, %v452
    %454 = vdwg.mxu0
    %455 = vmatpush.msra.mxu0 %v394
    %456 = vmatpush.msra.mxu0 %v390
    %457 = vmatpush.msra.mxu0 %v386
    %458 = vmatpush.msra.mxu0 %v382
    %459 = vmatpush.msra.mxu0 %v378
    %460 = vmatpush.msra.mxu0 %v374
    %461 = vmatpush.msra.mxu0 %v370
    %462 = vmatpush.msra.mxu0 %v366
    %463 = vmatpush.msra.mxu0 %v362
    %464 = vmatpush.msra.mxu0 %v358
    %465 = vmatpush.msra.mxu0 %v354
    %466 = vmatpush.msra.mxu0 %v350
    %467 = vmatpush.msra.mxu0 %v346
    %468 = vmatpush.msra.mxu0 %v342
    %469 = vmatpush.msra.mxu0 %v338
    %470 = vmatpush.msra.mxu0 %v334
    %471 = vmatmul.f32.gmra.mxu0 0.0
    %v472 = vpop.f32.mrf.mxu0
    %v473 = vadd.f32 0.0, %v472
    %474 = vdwg.mxu0
    %v475 = vadd.f32 %v327, %v413
    %v476 = vadd.f32 %v328, %v433
    %v477 = vadd.f32 %v329, %v453
    %v478 = vadd.f32 %v330, %v473
    %v479 = vmul.f32 %v475, 0.5
    %v480 = vtanh.pop %v479
    %v481 = vmul.f32 %v480, 0.5
    %v482 = vadd.f32 %v481, 0.5
    %v483 = vmul.f32 %v476, 0.5
    %v484 = vtanh.pop %v483
    %v485 = vmul.f32 %v484, 0.5
    %v486 = vadd.f32 %v485, 0.5
    %v487 = vtanh.pop %v477
    %v488 = vmul.f32 %v478, 0.5
    %v489 = vtanh.pop %v488
    %v490 = vmul.f32 %v489, 0.5
    %v491 = vadd.f32 %v490, 0.5
    %v492 = vmul.f32 %v486, 0.0
    %v493 = vmul.f32 %v482, %v487
    %v494 = vadd.f32 %v492, %v493
    %v495 = vtanh.pop %v494
    %v496 = vmul.f32 %v491, %v495
    %497 = vst [vmem:[#allocation3] sm:$0xff] %v496
    %s498 = smul.u32 1, 4
    %s499 = smul.addr %s498, 8
    %s500 = scalar_lea.vmem [#allocation2], %s499
    %v501 = vld [vmem:[%s500] sm:$0xff]
    %v502 = vld [vmem:[%s500 + $0x8] sm:$0xff]
    %v503 = vld [vmem:[%s500 + $0x10] sm:$0xff]
    %v504 = vld [vmem:[%s500 + $0x18] sm:$0xff]
    %v505 = vld [vmem:[#allocation4] sm:$0xff]
    %v506 = vld [vmem:[#allocation4 + $0x8] sm:$0xff]
    %v507 = vld [vmem:[#allocation4 + $0x10] sm:$0xff]
    %v508 = vld [vmem:[#allocation4 + $0x18] sm:$0xff]
    %v509 = vld [vmem:[#allocation4 + $0x20] sm:$0xff]
    %v510 = vld [vmem:[#allocation4 + $0x28] sm:$0xff]
    %v511 = vld [vmem:[#allocation4 + $0x30] sm:$0xff]
    %v512 = vld [vmem:[#allocation4 + $0x38] sm:$0xff]
    %v513 = vld [vmem:[#allocation4 + $0x40] sm:$0xff]
    %v514 = vld [vmem:[#allocation4 + $0x48] sm:$0xff]
    %v515 = vld [vmem:[#allocation4 + $0x50] sm:$0xff]
    %v516 = vld [vmem:[#allocation4 + $0x58] sm:$0xff]
    %v517 = vld [vmem:[#allocation4 + $0x60] sm:$0xff]
    %v518 = vld [vmem:[#allocation4 + $0x68] sm:$0xff]
    %v519 = vld [vmem:[#allocation4 + $0x70] sm:$0xff]
    %v520 = vld [vmem:[#allocation4 + $0x78] sm:$0xff]
    %v521 = vld [vmem:[#allocation4 + $0x80] sm:$0xff]
    %v522 = vld [vmem:[#allocation4 + $0x88] sm:$0xff]
    %v523 = vld [vmem:[#allocation4 + $0x90] sm:$0xff]
    %v524 = vld [vmem:[#allocation4 + $0x98] sm:$0xff]
    %v525 = vld [vmem:[#allocation4 + $0xa0] sm:$0xff]
    %v526 = vld [vmem:[#allocation4 + $0xa8] sm:$0xff]
    %v527 = vld [vmem:[#allocation4 + $0xb0] sm:$0xff]
    %v528 = vld [vmem:[#allocation4 + $0xb8] sm:$0xff]
    %v529 = vld [vmem:[#allocation4 + $0xc0] sm:$0xff]
    %v530 = vld [vmem:[#allocation4 + $0xc8] sm:$0xff]
    %v531 = vld [vmem:[#allocation4 + $0xd0] sm:$0xff]
    %v532 = vld [vmem:[#allocation4 + $0xd8] sm:$0xff]
    %v533 = vld [vmem:[#allocation4 + $0xe0] sm:$0xff]
    %v534 = vld [vmem:[#allocation4 + $0xe8] sm:$0xff]
    %v535 = vld [vmem:[#allocation4 + $0xf0] sm:$0xff]
    %v536 = vld [vmem:[#allocation4 + $0xf8] sm:$0xff]
    %v537 = vld [vmem:[#allocation4 + $0x100] sm:$0xff]
    %v538 = vld [vmem:[#allocation4 + $0x108] sm:$0xff]
    %v539 = vld [vmem:[#allocation4 + $0x110] sm:$0xff]
    %v540 = vld [vmem:[#allocation4 + $0x118] sm:$0xff]
    %v541 = vld [vmem:[#allocation4 + $0x120] sm:$0xff]
    %v542 = vld [vmem:[#allocation4 + $0x128] sm:$0xff]
    %v543 = vld [vmem:[#allocation4 + $0x130] sm:$0xff]
    %v544 = vld [vmem:[#allocation4 + $0x138] sm:$0xff]
    %v545 = vld [vmem:[#allocation4 + $0x140] sm:$0xff]
    %v546 = vld [vmem:[#allocation4 + $0x148] sm:$0xff]
    %v547 = vld [vmem:[#allocation4 + $0x150] sm:$0xff]
    %v548 = vld [vmem:[#allocation4 + $0x158] sm:$0xff]
    %v549 = vld [vmem:[#allocation4 + $0x160] sm:$0xff]
    %v550 = vld [vmem:[#allocation4 + $0x168] sm:$0xff]
    %v551 = vld [vmem:[#allocation4 + $0x170] sm:$0xff]
    %v552 = vld [vmem:[#allocation4 + $0x178] sm:$0xff]
    %v553 = vld [vmem:[#allocation4 + $0x180] sm:$0xff]
    %v554 = vld [vmem:[#allocation4 + $0x188] sm:$0xff]
    %v555 = vld [vmem:[#allocation4 + $0x190] sm:$0xff]
    %v556 = vld [vmem:[#allocation4 + $0x198] sm:$0xff]
    %v557 = vld [vmem:[#allocation4 + $0x1a0] sm:$0xff]
    %v558 = vld [vmem:[#allocation4 + $0x1a8] sm:$0xff]
    %v559 = vld [vmem:[#allocation4 + $0x1b0] sm:$0xff]
    %v560 = vld [vmem:[#allocation4 + $0x1b8] sm:$0xff]
    %v561 = vld [vmem:[#allocation4 + $0x1c0] sm:$0xff]
    %v562 = vld [vmem:[#allocation4 + $0x1c8] sm:$0xff]
    %v563 = vld [vmem:[#allocation4 + $0x1d0] sm:$0xff]
    %v564 = vld [vmem:[#allocation4 + $0x1d8] sm:$0xff]
    %v565 = vld [vmem:[#allocation4 + $0x1e0] sm:$0xff]
    %v566 = vld [vmem:[#allocation4 + $0x1e8] sm:$0xff]
    %v567 = vld [vmem:[#allocation4 + $0x1f0] sm:$0xff]
    %v568 = vld [vmem:[#allocation4 + $0x1f8] sm:$0xff]
    %569 = vmatpush.msra.mxu0 %v565
    %570 = vmatpush.msra.mxu0 %v561
    %571 = vmatpush.msra.mxu0 %v557
    %572 = vmatpush.msra.mxu0 %v553
    %573 = vmatpush.msra.mxu0 %v549
    %574 = vmatpush.msra.mxu0 %v545
    %575 = vmatpush.msra.mxu0 %v541
    %576 = vmatpush.msra.mxu0 %v537
    %577 = vmatpush.msra.mxu0 %v533
    %578 = vmatpush.msra.mxu0 %v529
    %579 = vmatpush.msra.mxu0 %v525
    %580 = vmatpush.msra.mxu0 %v521
    %581 = vmatpush.msra.mxu0 %v517
    %582 = vmatpush.msra.mxu0 %v513
    %583 = vmatpush.msra.mxu0 %v509
    %584 = vmatpush.msra.mxu0 %v505
    %585 = vmatmul.f32.gmra.mxu0 %v496
    %v586 = vpop.f32.mrf.mxu0
    %v587 = vadd.f32 0.0, %v586
    %588 = vdwg.mxu0
    %589 = vmatpush.msra.mxu0 %v566
    %590 = vmatpush.msra.mxu0 %v562
    %591 = vmatpush.msra.mxu0 %v558
    %592 = vmatpush.msra.mxu0 %v554
    %593 = vmatpush.msra.mxu0 %v550
    %594 = vmatpush.msra.mxu0 %v546
    %595 = vmatpush.msra.mxu0 %v542
    %596 = vmatpush.msra.mxu0 %v538
    %597 = vmatpush.msra.mxu0 %v534
    %598 = vmatpush.msra.mxu0 %v530
    %599 = vmatpush.msra.mxu0 %v526
    %600 = vmatpush.msra.mxu0 %v522
    %601 = vmatpush.msra.mxu0 %v518
    %602 = vmatpush.msra.mxu0 %v514
    %603 = vmatpush.msra.mxu0 %v510
    %604 = vmatpush.msra.mxu0 %v506
    %605 = vmatmul.f32.gmra.mxu0 %v496
    %v606 = vpop.f32.mrf.mxu0
    %v607 = vadd.f32 0.0, %v606
    %608 = vdwg.mxu0
    %609 = vmatpush.msra.mxu0 %v567
    %610 = vmatpush.msra.mxu0 %v563
    %611 = vmatpush.msra.mxu0 %v559
    %612 = vmatpush.msra.mxu0 %v555
    %613 = vmatpush.msra.mxu0 %v551
    %614 = vmatpush.msra.mxu0 %v547
    %615 = vmatpush.msra.mxu0 %v543
    %616 = vmatpush.msra.mxu0 %v539
    %617 = vmatpush.msra.mxu0 %v535
    %618 = vmatpush.msra.mxu0 %v531
    %619 = vmatpush.msra.mxu0 %v527
    %620 = vmatpush.msra.mxu0 %v523
    %621 = vmatpush.msra.mxu0 %v519
    %622 = vmatpush.msra.mxu0 %v515
    %623 = vmatpush.msra.mxu0 %v511
    %624 = vmatpush.msra.mxu0 %v507
    %625 = vmatmul.f32.gmra.mxu0 %v496
    %v626 = vpop.f32.mrf.mxu0
    %v627 = vadd.f32 0.0, %v626
    %628 = vdwg.mxu0
    %629 = vmatpush.msra.mxu0 %v568
    %630 = vmatpush.msra.mxu0 %v564
    %631 = vmatpush.msra.mxu0 %v560
    %632 = vmatpush.msra.mxu0 %v556
    %633 = vmatpush.msra.mxu0 %v552
    %634 = vmatpush.msra.mxu0 %v548
    %635 = vmatpush.msra.mxu0 %v544
    %636 = vmatpush.msra.mxu0 %v540
    %637 = vmatpush.msra.mxu0 %v536
    %638 = vmatpush.msra.mxu0 %v532
    %639 = vmatpush.msra.mxu0 %v528
    %640 = vmatpush.msra.mxu0 %v524
    %641 = vmatpush.msra.mxu0 %v520
    %642 = vmatpush.msra.mxu0 %v516
    %643 = vmatpush.msra.mxu0 %v512
    %644 = vmatpush.msra.mxu0 %v508
    %645 = vmatmul.f32.gmra.mxu0 %v496
    %v646 = vpop.f32.mrf.mxu0
    %v647 = vadd.f32 0.0, %v646
    %648 = vdwg.mxu0
    %v649 = vadd.f32 %v501, %v587
    %v650 = vadd.f32 %v502, %v607
    %v651 = vadd.f32 %v503, %v627
    %v652 = vadd.f32 %v504, %v647
    %v653 = vmul.f32 %v649, 0.5
    %v654 = vtanh.pop %v653
    %v655 = vmul.f32 %v654, 0.5
    %v656 = vadd.f32 %v655, 0.5
    %v657 = vmul.f32 %v650, 0.5
    %v658 = vtanh.pop %v657
    %v659 = vmul.f32 %v658, 0.5
    %v660 = vadd.f32 %v659, 0.5
    %v661 = vtanh.pop %v651
    %v662 = vmul.f32 %v652, 0.5
    %v663 = vtanh.pop %v662
    %v664 = vmul.f32 %v663, 0.5
    %v665 = vadd.f32 %v664, 0.5
    %v666 = vmul.f32 %v660, %v494
    %v667 = vmul.f32 %v656, %v661
    %v668 = vadd.f32 %v666, %v667
    %v669 = vtanh.pop %v668
    %v670 = vmul.f32 %v665, %v669
    %s671 = scalar_lea.vmem [#allocation3], 8
    %672 = vst [vmem:[%s671] sm:$0xff] %v670
    %s673 = smul.u32 2, 4
    %s674 = smul.addr %s673, 8
    %s675 = scalar_lea.vmem [#allocation2], %s674
    %v676 = vld [vmem:[%s675] sm:$0xff]
    %v677 = vld [vmem:[%s675 + $0x8] sm:$0xff]
    %v678 = vld [vmem:[%s675 + $0x10] sm:$0xff]
    %v679 = vld [vmem:[%s675 + $0x18] sm:$0xff]
    %v680 = vld [vmem:[#allocation4] sm:$0xff]
    %v681 = vld [vmem:[#allocation4 + $0x8] sm:$0xff]
    %v682 = vld [vmem:[#allocation4 + $0x10] sm:$0xff]
    %v683 = vld [vmem:[#allocation4 + $0x18] sm:$0xff]
    %v684 = vld [vmem:[#allocation4 + $0x20] sm:$0xff]
    %v685 = vld [vmem:[#allocation4 + $0x28] sm:$0xff]
    %v686 = vld [vmem:[#allocation4 + $0x30] sm:$0xff]
    %v687 = vld [vmem:[#allocation4 + $0x38] sm:$0xff]
    %v688 = vld [vmem:[#allocation4 + $0x40] sm:$0xff]
    %v689 = vld [vmem:[#allocation4 + $0x48] sm:$0xff]
    %v690 = vld [vmem:[#allocation4 + $0x50] sm:$0xff]
    %v691 = vld [vmem:[#allocation4 + $0x58] sm:$0xff]
    %v692 = vld [vmem:[#allocation4 + $0x60] sm:$0xff]
    %v693 = vld [vmem:[#allocation4 + $0x68] sm:$0xff]
    %v694 = vld [vmem:[#allocation4 + $0x70] sm:$0xff]
    %v695 = vld [vmem:[#allocation4 + $0x78] sm:$0xff]
    %v696 = vld [vmem:[#allocation4 + $0x80] sm:$0xff]
    %v697 = vld [vmem:[#allocation4 + $0x88] sm:$0xff]
    %v698 = vld [vmem:[#allocation4 + $0x90] sm:$0xff]
    %v699 = vld [vmem:[#allocation4 + $0x98] sm:$0xff]
    %v700 = vld [vmem:[#allocation4 + $0xa0] sm:$0xff]
    %v701 = vld [vmem:[#allocation4 + $0xa8] sm:$0xff]
    %v702 = vld [vmem:[#allocation4 + $0xb0] sm:$0xff]
    %v703 = vld [vmem:[#allocation4 + $0xb8] sm:$0xff]
    %v704 = vld [vmem:[#allocation4 + $0xc0] sm:$0xff]
    %v705 = vld [vmem:[#allocation4 + $0xc8] sm:$0xff]
    %v706 = vld [vmem:[#allocation4 + $0xd0] sm:$0xff]
    %v707 = vld [vmem:[#allocation4 + $0xd8] sm:$0xff]
    %v708 = vld [vmem:[#allocation4 + $0xe0] sm:$0xff]
    %v709 = vld [vmem:[#allocation4 + $0xe8] sm:$0xff]
    %v710 = vld [vmem:[#allocation4 + $0xf0] sm:$0xff]
    %v711 = vld [vmem:[#allocation4 + $0xf8] sm:$0xff]
    %v712 = vld [vmem:[#allocation4 + $0x100] sm:$0xff]
    %v713 = vld [vmem:[#allocation4 + $0x108] sm:$0xff]
    %v714 = vld [vmem:[#allocation4 + $0x110] sm:$0xff]
    %v715 = vld [vmem:[#allocation4 + $0x118] sm:$0xff]
    %v716 = vld [vmem:[#allocation4 + $0x120] sm:$0xff]
    %v717 = vld [vmem:[#allocation4 + $0x128] sm:$0xff]
    %v718 = vld [vmem:[#allocation4 + $0x130] sm:$0xff]
    %v719 = vld [vmem:[#allocation4 + $0x138] sm:$0xff]
    %v720 = vld [vmem:[#allocation4 + $0x140] sm:$0xff]
    %v721 = vld [vmem:[#allocation4 + $0x148] sm:$0xff]
    %v722 = vld [vmem:[#allocation4 + $0x150] sm:$0xff]
    %v723 = vld [vmem:[#allocation4 + $0x158] sm:$0xff]
    %v724 = vld [vmem:[#allocation4 + $0x160] sm:$0xff]
    %v725 = vld [vmem:[#allocation4 + $0x168] sm:$0xff]
    %v726 = vld [vmem:[#allocation4 + $0x170] sm:$0xff]
    %v727 = vld [vmem:[#allocation4 + $0x178] sm:$0xff]
    %v728 = vld [vmem:[#allocation4 + $0x180] sm:$0xff]
    %v729 = vld [vmem:[#allocation4 + $0x188] sm:$0xff]
    %v730 = vld [vmem:[#allocation4 + $0x190] sm:$0xff]
    %v731 = vld [vmem:[#allocation4 + $0x198] sm:$0xff]
    %v732 = vld [vmem:[#allocation4 + $0x1a0] sm:$0xff]
    %v733 = vld [vmem:[#allocation4 + $0x1a8] sm:$0xff]
    %v734 = vld [vmem:[#allocation4 + $0x1b0] sm:$0xff]
    %v735 = vld [vmem:[#allocation4 + $0x1b8] sm:$0xff]
    %v736 = vld [vmem:[#allocation4 + $0x1c0] sm:$0xff]
    %v737 = vld [vmem:[#allocation4 + $0x1c8] sm:$0xff]
    %v738 = vld [vmem:[#allocation4 + $0x1d0] sm:$0xff]
    %v739 = vld [vmem:[#allocation4 + $0x1d8] sm:$0xff]
    %v740 = vld [vmem:[#allocation4 + $0x1e0] sm:$0xff]
    %v741 = vld [vmem:[#allocation4 + $0x1e8] sm:$0xff]
    %v742 = vld [vmem:[#allocation4 + $0x1f0] sm:$0xff]
    %v743 = vld [vmem:[#allocation4 + $0x1f8] sm:$0xff]
    %744 = vmatpush.msra.mxu0 %v740
    %745 = vmatpush.msra.mxu0 %v736
    %746 = vmatpush.msra.mxu0 %v732
    %747 = vmatpush.msra.mxu0 %v728
    %748 = vmatpush.msra.mxu0 %v724
    %749 = vmatpush.msra.mxu0 %v720
    %750 = vmatpush.msra.mxu0 %v716
    %751 = vmatpush.msra.mxu0 %v712
    %752 = vmatpush.msra.mxu0 %v708
    %753 = vmatpush.msra.mxu0 %v704
    %754 = vmatpush.msra.mxu0 %v700
    %755 = vmatpush.msra.mxu0 %v696
    %756 = vmatpush.msra.mxu0 %v692
    %757 = vmatpush.msra.mxu0 %v688
    %758 = vmatpush.msra.mxu0 %v684
    %759 = vmatpush.msra.mxu0 %v680
    %760 = vmatmul.f32.gmra.mxu0 %v670
    %v761 = vpop.f32.mrf.mxu0
    %v762 = vadd.f32 0.0, %v761
    %763 = vdwg.mxu0
    %764 = vmatpush.msra.mxu0 %v741
    %765 = vmatpush.msra.mxu0 %v737
    %766 = vmatpush.msra.mxu0 %v733
    %767 = vmatpush.msra.mxu0 %v729
    %768 = vmatpush.msra.mxu0 %v725
    %769 = vmatpush.msra.mxu0 %v721
    %770 = vmatpush.msra.mxu0 %v717
    %771 = vmatpush.msra.mxu0 %v713
    %772 = vmatpush.msra.mxu0 %v709
    %773 = vmatpush.msra.mxu0 %v705
    %774 = vmatpush.msra.mxu0 %v701
    %775 = vmatpush.msra.mxu0 %v697
    %776 = vmatpush.msra.mxu0 %v693
    %777 = vmatpush.msra.mxu0 %v689
    %778 = vmatpush.msra.mxu0 %v685
    %779 = vmatpush.msra.mxu0 %v681
    %780 = vmatmul.f32.gmra.mxu0 %v670
    %v781 = vpop.f32.mrf.mxu0
    %v782 = vadd.f32 0.0, %v781
    %783 = vdwg.mxu0
    %784 = vmatpush.msra.mxu0 %v742
    %785 = vmatpush.msra.mxu0 %v738
    %786 = vmatpush.msra.mxu0 %v734
    %787 = vmatpush.msra.mxu0 %v730
    %788 = vmatpush.msra.mxu0 %v726
    %789 = vmatpush.msra.mxu0 %v722
    %790 = vmatpush.msra.mxu0 %v718
    %791 = vmatpush.msra.mxu0 %v714
    %792 = vmatpush.msra.mxu0 %v710
    %793 = vmatpush.msra.mxu0 %v706
    %794 = vmatpush.msra.mxu0 %v702
    %795 = vmatpush.msra.mxu0 %v698
    %796 = vmatpush.msra.mxu0 %v694
    %797 = vmatpush.msra.mxu0 %v690
    %798 = vmatpush.msra.mxu0 %v686
    %799 = vmatpush.msra.mxu0 %v682
    %800 = vmatmul.f32.gmra.mxu0 %v670
    %v801 = vpop.f32.mrf.mxu0
    %v802 = vadd.f32 0.0, %v801
    %803 = vdwg.mxu0
    %804 = vmatpush.msra.mxu0 %v743
    %805 = vmatpush.msra.mxu0 %v739
    %806 = vmatpush.msra.mxu0 %v735
    %807 = vmatpush.msra.mxu0 %v731
    %808 = vmatpush.msra.mxu0 %v727
    %809 = vmatpush.msra.mxu0 %v723
    %810 = vmatpush.msra.mxu0 %v719
    %811 = vmatpush.msra.mxu0 %v715
    %812 = vmatpush.msra.mxu0 %v711
    %813 = vmatpush.msra.mxu0 %v707
    %814 = vmatpush.msra.mxu0 %v703
    %815 = vmatpush.msra.mxu0 %v699
    %816 = vmatpush.msra.mxu0 %v695
    %817 = vmatpush.msra.mxu0 %v691
    %818 = vmatpush.msra.mxu0 %v687
    %819 = vmatpush.msra.mxu0 %v683
    %820 = vmatmul.f32.gmra.mxu0 %v670
    %v821 = vpop.f32.mrf.mxu0
    %v822 = vadd.f32 0.0, %v821
    %823 = vdwg.mxu0
    %v824 = vadd.f32 %v676, %v762
    %v825 = vadd.f32 %v677, %v782
    %v826 = vadd.f32 %v678, %v802
    %v827 = vadd.f32 %v679, %v822
    %v828 = vmul.f32 %v824, 0.5
    %v829 = vtanh.pop %v828
    %v830 = vmul.f32 %v829, 0.5
    %v831 = vadd.f32 %v830, 0.5
    %v832 = vmul.f32 %v825, 0.5
    %v833 = vtanh.pop %v832
    %v834 = vmul.f32 %v833, 0.5
    %v835 = vadd.f32 %v834, 0.5
    %v836 = vtanh.pop %v826
    %v837 = vmul.f32 %v827, 0.5
    %v838 = vtanh.pop %v837
    %v839 = vmul.f32 %v838, 0.5
    %v840 = vadd.f32 %v839, 0.5
    %v841 = vmul.f32 %v835, %v668
    %v842 = vmul.f32 %v831, %v836
    %v843 = vadd.f32 %v841, %v842
    %v844 = vtanh.pop %v843
    %v845 = vmul.f32 %v840, %v844
    %s846 = scalar_lea.vmem [#allocation3], 16
    %847 = vst [vmem:[%s846] sm:$0xff] %v845
    %s848 = smul.u32 3, 4
    %s849 = smul.addr %s848, 8
    %s850 = scalar_lea.vmem [#allocation2], %s849
    %v851 = vld [vmem:[%s850] sm:$0xff]
    %v852 = vld [vmem:[%s850 + $0x8] sm:$0xff]
    %v853 = vld [vmem:[%s850 + $0x10] sm:$0xff]
    %v854 = vld [vmem:[%s850 + $0x18] sm:$0xff]
    %v855 = vld [vmem:[#allocation4] sm:$0xff]
    %v856 = vld [vmem:[#allocation4 + $0x8] sm:$0xff]
    %v857 = vld [vmem:[#allocation4 + $0x10] sm:$0xff]
    %v858 = vld [vmem:[#allocation4 + $0x18] sm:$0xff]
    %v859 = vld [vmem:[#allocation4 + $0x20] sm:$0xff]
    %v860 = vld [vmem:[#allocation4 + $0x28] sm:$0xff]
    %v861 = vld [vmem:[#allocation4 + $0x30] sm:$0xff]
    %v862 = vld [vmem:[#allocation4 + $0x38] sm:$0xff]
    %v863 = vld [vmem:[#allocation4 + $0x40] sm:$0xff]
    %v864 = vld [vmem:[#allocation4 + $0x48] sm:$0xff]
    %v865 = vld [vmem:[#allocation4 + $0x50] sm:$0xff]
    %v866 = vld [vmem:[#allocation4 + $0x58] sm:$0xff]
    %v867 = vld [vmem:[#allocation4 + $0x60] sm:$0xff]
    %v868 = vld [vmem:[#allocation4 + $0x68] sm:$0xff]
    %v869 = vld [vmem:[#allocation4 + $0x70] sm:$0xff]
    %v870 = vld [vmem:[#allocation4 + $0x78] sm:$0xff]
    %v871 = vld [vmem:[#allocation4 + $0x80] sm:$0xff]
    %v872 = vld [vmem:[#allocation4 + $0x88] sm:$0xff]
    %v873 = vld [vmem:[#allocation4 + $0x90] sm:$0xff]
    %v874 = vld [vmem:[#allocation4 + $0x98] sm:$0xff]
    %v875 = vld [vmem:[#allocation4 + $0xa0] sm:$0xff]
    %v876 = vld [vmem:[#allocation4 + $0xa8] sm:$0xff]
    %v877 = vld [vmem:[#allocation4 + $0xb0] sm:$0xff]
    %v878 = vld [vmem:[#allocation4 + $0xb8] sm:$0xff]
    %v879 = vld [vmem:[#allocation4 + $0xc0] sm:$0xff]
    %v880 = vld [vmem:[#allocation4 + $0xc8] sm:$0xff]
    %v881 = vld [vmem:[#allocation4 + $0xd0] sm:$0xff]
    %v882 = vld [vmem:[#allocation4 + $0xd8] sm:$0xff]
    %v883 = vld [vmem:[#allocation4 + $0xe0] sm:$0xff]
    %v884 = vld [vmem:[#allocation4 + $0xe8] sm:$0xff]
    %v885 = vld [vmem:[#allocation4 + $0xf0] sm:$0xff]
    %v886 = vld [vmem:[#allocation4 + $0xf8] sm:$0xff]
    %v887 = vld [vmem:[#allocation4 + $0x100] sm:$0xff]
    %v888 = vld [vmem:[#allocation4 + $0x108] sm:$0xff]
    %v889 = vld [vmem:[#allocation4 + $0x110] sm:$0xff]
    %v890 = vld [vmem:[#allocation4 + $0x118] sm:$0xff]
    %v891 = vld [vmem:[#allocation4 + $0x120] sm:$0xff]
    %v892 = vld [vmem:[#allocation4 + $0x128] sm:$0xff]
    %v893 = vld [vmem:[#allocation4 + $0x130] sm:$0xff]
    %v894 = vld [vmem:[#allocation4 + $0x138] sm:$0xff]
    %v895 = vld [vmem:[#allocation4 + $0x140] sm:$0xff]
    %v896 = vld [vmem:[#allocation4 + $0x148] sm:$0xff]
    %v897 = vld [vmem:[#allocation4 + $0x150] sm:$0xff]
    %v898 = vld [vmem:[#allocation4 + $0x158] sm:$0xff]
    %v899 = vld [vmem:[#allocation4 + $0x160] sm:$0xff]
    %v900 = vld [vmem:[#allocation4 + $0x168] sm:$0xff]
    %v901 = vld [vmem:[#allocation4 + $0x170] sm:$0xff]
    %v902 = vld [vmem:[#allocation4 + $0x178] sm:$0xff]
    %v903 = vld [vmem:[#allocation4 + $0x180] sm:$0xff]
    %v904 = vld [vmem:[#allocation4 + $0x188] sm:$0xff]
    %v905 = vld [vmem:[#allocation4 + $0x190] sm:$0xff]
    %v906 = vld [vmem:[#allocation4 + $0x198] sm:$0xff]
    %v907 = vld [vmem:[#allocation4 + $0x1a0] sm:$0xff]
    %v908 = vld [vmem:[#allocation4 + $0x1a8] sm:$0xff]
    %v909 = vld [vmem:[#allocation4 + $0x1b0] sm:$0xff]
    %v910 = vld [vmem:[#allocation4 + $0x1b8] sm:$0xff]
    %v911 = vld [vmem:[#allocation4 + $0x1c0] sm:$0xff]
    %v912 = vld [vmem:[#allocation4 + $0x1c8] sm:$0xff]
    %v913 = vld [vmem:[#allocation4 + $0x1d0] sm:$0xff]
    %v914 = vld [vmem:[#allocation4 + $0x1d8] sm:$0xff]
    %v915 = vld [vmem:[#allocation4 + $0x1e0] sm:$0xff]
    %v916 = vld [vmem:[#allocation4 + $0x1e8] sm:$0xff]
    %v917 = vld [vmem:[#allocation4 + $0x1f0] sm:$0xff]
    %v918 = vld [vmem:[#allocation4 + $0x1f8] sm:$0xff]
    %919 = vmatpush.msra.mxu0 %v915
    %920 = vmatpush.msra.mxu0 %v911
    %921 = vmatpush.msra.mxu0 %v907
    %922 = vmatpush.msra.mxu0 %v903
    %923 = vmatpush.msra.mxu0 %v899
    %924 = vmatpush.msra.mxu0 %v895
    %925 = vmatpush.msra.mxu0 %v891
    %926 = vmatpush.msra.mxu0 %v887
    %927 = vmatpush.msra.mxu0 %v883
    %928 = vmatpush.msra.mxu0 %v879
    %929 = vmatpush.msra.mxu0 %v875
    %930 = vmatpush.msra.mxu0 %v871
    %931 = vmatpush.msra.mxu0 %v867
    %932 = vmatpush.msra.mxu0 %v863
    %933 = vmatpush.msra.mxu0 %v859
    %934 = vmatpush.msra.mxu0 %v855
    %935 = vmatmul.f32.gmra.mxu0 %v845
    %v936 = vpop.f32.mrf.mxu0
    %v937 = vadd.f32 0.0, %v936
    %938 = vdwg.mxu0
    %939 = vmatpush.msra.mxu0 %v916
    %940 = vmatpush.msra.mxu0 %v912
    %941 = vmatpush.msra.mxu0 %v908
    %942 = vmatpush.msra.mxu0 %v904
    %943 = vmatpush.msra.mxu0 %v900
    %944 = vmatpush.msra.mxu0 %v896
    %945 = vmatpush.msra.mxu0 %v892
    %946 = vmatpush.msra.mxu0 %v888
    %947 = vmatpush.msra.mxu0 %v884
    %948 = vmatpush.msra.mxu0 %v880
    %949 = vmatpush.msra.mxu0 %v876
    %950 = vmatpush.msra.mxu0 %v872
    %951 = vmatpush.msra.mxu0 %v868
    %952 = vmatpush.msra.mxu0 %v864
    %953 = vmatpush.msra.mxu0 %v860
    %954 = vmatpush.msra.mxu0 %v856
    %955 = vmatmul.f32.gmra.mxu0 %v845
    %v956 = vpop.f32.mrf.mxu0
    %v957 = vadd.f32 0.0, %v956
    %958 = vdwg.mxu0
    %959 = vmatpush.msra.mxu0 %v917
    %960 = vmatpush.msra.mxu0 %v913
    %961 = vmatpush.msra.mxu0 %v909
    %962 = vmatpush.msra.mxu0 %v905
    %963 = vmatpush.msra.mxu0 %v901
    %964 = vmatpush.msra.mxu0 %v897
    %965 = vmatpush.msra.mxu0 %v893
    %966 = vmatpush.msra.mxu0 %v889
    %967 = vmatpush.msra.mxu0 %v885
    %968 = vmatpush.msra.mxu0 %v881
    %969 = vmatpush.msra.mxu0 %v877
    %970 = vmatpush.msra.mxu0 %v873
    %971 = vmatpush.msra.mxu0 %v869
    %972 = vmatpush.msra.mxu0 %v865
    %973 = vmatpush.msra.mxu0 %v861
    %974 = vmatpush.msra.mxu0 %v857
    %975 = vmatmul.f32.gmra.mxu0 %v845
    %v976 = vpop.f32.mrf.mxu0
    %v977 = vadd.f32 0.0, %v976
    %978 = vdwg.mxu0
    %979 = vmatpush.msra.mxu0 %v918
    %980 = vmatpush.msra.mxu0 %v914
    %981 = vmatpush.msra.mxu0 %v910
    %982 = vmatpush.msra.mxu0 %v906
    %983 = vmatpush.msra.mxu0 %v902
    %984 = vmatpush.msra.mxu0 %v898
    %985 = vmatpush.msra.mxu0 %v894
    %986 = vmatpush.msra.mxu0 %v890
    %987 = vmatpush.msra.mxu0 %v886
    %988 = vmatpush.msra.mxu0 %v882
    %989 = vmatpush.msra.mxu0 %v878
    %990 = vmatpush.msra.mxu0 %v874
    %991 = vmatpush.msra.mxu0 %v870
    %992 = vmatpush.msra.mxu0 %v866
    %993 = vmatpush.msra.mxu0 %v862
    %994 = vmatpush.msra.mxu0 %v858
    %995 = vmatmul.f32.gmra.mxu0 %v845
    %v996 = vpop.f32.mrf.mxu0
    %v997 = vadd.f32 0.0, %v996
    %998 = vdwg.mxu0
    %v999 = vadd.f32 %v851, %v937
    %v1000 = vadd.f32 %v852, %v957
    %v1001 = vadd.f32 %v853, %v977
    %v1002 = vadd.f32 %v854, %v997
    %v1003 = vmul.f32 %v999, 0.5
    %v1004 = vtanh.pop %v1003
    %v1005 = vmul.f32 %v1004, 0.5
    %v1006 = vadd.f32 %v1005, 0.5
    %v1007 = vmul.f32 %v1000, 0.5
    %v1008 = vtanh.pop %v1007
    %v1009 = vmul.f32 %v1008, 0.5
    %v1010 = vadd.f32 %v1009, 0.5
    %v1011 = vtanh.pop %v1001
    %v1012 = vmul.f32 %v1002, 0.5
    %v1013 = vtanh.pop %v1012
    %v1014 = vmul.f32 %v1013, 0.5
    %v1015 = vadd.f32 %v1014, 0.5
    %v1016 = vmul.f32 %v1010, %v843
    %v1017 = vmul.f32 %v1006, %v1011
    %v1018 = vadd.f32 %v1016, %v1017
    %v1019 = vtanh.pop %v1018
    %v1020 = vmul.f32 %v1015, %v1019
    %s1021 = scalar_lea.vmem [#allocation3], 24
    %1022 = vst [vmem:[%s1021] sm:$0xff] %v1020
    %s1023 = smul.u32 4, 4
    %s1024 = smul.addr %s1023, 8
    %s1025 = scalar_lea.vmem [#allocation2], %s1024
    %v1026 = vld [vmem:[%s1025] sm:$0xff]
    %v1027 = vld [vmem:[%s1025 + $0x8] sm:$0xff]
    %v1028 = vld [vmem:[%s1025 + $0x10] sm:$0xff]
    %v1029 = vld [vmem:[%s1025 + $0x18] sm:$0xff]
    %v1030 = vld [vmem:[#allocation4] sm:$0xff]
    %v1031 = vld [vmem:[#allocation4 + $0x8] sm:$0xff]
    %v1032 = vld [vmem:[#allocation4 + $0x10] sm:$0xff]
    %v1033 = vld [vmem:[#allocation4 + $0x18] sm:$0xff]
    %v1034 = vld [vmem:[#allocation4 + $0x20] sm:$0xff]
    %v1035 = vld [vmem:[#allocation4 + $0x28] sm:$0xff]
    %v1036 = vld [vmem:[#allocation4 + $0x30] sm:$0xff]
    %v1037 = vld [vmem:[#allocation4 + $0x38] sm:$0xff]
    %v1038 = vld [vmem:[#allocation4 + $0x40] sm:$0xff]
    %v1039 = vld [vmem:[#allocation4 + $0x48] sm:$0xff]
    %v1040 = vld [vmem:[#allocation4 + $0x50] sm:$0xff]
    %v1041 = vld [vmem:[#allocation4 + $0x58] sm:$0xff]
    %v1042 = vld [vmem:[#allocation4 + $0x60] sm:$0xff]
    %v1043 = vld [vmem:[#allocation4 + $0x68] sm:$0xff]
    %v1044 = vld [vmem:[#allocation4 + $0x70] sm:$0xff]
    %v1045 = vld [vmem:[#allocation4 + $0x78] sm:$0xff]
    %v1046 = vld [vmem:[#allocation4 + $0x80] sm:$0xff]
    %v1047 = vld [vmem:[#allocation4 + $0x88] sm:$0xff]
    %v1048 = vld [vmem:[#allocation4 + $0x90] sm:$0xff]
    %v1049 = vld [vmem:[#allocation4 + $0x98] sm:$0xff]
    %v1050 = vld [vmem:[#allocation4 + $0xa0] sm:$0xff]
    %v1051 = vld [vmem:[#allocation4 + $0xa8] sm:$0xff]
    %v1052 = vld [vmem:[#allocation4 + $0xb0] sm:$0xff]
    %v1053 = vld [vmem:[#allocation4 + $0xb8] sm:$0xff]
    %v1054 = vld [vmem:[#allocation4 + $0xc0] sm:$0xff]
    %v1055 = vld [vmem:[#allocation4 + $0xc8] sm:$0xff]
    %v1056 = vld [vmem:[#allocation4 + $0xd0] sm:$0xff]
    %v1057 = vld [vmem:[#allocation4 + $0xd8] sm:$0xff]
    %v1058 = vld [vmem:[#allocation4 + $0xe0] sm:$0xff]
    %v1059 = vld [vmem:[#allocation4 + $0xe8] sm:$0xff]
    %v1060 = vld [vmem:[#allocation4 + $0xf0] sm:$0xff]
    %v1061 = vld [vmem:[#allocation4 + $0xf8] sm:$0xff]
    %v1062 = vld [vmem:[#allocation4 + $0x100] sm:$0xff]
    %v1063 = vld [vmem:[#allocation4 + $0x108] sm:$0xff]
    %v1064 = vld [vmem:[#allocation4 + $0x110] sm:$0xff]
    %v1065 = vld [vmem:[#allocation4 + $0x118] sm:$0xff]
    %v1066 = vld [vmem:[#allocation4 + $0x120] sm:$0xff]
    %v1067 = vld [vmem:[#allocation4 + $0x128] sm:$0xff]
    %v1068 = vld [vmem:[#allocation4 + $0x130] sm:$0xff]
    %v1069 = vld [vmem:[#allocation4 + $0x138] sm:$0xff]
    %v1070 = vld [vmem:[#allocation4 + $0x140] sm:$0xff]
    %v1071 = vld [vmem:[#allocation4 + $0x148] sm:$0xff]
    %v1072 = vld [vmem:[#allocation4 + $0x150] sm:$0xff]
    %v1073 = vld [vmem:[#allocation4 + $0x158] sm:$0xff]
    %v1074 = vld [vmem:[#allocation4 + $0x160] sm:$0xff]
    %v1075 = vld [vmem:[#allocation4 + $0x168] sm:$0xff]
    %v1076 = vld [vmem:[#allocation4 + $0x170] sm:$0xff]
    %v1077 = vld [vmem:[#allocation4 + $0x178] sm:$0xff]
    %v1078 = vld [vmem:[#allocation4 + $0x180] sm:$0xff]
    %v1079 = vld [vmem:[#allocation4 + $0x188] sm:$0xff]
    %v1080 = vld [vmem:[#allocation4 + $0x190] sm:$0xff]
    %v1081 = vld [vmem:[#allocation4 + $0x198] sm:$0xff]
    %v1082 = vld [vmem:[#allocation4 + $0x1a0] sm:$0xff]
    %v1083 = vld [vmem:[#allocation4 + $0x1a8] sm:$0xff]
    %v1084 = vld [vmem:[#allocation4 + $0x1b0] sm:$0xff]
    %v1085 = vld [vmem:[#allocation4 + $0x1b8] sm:$0xff]
    %v1086 = vld [vmem:[#allocation4 + $0x1c0] sm:$0xff]
    %v1087 = vld [vmem:[#allocation4 + $0x1c8] sm:$0xff]
    %v1088 = vld [vmem:[#allocation4 + $0x1d0] sm:$0xff]
    %v1089 = vld [vmem:[#allocation4 + $0x1d8] sm:$0xff]
    %v1090 = vld [vmem:[#allocation4 + $0x1e0] sm:$0xff]
    %v1091 = vld [vmem:[#allocation4 + $0x1e8] sm:$0xff]
    %v1092 = vld [vmem:[#allocation4 + $0x1f0] sm:$0xff]
    %v1093 = vld [vmem:[#allocation4 + $0x1f8] sm:$0xff]
    %1094 = vmatpush.msra.mxu0 %v1090
    %1095 = vmatpush.msra.mxu0 %v1086
    %1096 = vmatpush.msra.mxu0 %v1082
    %1097 = vmatpush.msra.mxu0 %v1078
    %1098 = vmatpush.msra.mxu0 %v1074
    %1099 = vmatpush.msra.mxu0 %v1070
    %1100 = vmatpush.msra.mxu0 %v1066
    %1101 = vmatpush.msra.mxu0 %v1062
    %1102 = vmatpush.msra.mxu0 %v1058
    %1103 = vmatpush.msra.mxu0 %v1054
    %1104 = vmatpush.msra.mxu0 %v1050
    %1105 = vmatpush.msra.mxu0 %v1046
    %1106 = vmatpush.msra.mxu0 %v1042
    %1107 = vmatpush.msra.mxu0 %v1038
    %1108 = vmatpush.msra.mxu0 %v1034
    %1109 = vmatpush.msra.mxu0 %v1030
    %1110 = vmatmul.f32.gmra.mxu0 %v1020
    %v1111 = vpop.f32.mrf.mxu0
    %v1112 = vadd.f32 0.0, %v1111
    %1113 = vdwg.mxu0
    %1114 = vmatpush.msra.mxu0 %v1091
    %1115 = vmatpush.msra.mxu0 %v1087
    %1116 = vmatpush.msra.mxu0 %v1083
    %1117 = vmatpush.msra.mxu0 %v1079
    %1118 = vmatpush.msra.mxu0 %v1075
    %1119 = vmatpush.msra.mxu0 %v1071
    %1120 = vmatpush.msra.mxu0 %v1067
    %1121 = vmatpush.msra.mxu0 %v1063
    %1122 = vmatpush.msra.mxu0 %v1059
    %1123 = vmatpush.msra.mxu0 %v1055
    %1124 = vmatpush.msra.mxu0 %v1051
    %1125 = vmatpush.msra.mxu0 %v1047
    %1126 = vmatpush.msra.mxu0 %v1043
    %1127 = vmatpush.msra.mxu0 %v1039
    %1128 = vmatpush.msra.mxu0 %v1035
    %1129 = vmatpush.msra.mxu0 %v1031
    %1130 = vmatmul.f32.gmra.mxu0 %v1020
    %v1131 = vpop.f32.mrf.mxu0
    %v1132 = vadd.f32 0.0, %v1131
    %1133 = vdwg.mxu0
    %1134 = vmatpush.msra.mxu0 %v1092
    %1135 = vmatpush.msra.mxu0 %v1088
    %1136 = vmatpush.msra.mxu0 %v1084
    %1137 = vmatpush.msra.mxu0 %v1080
    %1138 = vmatpush.msra.mxu0 %v1076
    %1139 = vmatpush.msra.mxu0 %v1072
    %1140 = vmatpush.msra.mxu0 %v1068
    %1141 = vmatpush.msra.mxu0 %v1064
    %1142 = vmatpush.msra.mxu0 %v1060
    %1143 = vmatpush.msra.mxu0 %v1056
    %1144 = vmatpush.msra.mxu0 %v1052
    %1145 = vmatpush.msra.mxu0 %v1048
    %1146 = vmatpush.msra.mxu0 %v1044
    %1147 = vmatpush.msra.mxu0 %v1040
    %1148 = vmatpush.msra.mxu0 %v1036
    %1149 = vmatpush.msra.mxu0 %v1032
    %1150 = vmatmul.f32.gmra.mxu0 %v1020
    %v1151 = vpop.f32.mrf.mxu0
    %v1152 = vadd.f32 0.0, %v1151
    %1153 = vdwg.mxu0
    %1154 = vmatpush.msra.mxu0 %v1093
    %1155 = vmatpush.msra.mxu0 %v1089
    %1156 = vmatpush.msra.mxu0 %v1085
    %1157 = vmatpush.msra.mxu0 %v1081
    %1158 = vmatpush.msra.mxu0 %v1077
    %1159 = vmatpush.msra.mxu0 %v1073
    %1160 = vmatpush.msra.mxu0 %v1069
    %1161 = vmatpush.msra.mxu0 %v1065
    %1162 = vmatpush.msra.mxu0 %v1061
    %1163 = vmatpush.msra.mxu0 %v1057
    %1164 = vmatpush.msra.mxu0 %v1053
    %1165 = vmatpush.msra.mxu0 %v1049
    %1166 = vmatpush.msra.mxu0 %v1045
    %1167 = vmatpush.msra.mxu0 %v1041
    %1168 = vmatpush.msra.mxu0 %v1037
    %1169 = vmatpush.msra.mxu0 %v1033
    %1170 = vmatmul.f32.gmra.mxu0 %v1020
    %v1171 = vpop.f32.mrf.mxu0
    %v1172 = vadd.f32 0.0, %v1171
    %1173 = vdwg.mxu0
    %v1174 = vadd.f32 %v1026, %v1112
    %v1175 = vadd.f32 %v1027, %v1132
    %v1176 = vadd.f32 %v1028, %v1152
    %v1177 = vadd.f32 %v1029, %v1172
    %v1178 = vmul.f32 %v1174, 0.5
    %v1179 = vtanh.pop %v1178
    %v1180 = vmul.f32 %v1179, 0.5
    %v1181 = vadd.f32 %v1180, 0.5
    %v1182 = vmul.f32 %v1175, 0.5
    %v1183 = vtanh.pop %v1182
    %v1184 = vmul.f32 %v1183, 0.5
    %v1185 = vadd.f32 %v1184, 0.5
    %v1186 = vtanh.pop %v1176
    %v1187 = vmul.f32 %v1177, 0.5
    %v1188 = vtanh.pop %v1187
    %v1189 = vmul.f32 %v1188, 0.5
    %v1190 = vadd.f32 %v1189, 0.5
    %v1191 = vmul.f32 %v1185, %v1018
    %v1192 = vmul.f32 %v1181, %v1186
    %v1193 = vadd.f32 %v1191, %v1192
    %v1194 = vtanh.pop %v1193
    %v1195 = vmul.f32 %v1190, %v1194
    %s1196 = scalar_lea.vmem [#allocation3], 32
    %1197 = vst [vmem:[%s1196] sm:$0xff] %v1195
    %s1198 = smul.u32 5, 4
    %s1199 = smul.addr %s1198, 8
    %s1200 = scalar_lea.vmem [#allocation2], %s1199
    %v1201 = vld [vmem:[%s1200] sm:$0xff]
    %v1202 = vld [vmem:[%s1200 + $0x8] sm:$0xff]
    %v1203 = vld [vmem:[%s1200 + $0x10] sm:$0xff]
    %v1204 = vld [vmem:[%s1200 + $0x18] sm:$0xff]
    %v1205 = vld [vmem:[#allocation4] sm:$0xff]
    %v1206 = vld [vmem:[#allocation4 + $0x8] sm:$0xff]
    %v1207 = vld [vmem:[#allocation4 + $0x10] sm:$0xff]
    %v1208 = vld [vmem:[#allocation4 + $0x18] sm:$0xff]
    %v1209 = vld [vmem:[#allocation4 + $0x20] sm:$0xff]
    %v1210 = vld [vmem:[#allocation4 + $0x28] sm:$0xff]
    %v1211 = vld [vmem:[#allocation4 + $0x30] sm:$0xff]
    %v1212 = vld [vmem:[#allocation4 + $0x38] sm:$0xff]
    %v1213 = vld [vmem:[#allocation4 + $0x40] sm:$0xff]
    %v1214 = vld [vmem:[#allocation4 + $0x48] sm:$0xff]
    %v1215 = vld [vmem:[#allocation4 + $0x50] sm:$0xff]
    %v1216 = vld [vmem:[#allocation4 + $0x58] sm:$0xff]
    %v1217 = vld [vmem:[#allocation4 + $0x60] sm:$0xff]
    %v1218 = vld [vmem:[#allocation4 + $0x68] sm:$0xff]
    %v1219 = vld [vmem:[#allocation4 + $0x70] sm:$0xff]
    %v1220 = vld [vmem:[#allocation4 + $0x78] sm:$0xff]
    %v1221 = vld [vmem:[#allocation4 + $0x80] sm:$0xff]
    %v1222 = vld [vmem:[#allocation4 + $0x88] sm:$0xff]
    %v1223 = vld [vmem:[#allocation4 + $0x90] sm:$0xff]
    %v1224 = vld [vmem:[#allocation4 + $0x98] sm:$0xff]
    %v1225 = vld [vmem:[#allocation4 + $0xa0] sm:$0xff]
    %v1226 = vld [vmem:[#allocation4 + $0xa8] sm:$0xff]
    %v1227 = vld [vmem:[#allocation4 + $0xb0] sm:$0xff]
    %v1228 = vld [vmem:[#allocation4 + $0xb8] sm:$0xff]
    %v1229 = vld [vmem:[#allocation4 + $0xc0] sm:$0xff]
    %v1230 = vld [vmem:[#allocation4 + $0xc8] sm:$0xff]
    %v1231 = vld [vmem:[#allocation4 + $0xd0] sm:$0xff]
    %v1232 = vld [vmem:[#allocation4 + $0xd8] sm:$0xff]
    %v1233 = vld [vmem:[#allocation4 + $0xe0] sm:$0xff]
    %v1234 = vld [vmem:[#allocation4 + $0xe8] sm:$0xff]
    %v1235 = vld [vmem:[#allocation4 + $0xf0] sm:$0xff]
    %v1236 = vld [vmem:[#allocation4 + $0xf8] sm:$0xff]
    %v1237 = vld [vmem:[#allocation4 + $0x100] sm:$0xff]
    %v1238 = vld [vmem:[#allocation4 + $0x108] sm:$0xff]
    %v1239 = vld [vmem:[#allocation4 + $0x110] sm:$0xff]
    %v1240 = vld [vmem:[#allocation4 + $0x118] sm:$0xff]
    %v1241 = vld [vmem:[#allocation4 + $0x120] sm:$0xff]
    %v1242 = vld [vmem:[#allocation4 + $0x128] sm:$0xff]
    %v1243 = vld [vmem:[#allocation4 + $0x130] sm:$0xff]
    %v1244 = vld [vmem:[#allocation4 + $0x138] sm:$0xff]
    %v1245 = vld [vmem:[#allocation4 + $0x140] sm:$0xff]
    %v1246 = vld [vmem:[#allocation4 + $0x148] sm:$0xff]
    %v1247 = vld [vmem:[#allocation4 + $0x150] sm:$0xff]
    %v1248 = vld [vmem:[#allocation4 + $0x158] sm:$0xff]
    %v1249 = vld [vmem:[#allocation4 + $0x160] sm:$0xff]
    %v1250 = vld [vmem:[#allocation4 + $0x168] sm:$0xff]
    %v1251 = vld [vmem:[#allocation4 + $0x170] sm:$0xff]
    %v1252 = vld [vmem:[#allocation4 + $0x178] sm:$0xff]
    %v1253 = vld [vmem:[#allocation4 + $0x180] sm:$0xff]
    %v1254 = vld [vmem:[#allocation4 + $0x188] sm:$0xff]
    %v1255 = vld [vmem:[#allocation4 + $0x190] sm:$0xff]
    %v1256 = vld [vmem:[#allocation4 + $0x198] sm:$0xff]
    %v1257 = vld [vmem:[#allocation4 + $0x1a0] sm:$0xff]
    %v1258 = vld [vmem:[#allocation4 + $0x1a8] sm:$0xff]
    %v1259 = vld [vmem:[#allocation4 + $0x1b0] sm:$0xff]
    %v1260 = vld [vmem:[#allocation4 + $0x1b8] sm:$0xff]
    %v1261 = vld [vmem:[#allocation4 + $0x1c0] sm:$0xff]
    %v1262 = vld [vmem:[#allocation4 + $0x1c8] sm:$0xff]
    %v1263 = vld [vmem:[#allocation4 + $0x1d0] sm:$0xff]
    %v1264 = vld [vmem:[#allocation4 + $0x1d8] sm:$0xff]
    %v1265 = vld [vmem:[#allocation4 + $0x1e0] sm:$0xff]
    %v1266 = vld [vmem:[#allocation4 + $0x1e8] sm:$0xff]
    %v1267 = vld [vmem:[#allocation4 + $0x1f0] sm:$0xff]
    %v1268 = vld [vmem:[#allocation4 + $0x1f8] sm:$0xff]
    %1269 = vmatpush.msra.mxu0 %v1265
    %1270 = vmatpush.msra.mxu0 %v1261
    %1271 = vmatpush.msra.mxu0 %v1257
    %1272 = vmatpush.msra.mxu0 %v1253
    %1273 = vmatpush.msra.mxu0 %v1249
    %1274 = vmatpush.msra.mxu0 %v1245
    %1275 = vmatpush.msra.mxu0 %v1241
    %1276 = vmatpush.msra.mxu0 %v1237
    %1277 = vmatpush.msra.mxu0 %v1233
    %1278 = vmatpush.msra.mxu0 %v1229
    %1279 = vmatpush.msra.mxu0 %v1225
    %1280 = vmatpush.msra.mxu0 %v1221
    %1281 = vmatpush.msra.mxu0 %v1217
    %1282 = vmatpush.msra.mxu0 %v1213
    %1283 = vmatpush.msra.mxu0 %v1209
    %1284 = vmatpush.msra.mxu0 %v1205
    %1285 = vmatmul.f32.gmra.mxu0 %v1195
    %v1286 = vpop.f32.mrf.mxu0
    %v1287 = vadd.f32 0.0, %v1286
    %1288 = vdwg.mxu0
    %1289 = vmatpush.msra.mxu0 %v1266
    %1290 = vmatpush.msra.mxu0 %v1262
    %1291 = vmatpush.msra.mxu0 %v1258
    %1292 = vmatpush.msra.mxu0 %v1254
    %1293 = vmatpush.msra.mxu0 %v1250
    %1294 = vmatpush.msra.mxu0 %v1246
    %1295 = vmatpush.msra.mxu0 %v1242
    %1296 = vmatpush.msra.mxu0 %v1238
    %1297 = vmatpush.msra.mxu0 %v1234
    %1298 = vmatpush.msra.mxu0 %v1230
    %1299 = vmatpush.msra.mxu0 %v1226
    %1300 = vmatpush.msra.mxu0 %v1222
    %1301 = vmatpush.msra.mxu0 %v1218
    %1302 = vmatpush.msra.mxu0 %v1214
    %1303 = vmatpush.msra.mxu0 %v1210
    %1304 = vmatpush.msra.mxu0 %v1206
    %1305 = vmatmul.f32.gmra.mxu0 %v1195
    %v1306 = vpop.f32.mrf.mxu0
    %v1307 = vadd.f32 0.0, %v1306
    %1308 = vdwg.mxu0
    %1309 = vmatpush.msra.mxu0 %v1267
    %1310 = vmatpush.msra.mxu0 %v1263
    %1311 = vmatpush.msra.mxu0 %v1259
    %1312 = vmatpush.msra.mxu0 %v1255
    %1313 = vmatpush.msra.mxu0 %v1251
    %1314 = vmatpush.msra.mxu0 %v1247
    %1315 = vmatpush.msra.mxu0 %v1243
    %1316 = vmatpush.msra.mxu0 %v1239
    %1317 = vmatpush.msra.mxu0 %v1235
    %1318 = vmatpush.msra.mxu0 %v1231
    %1319 = vmatpush.msra.mxu0 %v1227
    %1320 = vmatpush.msra.mxu0 %v1223
    %1321 = vmatpush.msra.mxu0 %v1219
    %1322 = vmatpush.msra.mxu0 %v1215
    %1323 = vmatpush.msra.mxu0 %v1211
    %1324 = vmatpush.msra.mxu0 %v1207
    %1325 = vmatmul.f32.gmra.mxu0 %v1195
    %v1326 = vpop.f32.mrf.mxu0
    %v1327 = vadd.f32 0.0, %v1326
    %1328 = vdwg.mxu0
    %1329 = vmatpush.msra.mxu0 %v1268
    %1330 = vmatpush.msra.mxu0 %v1264
    %1331 = vmatpush.msra.mxu0 %v1260
    %1332 = vmatpush.msra.mxu0 %v1256
    %1333 = vmatpush.msra.mxu0 %v1252
    %1334 = vmatpush.msra.mxu0 %v1248
    %1335 = vmatpush.msra.mxu0 %v1244
    %1336 = vmatpush.msra.mxu0 %v1240
    %1337 = vmatpush.msra.mxu0 %v1236
    %1338 = vmatpush.msra.mxu0 %v1232
    %1339 = vmatpush.msra.mxu0 %v1228
    %1340 = vmatpush.msra.mxu0 %v1224
    %1341 = vmatpush.msra.mxu0 %v1220
    %1342 = vmatpush.msra.mxu0 %v1216
    %1343 = vmatpush.msra.mxu0 %v1212
    %1344 = vmatpush.msra.mxu0 %v1208
    %1345 = vmatmul.f32.gmra.mxu0 %v1195
    %v1346 = vpop.f32.mrf.mxu0
    %v1347 = vadd.f32 0.0, %v1346
    %1348 = vdwg.mxu0
    %v1349 = vadd.f32 %v1201, %v1287
    %v1350 = vadd.f32 %v1202, %v1307
    %v1351 = vadd.f32 %v1203, %v1327
    %v1352 = vadd.f32 %v1204, %v1347
    %v1353 = vmul.f32 %v1349, 0.5
    %v1354 = vtanh.pop %v1353
    %v1355 = vmul.f32 %v1354, 0.5
    %v1356 = vadd.f32 %v1355, 0.5
    %v1357 = vmul.f32 %v1350, 0.5
    %v1358 = vtanh.pop %v1357
    %v1359 = vmul.f32 %v1358, 0.5
    %v1360 = vadd.f32 %v1359, 0.5
    %v1361 = vtanh.pop %v1351
    %v1362 = vmul.f32 %v1352, 0.5
    %v1363 = vtanh.pop %v1362
    %v1364 = vmul.f32 %v1363, 0.5
    %v1365 = vadd.f32 %v1364, 0.5
    %v1366 = vmul.f32 %v1360, %v1193
    %v1367 = vmul.f32 %v1356, %v1361
    %v1368 = vadd.f32 %v1366, %v1367
    %v1369 = vtanh.pop %v1368
    %v1370 = vmul.f32 %v1365, %v1369
    %s1371 = scalar_lea.vmem [#allocation3], 40
    %1372 = vst [vmem:[%s1371] sm:$0xff] %v1370
    %s1373 = smul.u32 6, 4
    %s1374 = smul.addr %s1373, 8
    %s1375 = scalar_lea.vmem [#allocation2], %s1374
    %v1376 = vld [vmem:[%s1375] sm:$0xff]
    %v1377 = vld [vmem:[%s1375 + $0x8] sm:$0xff]
    %v1378 = vld [vmem:[%s1375 + $0x10] sm:$0xff]
    %v1379 = vld [vmem:[%s1375 + $0x18] sm:$0xff]
    %v1380 = vld [vmem:[#allocation4] sm:$0xff]
    %v1381 = vld [vmem:[#allocation4 + $0x8] sm:$0xff]
    %v1382 = vld [vmem:[#allocation4 + $0x10] sm:$0xff]
    %v1383 = vld [vmem:[#allocation4 + $0x18] sm:$0xff]
    %v1384 = vld [vmem:[#allocation4 + $0x20] sm:$0xff]
    %v1385 = vld [vmem:[#allocation4 + $0x28] sm:$0xff]
    %v1386 = vld [vmem:[#allocation4 + $0x30] sm:$0xff]
    %v1387 = vld [vmem:[#allocation4 + $0x38] sm:$0xff]
    %v1388 = vld [vmem:[#allocation4 + $0x40] sm:$0xff]
    %v1389 = vld [vmem:[#allocation4 + $0x48] sm:$0xff]
    %v1390 = vld [vmem:[#allocation4 + $0x50] sm:$0xff]
    %v1391 = vld [vmem:[#allocation4 + $0x58] sm:$0xff]
    %v1392 = vld [vmem:[#allocation4 + $0x60] sm:$0xff]
    %v1393 = vld [vmem:[#allocation4 + $0x68] sm:$0xff]
    %v1394 = vld [vmem:[#allocation4 + $0x70] sm:$0xff]
    %v1395 = vld [vmem:[#allocation4 + $0x78] sm:$0xff]
    %v1396 = vld [vmem:[#allocation4 + $0x80] sm:$0xff]
    %v1397 = vld [vmem:[#allocation4 + $0x88] sm:$0xff]
    %v1398 = vld [vmem:[#allocation4 + $0x90] sm:$0xff]
    %v1399 = vld [vmem:[#allocation4 + $0x98] sm:$0xff]
    %v1400 = vld [vmem:[#allocation4 + $0xa0] sm:$0xff]
    %v1401 = vld [vmem:[#allocation4 + $0xa8] sm:$0xff]
    %v1402 = vld [vmem:[#allocation4 + $0xb0] sm:$0xff]
    %v1403 = vld [vmem:[#allocation4 + $0xb8] sm:$0xff]
    %v1404 = vld [vmem:[#allocation4 + $0xc0] sm:$0xff]
    %v1405 = vld [vmem:[#allocation4 + $0xc8] sm:$0xff]
    %v1406 = vld [vmem:[#allocation4 + $0xd0] sm:$0xff]
    %v1407 = vld [vmem:[#allocation4 + $0xd8] sm:$0xff]
    %v1408 = vld [vmem:[#allocation4 + $0xe0] sm:$0xff]
    %v1409 = vld [vmem:[#allocation4 + $0xe8] sm:$0xff]
    %v1410 = vld [vmem:[#allocation4 + $0xf0] sm:$0xff]
    %v1411 = vld [vmem:[#allocation4 + $0xf8] sm:$0xff]
    %v1412 = vld [vmem:[#allocation4 + $0x100] sm:$0xff]
    %v1413 = vld [vmem:[#allocation4 + $0x108] sm:$0xff]
    %v1414 = vld [vmem:[#allocation4 + $0x110] sm:$0xff]
    %v1415 = vld [vmem:[#allocation4 + $0x118] sm:$0xff]
    %v1416 = vld [vmem:[#allocation4 + $0x120] sm:$0xff]
    %v1417 = vld [vmem:[#allocation4 + $0x128] sm:$0xff]
    %v1418 = vld [vmem:[#allocation4 + $0x130] sm:$0xff]
    %v1419 = vld [vmem:[#allocation4 + $0x138] sm:$0xff]
    %v1420 = vld [vmem:[#allocation4 + $0x140] sm:$0xff]
    %v1421 = vld [vmem:[#allocation4 + $0x148] sm:$0xff]
    %v1422 = vld [vmem:[#allocation4 + $0x150] sm:$0xff]
    %v1423 = vld [vmem:[#allocation4 + $0x158] sm:$0xff]
    %v1424 = vld [vmem:[#allocation4 + $0x160] sm:$0xff]
    %v1425 = vld [vmem:[#allocation4 + $0x168] sm:$0xff]
    %v1426 = vld [vmem:[#allocation4 + $0x170] sm:$0xff]
    %v1427 = vld [vmem:[#allocation4 + $0x178] sm:$0xff]
    %v1428 = vld [vmem:[#allocation4 + $0x180] sm:$0xff]
    %v1429 = vld [vmem:[#allocation4 + $0x188] sm:$0xff]
    %v1430 = vld [vmem:[#allocation4 + $0x190] sm:$0xff]
    %v1431 = vld [vmem:[#allocation4 + $0x198] sm:$0xff]
    %v1432 = vld [vmem:[#allocation4 + $0x1a0] sm:$0xff]
    %v1433 = vld [vmem:[#allocation4 + $0x1a8] sm:$0xff]
    %v1434 = vld [vmem:[#allocation4 + $0x1b0] sm:$0xff]
    %v1435 = vld [vmem:[#allocation4 + $0x1b8] sm:$0xff]
    %v1436 = vld [vmem:[#allocation4 + $0x1c0] sm:$0xff]
    %v1437 = vld [vmem:[#allocation4 + $0x1c8] sm:$0xff]
    %v1438 = vld [vmem:[#allocation4 + $0x1d0] sm:$0xff]
    %v1439 = vld [vmem:[#allocation4 + $0x1d8] sm:$0xff]
    %v1440 = vld [vmem:[#allocation4 + $0x1e0] sm:$0xff]
    %v1441 = vld [vmem:[#allocation4 + $0x1e8] sm:$0xff]
    %v1442 = vld [vmem:[#allocation4 + $0x1f0] sm:$0xff]
    %v1443 = vld [vmem:[#allocation4 + $0x1f8] sm:$0xff]
    %1444 = vmatpush.msra.mxu0 %v1440
    %1445 = vmatpush.msra.mxu0 %v1436
    %1446 = vmatpush.msra.mxu0 %v1432
    %1447 = vmatpush.msra.mxu0 %v1428
    %1448 = vmatpush.msra.mxu0 %v1424
    %1449 = vmatpush.msra.mxu0 %v1420
    %1450 = vmatpush.msra.mxu0 %v1416
    %1451 = vmatpush.msra.mxu0 %v1412
    %1452 = vmatpush.msra.mxu0 %v1408
    %1453 = vmatpush.msra.mxu0 %v1404
    %1454 = vmatpush.msra.mxu0 %v1400
    %1455 = vmatpush.msra.mxu0 %v1396
    %1456 = vmatpush.msra.mxu0 %v1392
    %1457 = vmatpush.msra.mxu0 %v1388
    %1458 = vmatpush.msra.mxu0 %v1384
    %1459 = vmatpush.msra.mxu0 %v1380
    %1460 = vmatmul.f32.gmra.mxu0 %v1370
    %v1461 = vpop.f32.mrf.mxu0
    %v1462 = vadd.f32 0.0, %v1461
    %1463 = vdwg.mxu0
    %1464 = vmatpush.msra.mxu0 %v1441
    %1465 = vmatpush.msra.mxu0 %v1437
    %1466 = vmatpush.msra.mxu0 %v1433
    %1467 = vmatpush.msra.mxu0 %v1429
    %1468 = vmatpush.msra.mxu0 %v1425
    %1469 = vmatpush.msra.mxu0 %v1421
    %1470 = vmatpush.msra.mxu0 %v1417
    %1471 = vmatpush.msra.mxu0 %v1413
    %1472 = vmatpush.msra.mxu0 %v1409
    %1473 = vmatpush.msra.mxu0 %v1405
    %1474 = vmatpush.msra.mxu0 %v1401
    %1475 = vmatpush.msra.mxu0 %v1397
    %1476 = vmatpush.msra.mxu0 %v1393
    %1477 = vmatpush.msra.mxu0 %v1389
    %1478 = vmatpush.msra.mxu0 %v1385
    %1479 = vmatpush.msra.mxu0 %v1381
    %1480 = vmatmul.f32.gmra.mxu0 %v1370
    %v1481 = vpop.f32.mrf.mxu0
    %v1482 = vadd.f32 0.0, %v1481
    %1483 = vdwg.mxu0
    %1484 = vmatpush.msra.mxu0 %v1442
    %1485 = vmatpush.msra.mxu0 %v1438
    %1486 = vmatpush.msra.mxu0 %v1434
    %1487 = vmatpush.msra.mxu0 %v1430
    %1488 = vmatpush.msra.mxu0 %v1426
    %1489 = vmatpush.msra.mxu0 %v1422
    %1490 = vmatpush.msra.mxu0 %v1418
    %1491 = vmatpush.msra.mxu0 %v1414
    %1492 = vmatpush.msra.mxu0 %v1410
    %1493 = vmatpush.msra.mxu0 %v1406
    %1494 = vmatpush.msra.mxu0 %v1402
    %1495 = vmatpush.msra.mxu0 %v1398
    %1496 = vmatpush.msra.mxu0 %v1394
    %1497 = vmatpush.msra.mxu0 %v1390
    %1498 = vmatpush.msra.mxu0 %v1386
    %1499 = vmatpush.msra.mxu0 %v1382
    %1500 = vmatmul.f32.gmra.mxu0 %v1370
    %v1501 = vpop.f32.mrf.mxu0
    %v1502 = vadd.f32 0.0, %v1501
    %1503 = vdwg.mxu0
    %1504 = vmatpush.msra.mxu0 %v1443
    %1505 = vmatpush.msra.mxu0 %v1439
    %1506 = vmatpush.msra.mxu0 %v1435
    %1507 = vmatpush.msra.mxu0 %v1431
    %1508 = vmatpush.msra.mxu0 %v1427
    %1509 = vmatpush.msra.mxu0 %v1423
    %1510 = vmatpush.msra.mxu0 %v1419
    %1511 = vmatpush.msra.mxu0 %v1415
    %1512 = vmatpush.msra.mxu0 %v1411
    %1513 = vmatpush.msra.mxu0 %v1407
    %1514 = vmatpush.msra.mxu0 %v1403
    %1515 = vmatpush.msra.mxu0 %v1399
    %1516 = vmatpush.msra.mxu0 %v1395
    %1517 = vmatpush.msra.mxu0 %v1391
    %1518 = vmatpush.msra.mxu0 %v1387
    %1519 = vmatpush.msra.mxu0 %v1383
    %1520 = vmatmul.f32.gmra.mxu0 %v1370
    %v1521 = vpop.f32.mrf.mxu0
    %v1522 = vadd.f32 0.0, %v1521
    %1523 = vdwg.mxu0
    %v1524 = vadd.f32 %v1376, %v1462
    %v1525 = vadd.f32 %v1377, %v1482
    %v1526 = vadd.f32 %v1378, %v1502
    %v1527 = vadd.f32 %v1379, %v1522
    %v1528 = vmul.f32 %v1524, 0.5
    %v1529 = vtanh.pop %v1528
    %v1530 = vmul.f32 %v1529, 0.5
    %v1531 = vadd.f32 %v1530, 0.5
    %v1532 = vmul.f32 %v1525, 0.5
    %v1533 = vtanh.pop %v1532
    %v1534 = vmul.f32 %v1533, 0.5
    %v1535 = vadd.f32 %v1534, 0.5
    %v1536 = vtanh.pop %v1526
    %v1537 = vmul.f32 %v1527, 0.5
    %v1538 = vtanh.pop %v1537
    %v1539 = vmul.f32 %v1538, 0.5
    %v1540 = vadd.f32 %v1539, 0.5
    %v1541 = vmul.f32 %v1535, %v1368
    %v1542 = vmul.f32 %v1531, %v1536
    %v1543 = vadd.f32 %v1541, %v1542
    %v1544 = vtanh.pop %v1543
    %v1545 = vmul.f32 %v1540, %v1544
    %s1546 = scalar_lea.vmem [#allocation3], 48
    %1547 = vst [vmem:[%s1546] sm:$0xff] %v1545
    %s1548 = smul.u32 7, 4
    %s1549 = smul.addr %s1548, 8
    %s1550 = scalar_lea.vmem [#allocation2], %s1549
    %v1551 = vld [vmem:[%s1550] sm:$0xff]
    %v1552 = vld [vmem:[%s1550 + $0x8] sm:$0xff]
    %v1553 = vld [vmem:[%s1550 + $0x10] sm:$0xff]
    %v1554 = vld [vmem:[%s1550 + $0x18] sm:$0xff]
    %v1555 = vld [vmem:[#allocation4] sm:$0xff]
    %v1556 = vld [vmem:[#allocation4 + $0x8] sm:$0xff]
    %v1557 = vld [vmem:[#allocation4 + $0x10] sm:$0xff]
    %v1558 = vld [vmem:[#allocation4 + $0x18] sm:$0xff]
    %v1559 = vld [vmem:[#allocation4 + $0x20] sm:$0xff]
    %v1560 = vld [vmem:[#allocation4 + $0x28] sm:$0xff]
    %v1561 = vld [vmem:[#allocation4 + $0x30] sm:$0xff]
    %v1562 = vld [vmem:[#allocation4 + $0x38] sm:$0xff]
    %v1563 = vld [vmem:[#allocation4 + $0x40] sm:$0xff]
    %v1564 = vld [vmem:[#allocation4 + $0x48] sm:$0xff]
    %v1565 = vld [vmem:[#allocation4 + $0x50] sm:$0xff]
    %v1566 = vld [vmem:[#allocation4 + $0x58] sm:$0xff]
    %v1567 = vld [vmem:[#allocation4 + $0x60] sm:$0xff]
    %v1568 = vld [vmem:[#allocation4 + $0x68] sm:$0xff]
    %v1569 = vld [vmem:[#allocation4 + $0x70] sm:$0xff]
    %v1570 = vld [vmem:[#allocation4 + $0x78] sm:$0xff]
    %v1571 = vld [vmem:[#allocation4 + $0x80] sm:$0xff]
    %v1572 = vld [vmem:[#allocation4 + $0x88] sm:$0xff]
    %v1573 = vld [vmem:[#allocation4 + $0x90] sm:$0xff]
    %v1574 = vld [vmem:[#allocation4 + $0x98] sm:$0xff]
    %v1575 = vld [vmem:[#allocation4 + $0xa0] sm:$0xff]
    %v1576 = vld [vmem:[#allocation4 + $0xa8] sm:$0xff]
    %v1577 = vld [vmem:[#allocation4 + $0xb0] sm:$0xff]
    %v1578 = vld [vmem:[#allocation4 + $0xb8] sm:$0xff]
    %v1579 = vld [vmem:[#allocation4 + $0xc0] sm:$0xff]
    %v1580 = vld [vmem:[#allocation4 + $0xc8] sm:$0xff]
    %v1581 = vld [vmem:[#allocation4 + $0xd0] sm:$0xff]
    %v1582 = vld [vmem:[#allocation4 + $0xd8] sm:$0xff]
    %v1583 = vld [vmem:[#allocation4 + $0xe0] sm:$0xff]
    %v1584 = vld [vmem:[#allocation4 + $0xe8] sm:$0xff]
    %v1585 = vld [vmem:[#allocation4 + $0xf0] sm:$0xff]
    %v1586 = vld [vmem:[#allocation4 + $0xf8] sm:$0xff]
    %v1587 = vld [vmem:[#allocation4 + $0x100] sm:$0xff]
    %v1588 = vld [vmem:[#allocation4 + $0x108] sm:$0xff]
    %v1589 = vld [vmem:[#allocation4 + $0x110] sm:$0xff]
    %v1590 = vld [vmem:[#allocation4 + $0x118] sm:$0xff]
    %v1591 = vld [vmem:[#allocation4 + $0x120] sm:$0xff]
    %v1592 = vld [vmem:[#allocation4 + $0x128] sm:$0xff]
    %v1593 = vld [vmem:[#allocation4 + $0x130] sm:$0xff]
    %v1594 = vld [vmem:[#allocation4 + $0x138] sm:$0xff]
    %v1595 = vld [vmem:[#allocation4 + $0x140] sm:$0xff]
    %v1596 = vld [vmem:[#allocation4 + $0x148] sm:$0xff]
    %v1597 = vld [vmem:[#allocation4 + $0x150] sm:$0xff]
    %v1598 = vld [vmem:[#allocation4 + $0x158] sm:$0xff]
    %v1599 = vld [vmem:[#allocation4 + $0x160] sm:$0xff]
    %v1600 = vld [vmem:[#allocation4 + $0x168] sm:$0xff]
    %v1601 = vld [vmem:[#allocation4 + $0x170] sm:$0xff]
    %v1602 = vld [vmem:[#allocation4 + $0x178] sm:$0xff]
    %v1603 = vld [vmem:[#allocation4 + $0x180] sm:$0xff]
    %v1604 = vld [vmem:[#allocation4 + $0x188] sm:$0xff]
    %v1605 = vld [vmem:[#allocation4 + $0x190] sm:$0xff]
    %v1606 = vld [vmem:[#allocation4 + $0x198] sm:$0xff]
    %v1607 = vld [vmem:[#allocation4 + $0x1a0] sm:$0xff]
    %v1608 = vld [vmem:[#allocation4 + $0x1a8] sm:$0xff]
    %v1609 = vld [vmem:[#allocation4 + $0x1b0] sm:$0xff]
    %v1610 = vld [vmem:[#allocation4 + $0x1b8] sm:$0xff]
    %v1611 = vld [vmem:[#allocation4 + $0x1c0] sm:$0xff]
    %v1612 = vld [vmem:[#allocation4 + $0x1c8] sm:$0xff]
    %v1613 = vld [vmem:[#allocation4 + $0x1d0] sm:$0xff]
    %v1614 = vld [vmem:[#allocation4 + $0x1d8] sm:$0xff]
    %v1615 = vld [vmem:[#allocation4 + $0x1e0] sm:$0xff]
    %v1616 = vld [vmem:[#allocation4 + $0x1e8] sm:$0xff]
    %v1617 = vld [vmem:[#allocation4 + $0x1f0] sm:$0xff]
    %v1618 = vld [vmem:[#allocation4 + $0x1f8] sm:$0xff]
    %1619 = vmatpush.msra.mxu0 %v1615
    %1620 = vmatpush.msra.mxu0 %v1611
    %1621 = vmatpush.msra.mxu0 %v1607
    %1622 = vmatpush.msra.mxu0 %v1603
    %1623 = vmatpush.msra.mxu0 %v1599
    %1624 = vmatpush.msra.mxu0 %v1595
    %1625 = vmatpush.msra.mxu0 %v1591
    %1626 = vmatpush.msra.mxu0 %v1587
    %1627 = vmatpush.msra.mxu0 %v1583
    %1628 = vmatpush.msra.mxu0 %v1579
    %1629 = vmatpush.msra.mxu0 %v1575
    %1630 = vmatpush.msra.mxu0 %v1571
    %1631 = vmatpush.msra.mxu0 %v1567
    %1632 = vmatpush.msra.mxu0 %v1563
    %1633 = vmatpush.msra.mxu0 %v1559
    %1634 = vmatpush.msra.mxu0 %v1555
    %1635 = vmatmul.f32.gmra.mxu0 %v1545
    %v1636 = vpop.f32.mrf.mxu0
    %v1637 = vadd.f32 0.0, %v1636
    %1638 = vdwg.mxu0
    %1639 = vmatpush.msra.mxu0 %v1616
    %1640 = vmatpush.msra.mxu0 %v1612
    %1641 = vmatpush.msra.mxu0 %v1608
    %1642 = vmatpush.msra.mxu0 %v1604
    %1643 = vmatpush.msra.mxu0 %v1600
    %1644 = vmatpush.msra.mxu0 %v1596
    %1645 = vmatpush.msra.mxu0 %v1592
    %1646 = vmatpush.msra.mxu0 %v1588
    %1647 = vmatpush.msra.mxu0 %v1584
    %1648 = vmatpush.msra.mxu0 %v1580
    %1649 = vmatpush.msra.mxu0 %v1576
    %1650 = vmatpush.msra.mxu0 %v1572
    %1651 = vmatpush.msra.mxu0 %v1568
    %1652 = vmatpush.msra.mxu0 %v1564
    %1653 = vmatpush.msra.mxu0 %v1560
    %1654 = vmatpush.msra.mxu0 %v1556
    %1655 = vmatmul.f32.gmra.mxu0 %v1545
    %v1656 = vpop.f32.mrf.mxu0
    %v1657 = vadd.f32 0.0, %v1656
    %1658 = vdwg.mxu0
    %1659 = vmatpush.msra.mxu0 %v1617
    %1660 = vmatpush.msra.mxu0 %v1613
    %1661 = vmatpush.msra.mxu0 %v1609
    %1662 = vmatpush.msra.mxu0 %v1605
    %1663 = vmatpush.msra.mxu0 %v1601
    %1664 = vmatpush.msra.mxu0 %v1597
    %1665 = vmatpush.msra.mxu0 %v1593
    %1666 = vmatpush.msra.mxu0 %v1589
    %1667 = vmatpush.msra.mxu0 %v1585
    %1668 = vmatpush.msra.mxu0 %v1581
    %1669 = vmatpush.msra.mxu0 %v1577
    %1670 = vmatpush.msra.mxu0 %v1573
    %1671 = vmatpush.msra.mxu0 %v1569
    %1672 = vmatpush.msra.mxu0 %v1565
    %1673 = vmatpush.msra.mxu0 %v1561
    %1674 = vmatpush.msra.mxu0 %v1557
    %1675 = vmatmul.f32.gmra.mxu0 %v1545
    %v1676 = vpop.f32.mrf.mxu0
    %v1677 = vadd.f32 0.0, %v1676
    %1678 = vdwg.mxu0
    %1679 = vmatpush.msra.mxu0 %v1618
    %1680 = vmatpush.msra.mxu0 %v1614
    %1681 = vmatpush.msra.mxu0 %v1610
    %1682 = vmatpush.msra.mxu0 %v1606
    %1683 = vmatpush.msra.mxu0 %v1602
    %1684 = vmatpush.msra.mxu0 %v1598
    %1685 = vmatpush.msra.mxu0 %v1594
    %1686 = vmatpush.msra.mxu0 %v1590
    %1687 = vmatpush.msra.mxu0 %v1586
    %1688 = vmatpush.msra.mxu0 %v1582
    %1689 = vmatpush.msra.mxu0 %v1578
    %1690 = vmatpush.msra.mxu0 %v1574
    %1691 = vmatpush.msra.mxu0 %v1570
    %1692 = vmatpush.msra.mxu0 %v1566
    %1693 = vmatpush.msra.mxu0 %v1562
    %1694 = vmatpush.msra.mxu0 %v1558
    %1695 = vmatmul.f32.gmra.mxu0 %v1545
    %v1696 = vpop.f32.mrf.mxu0
    %v1697 = vadd.f32 0.0, %v1696
    %1698 = vdwg.mxu0
    %v1699 = vadd.f32 %v1551, %v1637
    %v1700 = vadd.f32 %v1552, %v1657
    %v1701 = vadd.f32 %v1553, %v1677
    %v1702 = vadd.f32 %v1554, %v1697
    %v1703 = vmul.f32 %v1699, 0.5
    %v1704 = vtanh.pop %v1703
    %v1705 = vmul.f32 %v1704, 0.5
    %v1706 = vadd.f32 %v1705, 0.5
    %v1707 = vmul.f32 %v1700, 0.5
    %v1708 = vtanh.pop %v1707
    %v1709 = vmul.f32 %v1708, 0.5
    %v1710 = vadd.f32 %v1709, 0.5
    %v1711 = vtanh.pop %v1701
    %v1712 = vmul.f32 %v1702, 0.5
    %v1713 = vtanh.pop %v1712
    %v1714 = vmul.f32 %v1713, 0.5
    %v1715 = vadd.f32 %v1714, 0.5
    %v1716 = vmul.f32 %v1710, %v1543
    %v1717 = vmul.f32 %v1706, %v1711
    %v1718 = vadd.f32 %v1716, %v1717
    %v1719 = vtanh.pop %v1718
    %v1720 = vmul.f32 %v1715, %v1719
    %s1721 = scalar_lea.vmem [#allocation3], 56
    %1722 = vst [vmem:[%s1721] sm:$0xff] %v1720
    %1723 = vst [vmem:[#allocation10] sm:$0xff] %v1720
    %1724 = vst [vmem:[#allocation11] sm:$0xff] %v1718
    %v1725 = vld [vmem:[#allocation3] sm:$0xff]
    %v1726 = vld [vmem:[#allocation3 + $0x8] sm:$0xff]
    %v1727 = vld [vmem:[#allocation3 + $0x10] sm:$0xff]
    %v1728 = vld [vmem:[#allocation3 + $0x18] sm:$0xff]
    %v1729 = vld [vmem:[#allocation3 + $0x20] sm:$0xff]
    %v1730 = vld [vmem:[#allocation3 + $0x28] sm:$0xff]
    %v1731 = vld [vmem:[#allocation3 + $0x30] sm:$0xff]
    %v1732 = vld [vmem:[#allocation3 + $0x38] sm:$0xff]
    %v1733 = vld [vmem:[#allocation7] sm:$0xff]
    %v1734 = vld [vmem:[#allocation7 + $0x8] sm:$0xff]
    %v1735 = vld [vmem:[#allocation7 + $0x10] sm:$0xff]
    %v1736 = vld [vmem:[#allocation7 + $0x18] sm:$0xff]
    %v1737 = vld [vmem:[#allocation7 + $0x20] sm:$0xff]
    %v1738 = vld [vmem:[#allocation7 + $0x28] sm:$0xff]
    %v1739 = vld [vmem:[#allocation7 + $0x30] sm:$0xff]
    %v1740 = vld [vmem:[#allocation7 + $0x38] sm:$0xff]
    %v1741 = vld [vmem:[#allocation7 + $0x40] sm:$0xff]
    %v1742 = vld [vmem:[#allocation7 + $0x48] sm:$0xff]
    %v1743 = vld [vmem:[#allocation7 + $0x50] sm:$0xff]
    %v1744 = vld [vmem:[#allocation7 + $0x58] sm:$0xff]
    %v1745 = vld [vmem:[#allocation7 + $0x60] sm:$0xff]
    %v1746 = vld [vmem:[#allocation7 + $0x68] sm:$0xff]
    %v1747 = vld [vmem:[#allocation7 + $0x70] sm:$0xff]
    %v1748 = vld [vmem:[#allocation7 + $0x78] sm:$0xff]
    %v1749 = vld [vmem:[#allocation7 + $0x80] sm:$0xff]
    %v1750 = vld [vmem:[#allocation7 + $0x88] sm:$0xff]
    %v1751 = vld [vmem:[#allocation7 + $0x90] sm:$0xff]
    %v1752 = vld [vmem:[#allocation7 + $0x98] sm:$0xff]
    %v1753 = vld [vmem:[#allocation7 + $0xa0] sm:$0xff]
    %v1754 = vld [vmem:[#allocation7 + $0xa8] sm:$0xff]
    %v1755 = vld [vmem:[#allocation7 + $0xb0] sm:$0xff]
    %v1756 = vld [vmem:[#allocation7 + $0xb8] sm:$0xff]
    %v1757 = vld [vmem:[#allocation7 + $0xc0] sm:$0xff]
    %v1758 = vld [vmem:[#allocation7 + $0xc8] sm:$0xff]
    %v1759 = vld [vmem:[#allocation7 + $0xd0] sm:$0xff]
    %v1760 = vld [vmem:[#allocation7 + $0xd8] sm:$0xff]
    %v1761 = vld [vmem:[#allocation7 + $0xe0] sm:$0xff]
    %v1762 = vld [vmem:[#allocation7 + $0xe8] sm:$0xff]
    %v1763 = vld [vmem:[#allocation7 + $0xf0] sm:$0xff]
    %v1764 = vld [vmem:[#allocation7 + $0xf8] sm:$0xff]
    %v1765 = vld [vmem:[#allocation7 + $0x100] sm:$0xff]
    %v1766 = vld [vmem:[#allocation7 + $0x108] sm:$0xff]
    %v1767 = vld [vmem:[#allocation7 + $0x110] sm:$0xff]
    %v1768 = vld [vmem:[#allocation7 + $0x118] sm:$0xff]
    %v1769 = vld [vmem:[#allocation7 + $0x120] sm:$0xff]
    %v1770 = vld [vmem:[#allocation7 + $0x128] sm:$0xff]
    %v1771 = vld [vmem:[#allocation7 + $0x130] sm:$0xff]
    %v1772 = vld [vmem:[#allocation7 + $0x138] sm:$0xff]
    %v1773 = vld [vmem:[#allocation7 + $0x140] sm:$0xff]
    %v1774 = vld [vmem:[#allocation7 + $0x148] sm:$0xff]
    %v1775 = vld [vmem:[#allocation7 + $0x150] sm:$0xff]
    %v1776 = vld [vmem:[#allocation7 + $0x158] sm:$0xff]
    %v1777 = vld [vmem:[#allocation7 + $0x160] sm:$0xff]
    %v1778 = vld [vmem:[#allocation7 + $0x168] sm:$0xff]
    %v1779 = vld [vmem:[#allocation7 + $0x170] sm:$0xff]
    %v1780 = vld [vmem:[#allocation7 + $0x178] sm:$0xff]
    %v1781 = vld [vmem:[#allocation7 + $0x180] sm:$0xff]
    %v1782 = vld [vmem:[#allocation7 + $0x188] sm:$0xff]
    %v1783 = vld [vmem:[#allocation7 + $0x190] sm:$0xff]
    %v1784 = vld [vmem:[#allocation7 + $0x198] sm:$0xff]
    %v1785 = vld [vmem:[#allocation7 + $0x1a0] sm:$0xff]
    %v1786 = vld [vmem:[#allocation7 + $0x1a8] sm:$0xff]
    %v1787 = vld [vmem:[#allocation7 + $0x1b0] sm:$0xff]
    %v1788 = vld [vmem:[#allocation7 + $0x1b8] sm:$0xff]
    %v1789 = vld [vmem:[#allocation7 + $0x1c0] sm:$0xff]
    %v1790 = vld [vmem:[#allocation7 + $0x1c8] sm:$0xff]
    %v1791 = vld [vmem:[#allocation7 + $0x1d0] sm:$0xff]
    %v1792 = vld [vmem:[#allocation7 + $0x1d8] sm:$0xff]
    %v1793 = vld [vmem:[#allocation7 + $0x1e0] sm:$0xff]
    %v1794 = vld [vmem:[#allocation7 + $0x1e8] sm:$0xff]
    %v1795 = vld [vmem:[#allocation7 + $0x1f0] sm:$0xff]
    %v1796 = vld [vmem:[#allocation7 + $0x1f8] sm:$0xff]
    %v1797 = vld [vmem:[%s6] sm:$0xf]
    %v1799 = vperm.slane %v1797, 0
    %v1800 = vperm.slane %v1797, 1
    %v1801 = vperm.slane %v1797, 2
    %v1802 = vperm.slane %v1797, 3
    %1807 = vmatpush.msra.mxu0 %v1793
    %1808 = vmatpush.msra.mxu0 %v1789
    %1809 = vmatpush.msra.mxu0 %v1785
    %1810 = vmatpush.msra.mxu0 %v1781
    %1811 = vmatpush.msra.mxu0 %v1777
    %1812 = vmatpush.msra.mxu0 %v1773
    %1813 = vmatpush.msra.mxu0 %v1769
    %1814 = vmatpush.msra.mxu0 %v1765
    %1815 = vmatpush.msra.mxu0 %v1761
    %1816 = vmatpush.msra.mxu0 %v1757
    %1817 = vmatpush.msra.mxu0 %v1753
    %1818 = vmatpush.msra.mxu0 %v1749
    %1819 = vmatpush.msra.mxu0 %v1745
    %1820 = vmatpush.msra.mxu0 %v1741
    %1821 = vmatpush.msra.mxu0 %v1737
    %1822 = vmatpush.msra.mxu0 %v1733
    %1823 = vmatmul.f32.gmra.mxu0 %v1725
    %v1824 = vpop.f32.mrf.mxu0
    %v1825 = vadd.f32 %v1799, %v1824
    %1826 = vmatmul.f32.gmra.mxu0 %v1726
    %v1827 = vpop.f32.mrf.mxu0
    %v1828 = vadd.f32 %v1799, %v1827
    %1829 = vmatmul.f32.gmra.mxu0 %v1727
    %v1830 = vpop.f32.mrf.mxu0
    %v1831 = vadd.f32 %v1799, %v1830
    %1832 = vmatmul.f32.gmra.mxu0 %v1728
    %v1833 = vpop.f32.mrf.mxu0
    %v1834 = vadd.f32 %v1799, %v1833
    %1835 = vmatmul.f32.gmra.mxu0 %v1729
    %v1836 = vpop.f32.mrf.mxu0
    %v1837 = vadd.f32 %v1799, %v1836
    %1838 = vmatmul.f32.gmra.mxu0 %v1730
    %v1839 = vpop.f32.mrf.mxu0
    %v1840 = vadd.f32 %v1799, %v1839
    %1841 = vmatmul.f32.gmra.mxu0 %v1731
    %v1842 = vpop.f32.mrf.mxu0
    %v1843 = vadd.f32 %v1799, %v1842
    %1844 = vmatmul.f32.gmra.mxu0 %v1732
    %v1845 = vpop.f32.mrf.mxu0
    %v1846 = vadd.f32 %v1799, %v1845
    %1847 = vdwg.mxu0
    %1848 = vmatpush.msra.mxu0 %v1794
    %1849 = vmatpush.msra.mxu0 %v1790
    %1850 = vmatpush.msra.mxu0 %v1786
    %1851 = vmatpush.msra.mxu0 %v1782
    %1852 = vmatpush.msra.mxu0 %v1778
    %1853 = vmatpush.msra.mxu0 %v1774
    %1854 = vmatpush.msra.mxu0 %v1770
    %1855 = vmatpush.msra.mxu0 %v1766
    %1856 = vmatpush.msra.mxu0 %v1762
    %1857 = vmatpush.msra.mxu0 %v1758
    %1858 = vmatpush.msra.mxu0 %v1754
    %1859 = vmatpush.msra.mxu0 %v1750
    %1860 = vmatpush.msra.mxu0 %v1746
    %1861 = vmatpush.msra.mxu0 %v1742
    %1862 = vmatpush.msra.mxu0 %v1738
    %1863 = vmatpush.msra.mxu0 %v1734
    %1864 = vmatmul.f32.gmra.mxu0 %v1725
    %v1865 = vpop.f32.mrf.mxu0
    %v1866 = vadd.f32 %v1800, %v1865
    %1867 = vmatmul.f32.gmra.mxu0 %v1726
    %v1868 = vpop.f32.mrf.mxu0
    %v1869 = vadd.f32 %v1800, %v1868
    %1870 = vmatmul.f32.gmra.mxu0 %v1727
    %v1871 = vpop.f32.mrf.mxu0
    %v1872 = vadd.f32 %v1800, %v1871
    %1873 = vmatmul.f32.gmra.mxu0 %v1728
    %v1874 = vpop.f32.mrf.mxu0
    %v1875 = vadd.f32 %v1800, %v1874
    %1876 = vmatmul.f32.gmra.mxu0 %v1729
    %v1877 = vpop.f32.mrf.mxu0
    %v1878 = vadd.f32 %v1800, %v1877
    %1879 = vmatmul.f32.gmra.mxu0 %v1730
    %v1880 = vpop.f32.mrf.mxu0
    %v1881 = vadd.f32 %v1800, %v1880
    %1882 = vmatmul.f32.gmra.mxu0 %v1731
    %v1883 = vpop.f32.mrf.mxu0
    %v1884 = vadd.f32 %v1800, %v1883
    %1885 = vmatmul.f32.gmra.mxu0 %v1732
    %v1886 = vpop.f32.mrf.mxu0
    %v1887 = vadd.f32 %v1800, %v1886
    %1888 = vdwg.mxu0
    %1889 = vmatpush.msra.mxu0 %v1795
    %1890 = vmatpush.msra.mxu0 %v1791
    %1891 = vmatpush.msra.mxu0 %v1787
    %1892 = vmatpush.msra.mxu0 %v1783
    %1893 = vmatpush.msra.mxu0 %v1779
    %1894 = vmatpush.msra.mxu0 %v1775
    %1895 = vmatpush.msra.mxu0 %v1771
    %1896 = vmatpush.msra.mxu0 %v1767
    %1897 = vmatpush.msra.mxu0 %v1763
    %1898 = vmatpush.msra.mxu0 %v1759
    %1899 = vmatpush.msra.mxu0 %v1755
    %1900 = vmatpush.msra.mxu0 %v1751
    %1901 = vmatpush.msra.mxu0 %v1747
    %1902 = vmatpush.msra.mxu0 %v1743
    %1903 = vmatpush.msra.mxu0 %v1739
    %1904 = vmatpush.msra.mxu0 %v1735
    %1905 = vmatmul.f32.gmra.mxu0 %v1725
    %v1906 = vpop.f32.mrf.mxu0
    %v1907 = vadd.f32 %v1801, %v1906
    %1908 = vmatmul.f32.gmra.mxu0 %v1726
    %v1909 = vpop.f32.mrf.mxu0
    %v1910 = vadd.f32 %v1801, %v1909
    %1911 = vmatmul.f32.gmra.mxu0 %v1727
    %v1912 = vpop.f32.mrf.mxu0
    %v1913 = vadd.f32 %v1801, %v1912
    %1914 = vmatmul.f32.gmra.mxu0 %v1728
    %v1915 = vpop.f32.mrf.mxu0
    %v1916 = vadd.f32 %v1801, %v1915
    %1917 = vmatmul.f32.gmra.mxu0 %v1729
    %v1918 = vpop.f32.mrf.mxu0
    %v1919 = vadd.f32 %v1801, %v1918
    %1920 = vmatmul.f32.gmra.mxu0 %v1730
    %v1921 = vpop.f32.mrf.mxu0
    %v1922 = vadd.f32 %v1801, %v1921
    %1923 = vmatmul.f32.gmra.mxu0 %v1731
    %v1924 = vpop.f32.mrf.mxu0
    %v1925 = vadd.f32 %v1801, %v1924
    %1926 = vmatmul.f32.gmra.mxu0 %v1732
    %v1927 = vpop.f32.mrf.mxu0
    %v1928 = vadd.f32 %v1801, %v1927
    %1929 = vdwg.mxu0
    %1930 = vmatpush.msra.mxu0 %v1796
    %1931 = vmatpush.msra.mxu0 %v1792
    %1932 = vmatpush.msra.mxu0 %v1788
    %1933 = vmatpush.msra.mxu0 %v1784
    %1934 = vmatpush.msra.mxu0 %v1780
    %1935 = vmatpush.msra.mxu0 %v1776
    %1936 = vmatpush.msra.mxu0 %v1772
    %1937 = vmatpush.msra.mxu0 %v1768
    %1938 = vmatpush.msra.mxu0 %v1764
    %1939 = vmatpush.msra.mxu0 %v1760
    %1940 = vmatpush.msra.mxu0 %v1756
    %1941 = vmatpush.msra.mxu0 %v1752
    %1942 = vmatpush.msra.mxu0 %v1748
    %1943 = vmatpush.msra.mxu0 %v1744
    %1944 = vmatpush.msra.mxu0 %v1740
    %1945 = vmatpush.msra.mxu0 %v1736
    %1946 = vmatmul.f32.gmra.mxu0 %v1725
    %v1947 = vpop.f32.mrf.mxu0
    %v1948 = vadd.f32 %v1802, %v1947
    %1949 = vmatmul.f32.gmra.mxu0 %v1726
    %v1950 = vpop.f32.mrf.mxu0
    %v1951 = vadd.f32 %v1802, %v1950
    %1952 = vmatmul.f32.gmra.mxu0 %v1727
    %v1953 = vpop.f32.mrf.mxu0
    %v1954 = vadd.f32 %v1802, %v1953
    %1955 = vmatmul.f32.gmra.mxu0 %v1728
    %v1956 = vpop.f32.mrf.mxu0
    %v1957 = vadd.f32 %v1802, %v1956
    %1958 = vmatmul.f32.gmra.mxu0 %v1729
    %v1959 = vpop.f32.mrf.mxu0
    %v1960 = vadd.f32 %v1802, %v1959
    %1961 = vmatmul.f32.gmra.mxu0 %v1730
    %v1962 = vpop.f32.mrf.mxu0
    %v1963 = vadd.f32 %v1802, %v1962
    %1964 = vmatmul.f32.gmra.mxu0 %v1731
    %v1965 = vpop.f32.mrf.mxu0
    %v1966 = vadd.f32 %v1802, %v1965
    %1967 = vmatmul.f32.gmra.mxu0 %v1732
    %v1968 = vpop.f32.mrf.mxu0
    %v1969 = vadd.f32 %v1802, %v1968
    %1970 = vdwg.mxu0
    %1971 = vst [vmem:[#allocation2] sm:$0xff] %v1825
    %1972 = vst [vmem:[#allocation2 + $0x8] sm:$0xff] %v1866
    %1973 = vst [vmem:[#allocation2 + $0x10] sm:$0xff] %v1907
    %1974 = vst [vmem:[#allocation2 + $0x18] sm:$0xff] %v1948
    %1975 = vst [vmem:[#allocation2 + $0x20] sm:$0xff] %v1828
    %1976 = vst [vmem:[#allocation2 + $0x28] sm:$0xff] %v1869
    %1977 = vst [vmem:[#allocation2 + $0x30] sm:$0xff] %v1910
    %1978 = vst [vmem:[#allocation2 + $0x38] sm:$0xff] %v1951
    %1979 = vst [vmem:[#allocation2 + $0x40] sm:$0xff] %v1831
    %1980 = vst [vmem:[#allocation2 + $0x48] sm:$0xff] %v1872
    %1981 = vst [vmem:[#allocation2 + $0x50] sm:$0xff] %v1913
    %1982 = vst [vmem:[#allocation2 + $0x58] sm:$0xff] %v1954
    %1983 = vst [vmem:[#allocation2 + $0x60] sm:$0xff] %v1834
    %1984 = vst [vmem:[#allocation2 + $0x68] sm:$0xff] %v1875
    %1985 = vst [vmem:[#allocation2 + $0x70] sm:$0xff] %v1916
    %1986 = vst [vmem:[#allocation2 + $0x78] sm:$0xff] %v1957
    %1987 = vst [vmem:[#allocation2 + $0x80] sm:$0xff] %v1837
    %1988 = vst [vmem:[#allocation2 + $0x88] sm:$0xff] %v1878
    %1989 = vst [vmem:[#allocation2 + $0x90] sm:$0xff] %v1919
    %1990 = vst [vmem:[#allocation2 + $0x98] sm:$0xff] %v1960
    %1991 = vst [vmem:[#allocation2 + $0xa0] sm:$0xff] %v1840
    %1992 = vst [vmem:[#allocation2 + $0xa8] sm:$0xff] %v1881
    %1993 = vst [vmem:[#allocation2 + $0xb0] sm:$0xff] %v1922
    %1994 = vst [vmem:[#allocation2 + $0xb8] sm:$0xff] %v1963
    %1995 = vst [vmem:[#allocation2 + $0xc0] sm:$0xff] %v1843
    %1996 = vst [vmem:[#allocation2 + $0xc8] sm:$0xff] %v1884
    %1997 = vst [vmem:[#allocation2 + $0xd0] sm:$0xff] %v1925
    %1998 = vst [vmem:[#allocation2 + $0xd8] sm:$0xff] %v1966
    %1999 = vst [vmem:[#allocation2 + $0xe0] sm:$0xff] %v1846
    %2000 = vst [vmem:[#allocation2 + $0xe8] sm:$0xff] %v1887
    %2001 = vst [vmem:[#allocation2 + $0xf0] sm:$0xff] %v1928
    %2002 = vst [vmem:[#allocation2 + $0xf8] sm:$0xff] %v1969
    %v2003 = vld [vmem:[%s326] sm:$0xff]
    %v2004 = vld [vmem:[%s326 + $0x8] sm:$0xff]
    %v2005 = vld [vmem:[%s326 + $0x10] sm:$0xff]
    %v2006 = vld [vmem:[%s326 + $0x18] sm:$0xff]
    %v2007 = vld [vmem:[#allocation9] sm:$0xff]
    %v2008 = vld [vmem:[#allocation9 + $0x8] sm:$0xff]
    %v2009 = vld [vmem:[#allocation9 + $0x10] sm:$0xff]
    %v2010 = vld [vmem:[#allocation9 + $0x18] sm:$0xff]
    %v2011 = vld [vmem:[#allocation9 + $0x20] sm:$0xff]
    %v2012 = vld [vmem:[#allocation9 + $0x28] sm:$0xff]
    %v2013 = vld [vmem:[#allocation9 + $0x30] sm:$0xff]
    %v2014 = vld [vmem:[#allocation9 + $0x38] sm:$0xff]
    %v2015 = vld [vmem:[#allocation9 + $0x40] sm:$0xff]
    %v2016 = vld [vmem:[#allocation9 + $0x48] sm:$0xff]
    %v2017 = vld [vmem:[#allocation9 + $0x50] sm:$0xff]
    %v2018 = vld [vmem:[#allocation9 + $0x58] sm:$0xff]
    %v2019 = vld [vmem:[#allocation9 + $0x60] sm:$0xff]
    %v2020 = vld [vmem:[#allocation9 + $0x68] sm:$0xff]
    %v2021 = vld [vmem:[#allocation9 + $0x70] sm:$0xff]
    %v2022 = vld [vmem:[#allocation9 + $0x78] sm:$0xff]
    %v2023 = vld [vmem:[#allocation9 + $0x80] sm:$0xff]
    %v2024 = vld [vmem:[#allocation9 + $0x88] sm:$0xff]
    %v2025 = vld [vmem:[#allocation9 + $0x90] sm:$0xff]
    %v2026 = vld [vmem:[#allocation9 + $0x98] sm:$0xff]
    %v2027 = vld [vmem:[#allocation9 + $0xa0] sm:$0xff]
    %v2028 = vld [vmem:[#allocation9 + $0xa8] sm:$0xff]
    %v2029 = vld [vmem:[#allocation9 + $0xb0] sm:$0xff]
    %v2030 = vld [vmem:[#allocation9 + $0xb8] sm:$0xff]
    %v2031 = vld [vmem:[#allocation9 + $0xc0] sm:$0xff]
    %v2032 = vld [vmem:[#allocation9 + $0xc8] sm:$0xff]
    %v2033 = vld [vmem:[#allocation9 + $0xd0] sm:$0xff]
    %v2034 = vld [vmem:[#allocation9 + $0xd8] sm:$0xff]
    %v2035 = vld [vmem:[#allocation9 + $0xe0] sm:$0xff]
    %v2036 = vld [vmem:[#allocation9 + $0xe8] sm:$0xff]
    %v2037 = vld [vmem:[#allocation9 + $0xf0] sm:$0xff]
    %v2038 = vld [vmem:[#allocation9 + $0xf8] sm:$0xff]
    %v2039 = vld [vmem:[#allocation9 + $0x100] sm:$0xff]
    %v2040 = vld [vmem:[#allocation9 + $0x108] sm:$0xff]
    %v2041 = vld [vmem:[#allocation9 + $0x110] sm:$0xff]
    %v2042 = vld [vmem:[#allocation9 + $0x118] sm:$0xff]
    %v2043 = vld [vmem:[#allocation9 + $0x120] sm:$0xff]
    %v2044 = vld [vmem:[#allocation9 + $0x128] sm:$0xff]
    %v2045 = vld [vmem:[#allocation9 + $0x130] sm:$0xff]
    %v2046 = vld [vmem:[#allocation9 + $0x138] sm:$0xff]
    %v2047 = vld [vmem:[#allocation9 + $0x140] sm:$0xff]
    %v2048 = vld [vmem:[#allocation9 + $0x148] sm:$0xff]
    %v2049 = vld [vmem:[#allocation9 + $0x150] sm:$0xff]
    %v2050 = vld [vmem:[#allocation9 + $0x158] sm:$0xff]
    %v2051 = vld [vmem:[#allocation9 + $0x160] sm:$0xff]
    %v2052 = vld [vmem:[#allocation9 + $0x168] sm:$0xff]
    %v2053 = vld [vmem:[#allocation9 + $0x170] sm:$0xff]
    %v2054 = vld [vmem:[#allocation9 + $0x178] sm:$0xff]
    %v2055 = vld [vmem:[#allocation9 + $0x180] sm:$0xff]
    %v2056 = vld [vmem:[#allocation9 + $0x188] sm:$0xff]
    %v2057 = vld [vmem:[#allocation9 + $0x190] sm:$0xff]
    %v2058 = vld [vmem:[#allocation9 + $0x198] sm:$0xff]
    %v2059 = vld [vmem:[#allocation9 + $0x1a0] sm:$0xff]
    %v2060 = vld [vmem:[#allocation9 + $0x1a8] sm:$0xff]
    %v2061 = vld [vmem:[#allocation9 + $0x1b0] sm:$0xff]
    %v2062 = vld [vmem:[#allocation9 + $0x1b8] sm:$0xff]
    %v2063 = vld [vmem:[#allocation9 + $0x1c0] sm:$0xff]
    %v2064 = vld [vmem:[#allocation9 + $0x1c8] sm:$0xff]
    %v2065 = vld [vmem:[#allocation9 + $0x1d0] sm:$0xff]
    %v2066 = vld [vmem:[#allocation9 + $0x1d8] sm:$0xff]
    %v2067 = vld [vmem:[#allocation9 + $0x1e0] sm:$0xff]
    %v2068 = vld [vmem:[#allocation9 + $0x1e8] sm:$0xff]
    %v2069 = vld [vmem:[#allocation9 + $0x1f0] sm:$0xff]
    %v2070 = vld [vmem:[#allocation9 + $0x1f8] sm:$0xff]
    %2071 = vmatpush.msra.mxu0 %v2067
    %2072 = vmatpush.msra.mxu0 %v2063
    %2073 = vmatpush.msra.mxu0 %v2059
    %2074 = vmatpush.msra.mxu0 %v2055
    %2075 = vmatpush.msra.mxu0 %v2051
    %2076 = vmatpush.msra.mxu0 %v2047
    %2077 = vmatpush.msra.mxu0 %v2043
    %2078 = vmatpush.msra.mxu0 %v2039
    %2079 = vmatpush.msra.mxu0 %v2035
    %2080 = vmatpush.msra.mxu0 %v2031
    %2081 = vmatpush.msra.mxu0 %v2027
    %2082 = vmatpush.msra.mxu0 %v2023
    %2083 = vmatpush.msra.mxu0 %v2019
    %2084 = vmatpush.msra.mxu0 %v2015
    %2085 = vmatpush.msra.mxu0 %v2011
    %2086 = vmatpush.msra.mxu0 %v2007
    %2087 = vmatmul.f32.gmra.mxu0 0.0
    %v2088 = vpop.f32.mrf.mxu0
    %v2089 = vadd.f32 0.0, %v2088
    %2090 = vdwg.mxu0
    %2091 = vmatpush.msra.mxu0 %v2068
    %2092 = vmatpush.msra.mxu0 %v2064
    %2093 = vmatpush.msra.mxu0 %v2060
    %2094 = vmatpush.msra.mxu0 %v2056
    %2095 = vmatpush.msra.mxu0 %v2052
    %2096 = vmatpush.msra.mxu0 %v2048
    %2097 = vmatpush.msra.mxu0 %v2044
    %2098 = vmatpush.msra.mxu0 %v2040
    %2099 = vmatpush.msra.mxu0 %v2036
    %2100 = vmatpush.msra.mxu0 %v2032
    %2101 = vmatpush.msra.mxu0 %v2028
    %2102 = vmatpush.msra.mxu0 %v2024
    %2103 = vmatpush.msra.mxu0 %v2020
    %2104 = vmatpush.msra.mxu0 %v2016
    %2105 = vmatpush.msra.mxu0 %v2012
    %2106 = vmatpush.msra.mxu0 %v2008
    %2107 = vmatmul.f32.gmra.mxu0 0.0
    %v2108 = vpop.f32.mrf.mxu0
    %v2109 = vadd.f32 0.0, %v2108
    %2110 = vdwg.mxu0
    %2111 = vmatpush.msra.mxu0 %v2069
    %2112 = vmatpush.msra.mxu0 %v2065
    %2113 = vmatpush.msra.mxu0 %v2061
    %2114 = vmatpush.msra.mxu0 %v2057
    %2115 = vmatpush.msra.mxu0 %v2053
    %2116 = vmatpush.msra.mxu0 %v2049
    %2117 = vmatpush.msra.mxu0 %v2045
    %2118 = vmatpush.msra.mxu0 %v2041
    %2119 = vmatpush.msra.mxu0 %v2037
    %2120 = vmatpush.msra.mxu0 %v2033
    %2121 = vmatpush.msra.mxu0 %v2029
    %2122 = vmatpush.msra.mxu0 %v2025
    %2123 = vmatpush.msra.mxu0 %v2021
    %2124 = vmatpush.msra.mxu0 %v2017
    %2125 = vmatpush.msra.mxu0 %v2013
    %2126 = vmatpush.msra.mxu0 %v2009
    %2127 = vmatmul.f32.gmra.mxu0 0.0
    %v2128 = vpop.f32.mrf.mxu0
    %v2129 = vadd.f32 0.0, %v2128
    %2130 = vdwg.mxu0
    %2131 = vmatpush.msra.mxu0 %v2070
    %2132 = vmatpush.msra.mxu0 %v2066
    %2133 = vmatpush.msra.mxu0 %v2062
    %2134 = vmatpush.msra.mxu0 %v2058
    %2135 = vmatpush.msra.mxu0 %v2054
    %2136 = vmatpush.msra.mxu0 %v2050
    %2137 = vmatpush.msra.mxu0 %v2046
    %2138 = vmatpush.msra.mxu0 %v2042
    %2139 = vmatpush.msra.mxu0 %v2038
    %2140 = vmatpush.msra.mxu0 %v2034
    %2141 = vmatpush.msra.mxu0 %v2030
    %2142 = vmatpush.msra.mxu0 %v2026
    %2143 = vmatpush.msra.mxu0 %v2022
    %2144 = vmatpush.msra.mxu0 %v2018
    %2145 = vmatpush.msra.mxu0 %v2014
    %2146 = vmatpush.msra.mxu0 %v2010
    %2147 = vmatmul.f32.gmra.mxu0 0.0
    %v2148 = vpop.f32.mrf.mxu0
    %v2149 = vadd.f32 0.0, %v2148
    %2150 = vdwg.mxu0
    %v2151 = vadd.f32 %v2003, %v2089
    %v2152 = vadd.f32 %v2004, %v2109
    %v2153 = vadd.f32 %v2005, %v2129
    %v2154 = vadd.f32 %v2006, %v2149
    %v2155 = vmul.f32 %v2151, 0.5
    %v2156 = vtanh.pop %v2155
    %v2157 = vmul.f32 %v2156, 0.5
    %v2158 = vadd.f32 %v2157, 0.5
    %v2159 = vmul.f32 %v2152, 0.5
    %v2160 = vtanh.pop %v2159
    %v2161 = vmul.f32 %v2160, 0.5
    %v2162 = vadd.f32 %v2161, 0.5
    %v2163 = vtanh.pop %v2153
    %v2164 = vmul.f32 %v2154, 0.5
    %v2165 = vtanh.pop %v2164
    %v2166 = vmul.f32 %v2165, 0.5
    %v2167 = vadd.f32 %v2166, 0.5
    %v2168 = vmul.f32 %v2162, 0.0
    %v2169 = vmul.f32 %v2158, %v2163
    %v2170 = vadd.f32 %v2168, %v2169
    %v2171 = vtanh.pop %v2170
    %v2172 = vmul.f32 %v2167, %v2171
    %v2173 = vld [vmem:[%s500] sm:$0xff]
    %v2174 = vld [vmem:[%s500 + $0x8] sm:$0xff]
    %v2175 = vld [vmem:[%s500 + $0x10] sm:$0xff]
    %v2176 = vld [vmem:[%s500 + $0x18] sm:$0xff]
    %2177 = vmatpush.msra.mxu0 %v2067
    %2178 = vmatpush.msra.mxu0 %v2063
    %2179 = vmatpush.msra.mxu0 %v2059
    %2180 = vmatpush.msra.mxu0 %v2055
    %2181 = vmatpush.msra.mxu0 %v2051
    %2182 = vmatpush.msra.mxu0 %v2047
    %2183 = vmatpush.msra.mxu0 %v2043
    %2184 = vmatpush.msra.mxu0 %v2039
    %2185 = vmatpush.msra.mxu0 %v2035
    %2186 = vmatpush.msra.mxu0 %v2031
    %2187 = vmatpush.msra.mxu0 %v2027
    %2188 = vmatpush.msra.mxu0 %v2023
    %2189 = vmatpush.msra.mxu0 %v2019
    %2190 = vmatpush.msra.mxu0 %v2015
    %2191 = vmatpush.msra.mxu0 %v2011
    %2192 = vmatpush.msra.mxu0 %v2007
    %2193 = vmatmul.f32.gmra.mxu0 %v2172
    %v2194 = vpop.f32.mrf.mxu0
    %v2195 = vadd.f32 0.0, %v2194
    %2196 = vdwg.mxu0
    %2197 = vmatpush.msra.mxu0 %v2068
    %2198 = vmatpush.msra.mxu0 %v2064
    %2199 = vmatpush.msra.mxu0 %v2060
    %2200 = vmatpush.msra.mxu0 %v2056
    %2201 = vmatpush.msra.mxu0 %v2052
    %2202 = vmatpush.msra.mxu0 %v2048
    %2203 = vmatpush.msra.mxu0 %v2044
    %2204 = vmatpush.msra.mxu0 %v2040
    %2205 = vmatpush.msra.mxu0 %v2036
    %2206 = vmatpush.msra.mxu0 %v2032
    %2207 = vmatpush.msra.mxu0 %v2028
    %2208 = vmatpush.msra.mxu0 %v2024
    %2209 = vmatpush.msra.mxu0 %v2020
    %2210 = vmatpush.msra.mxu0 %v2016
    %2211 = vmatpush.msra.mxu0 %v2012
    %2212 = vmatpush.msra.mxu0 %v2008
    %2213 = vmatmul.f32.gmra.mxu0 %v2172
    %v2214 = vpop.f32.mrf.mxu0
    %v2215 = vadd.f32 0.0, %v2214
    %2216 = vdwg.mxu0
    %2217 = vmatpush.msra.mxu0 %v2069
    %2218 = vmatpush.msra.mxu0 %v2065
    %2219 = vmatpush.msra.mxu0 %v2061
    %2220 = vmatpush.msra.mxu0 %v2057
    %2221 = vmatpush.msra.mxu0 %v2053
    %2222 = vmatpush.msra.mxu0 %v2049
    %2223 = vmatpush.msra.mxu0 %v2045
    %2224 = vmatpush.msra.mxu0 %v2041
    %2225 = vmatpush.msra.mxu0 %v2037
    %2226 = vmatpush.msra.mxu0 %v2033
    %2227 = vmatpush.msra.mxu0 %v2029
    %2228 = vmatpush.msra.mxu0 %v2025
    %2229 = vmatpush.msra.mxu0 %v2021
    %2230 = vmatpush.msra.mxu0 %v2017
    %2231 = vmatpush.msra.mxu0 %v2013
    %2232 = vmatpush.msra.mxu0 %v2009
    %2233 = vmatmul.f32.gmra.mxu0 %v2172
    %v2234 = vpop.f32.mrf.mxu0
    %v2235 = vadd.f32 0.0, %v2234
    %2236 = vdwg.mxu0
    %2237 = vmatpush.msra.mxu0 %v2070
    %2238 = vmatpush.msra.mxu0 %v2066
    %2239 = vmatpush.msra.mxu0 %v2062
    %2240 = vmatpush.msra.mxu0 %v2058
    %2241 = vmatpush.msra.mxu0 %v2054
    %2242 = vmatpush.msra.mxu0 %v2050
    %2243 = vmatpush.msra.mxu0 %v2046
    %2244 = vmatpush.msra.mxu0 %v2042
    %2245 = vmatpush.msra.mxu0 %v2038
    %2246 = vmatpush.msra.mxu0 %v2034
    %2247 = vmatpush.msra.mxu0 %v2030
    %2248 = vmatpush.msra.mxu0 %v2026
    %2249 = vmatpush.msra.mxu0 %v2022
    %2250 = vmatpush.msra.mxu0 %v2018
    %2251 = vmatpush.msra.mxu0 %v2014
    %2252 = vmatpush.msra.mxu0 %v2010
    %2253 = vmatmul.f32.gmra.mxu0 %v2172
    %v2254 = vpop.f32.mrf.mxu0
    %v2255 = vadd.f32 0.0, %v2254
    %2256 = vdwg.mxu0
    %v2257 = vadd.f32 %v2173, %v2195
    %v2258 = vadd.f32 %v2174, %v2215
    %v2259 = vadd.f32 %v2175, %v2235
    %v2260 = vadd.f32 %v2176, %v2255
    %v2261 = vmul.f32 %v2257, 0.5
    %v2262 = vtanh.pop %v2261
    %v2263 = vmul.f32 %v2262, 0.5
    %v2264 = vadd.f32 %v2263, 0.5
    %v2265 = vmul.f32 %v2258, 0.5
    %v2266 = vtanh.pop %v2265
    %v2267 = vmul.f32 %v2266, 0.5
    %v2268 = vadd.f32 %v2267, 0.5
    %v2269 = vtanh.pop %v2259
    %v2270 = vmul.f32 %v2260, 0.5
    %v2271 = vtanh.pop %v2270
    %v2272 = vmul.f32 %v2271, 0.5
    %v2273 = vadd.f32 %v2272, 0.5
    %v2274 = vmul.f32 %v2268, %v2170
    %v2275 = vmul.f32 %v2264, %v2269
    %v2276 = vadd.f32 %v2274, %v2275
    %v2277 = vtanh.pop %v2276
    %v2278 = vmul.f32 %v2273, %v2277
    %v2279 = vld [vmem:[%s675] sm:$0xff]
    %v2280 = vld [vmem:[%s675 + $0x8] sm:$0xff]
    %v2281 = vld [vmem:[%s675 + $0x10] sm:$0xff]
    %v2282 = vld [vmem:[%s675 + $0x18] sm:$0xff]
    %2283 = vmatpush.msra.mxu0 %v2067
    %2284 = vmatpush.msra.mxu0 %v2063
    %2285 = vmatpush.msra.mxu0 %v2059
    %2286 = vmatpush.msra.mxu0 %v2055
    %2287 = vmatpush.msra.mxu0 %v2051
    %2288 = vmatpush.msra.mxu0 %v2047
    %2289 = vmatpush.msra.mxu0 %v2043
    %2290 = vmatpush.msra.mxu0 %v2039
    %2291 = vmatpush.msra.mxu0 %v2035
    %2292 = vmatpush.msra.mxu0 %v2031
    %2293 = vmatpush.msra.mxu0 %v2027
    %2294 = vmatpush.msra.mxu0 %v2023
    %2295 = vmatpush.msra.mxu0 %v2019
    %2296 = vmatpush.msra.mxu0 %v2015
    %2297 = vmatpush.msra.mxu0 %v2011
    %2298 = vmatpush.msra.mxu0 %v2007
    %2299 = vmatmul.f32.gmra.mxu0 %v2278
    %v2300 = vpop.f32.mrf.mxu0
    %v2301 = vadd.f32 0.0, %v2300
    %2302 = vdwg.mxu0
    %2303 = vmatpush.msra.mxu0 %v2068
    %2304 = vmatpush.msra.mxu0 %v2064
    %2305 = vmatpush.msra.mxu0 %v2060
    %2306 = vmatpush.msra.mxu0 %v2056
    %2307 = vmatpush.msra.mxu0 %v2052
    %2308 = vmatpush.msra.mxu0 %v2048
    %2309 = vmatpush.msra.mxu0 %v2044
    %2310 = vmatpush.msra.mxu0 %v2040
    %2311 = vmatpush.msra.mxu0 %v2036
    %2312 = vmatpush.msra.mxu0 %v2032
    %2313 = vmatpush.msra.mxu0 %v2028
    %2314 = vmatpush.msra.mxu0 %v2024
    %2315 = vmatpush.msra.mxu0 %v2020
    %2316 = vmatpush.msra.mxu0 %v2016
    %2317 = vmatpush.msra.mxu0 %v2012
    %2318 = vmatpush.msra.mxu0 %v2008
    %2319 = vmatmul.f32.gmra.mxu0 %v2278
    %v2320 = vpop.f32.mrf.mxu0
    %v2321 = vadd.f32 0.0, %v2320
    %2322 = vdwg.mxu0
    %2323 = vmatpush.msra.mxu0 %v2069
    %2324 = vmatpush.msra.mxu0 %v2065
    %2325 = vmatpush.msra.mxu0 %v2061
    %2326 = vmatpush.msra.mxu0 %v2057
    %2327 = vmatpush.msra.mxu0 %v2053
    %2328 = vmatpush.msra.mxu0 %v2049
    %2329 = vmatpush.msra.mxu0 %v2045
    %2330 = vmatpush.msra.mxu0 %v2041
    %2331 = vmatpush.msra.mxu0 %v2037
    %2332 = vmatpush.msra.mxu0 %v2033
    %2333 = vmatpush.msra.mxu0 %v2029
    %2334 = vmatpush.msra.mxu0 %v2025
    %2335 = vmatpush.msra.mxu0 %v2021
    %2336 = vmatpush.msra.mxu0 %v2017
    %2337 = vmatpush.msra.mxu0 %v2013
    %2338 = vmatpush.msra.mxu0 %v2009
    %2339 = vmatmul.f32.gmra.mxu0 %v2278
    %v2340 = vpop.f32.mrf.mxu0
    %v2341 = vadd.f32 0.0, %v2340
    %2342 = vdwg.mxu0
    %2343 = vmatpush.msra.mxu0 %v2070
    %2344 = vmatpush.msra.mxu0 %v2066
    %2345 = vmatpush.msra.mxu0 %v2062
    %2346 = vmatpush.msra.mxu0 %v2058
    %2347 = vmatpush.msra.mxu0 %v2054
    %2348 = vmatpush.msra.mxu0 %v2050
    %2349 = vmatpush.msra.mxu0 %v2046
    %2350 = vmatpush.msra.mxu0 %v2042
    %2351 = vmatpush.msra.mxu0 %v2038
    %2352 = vmatpush.msra.mxu0 %v2034
    %2353 = vmatpush.msra.mxu0 %v2030
    %2354 = vmatpush.msra.mxu0 %v2026
    %2355 = vmatpush.msra.mxu0 %v2022
    %2356 = vmatpush.msra.mxu0 %v2018
    %2357 = vmatpush.msra.mxu0 %v2014
    %2358 = vmatpush.msra.mxu0 %v2010
    %2359 = vmatmul.f32.gmra.mxu0 %v2278
    %v2360 = vpop.f32.mrf.mxu0
    %v2361 = vadd.f32 0.0, %v2360
    %2362 = vdwg.mxu0
    %v2363 = vadd.f32 %v2279, %v2301
    %v2364 = vadd.f32 %v2280, %v2321
    %v2365 = vadd.f32 %v2281, %v2341
    %v2366 = vadd.f32 %v2282, %v2361
    %v2367 = vmul.f32 %v2363, 0.5
    %v2368 = vtanh.pop %v2367
    %v2369 = vmul.f32 %v2368, 0.5
    %v2370 = vadd.f32 %v2369, 0.5
    %v2371 = vmul.f32 %v2364, 0.5
    %v2372 = vtanh.pop %v2371
    %v2373 = vmul.f32 %v2372, 0.5
    %v2374 = vadd.f32 %v2373, 0.5
    %v2375 = vtanh.pop %v2365
    %v2376 = vmul.f32 %v2366, 0.5
    %v2377 = vtanh.pop %v2376
    %v2378 = vmul.f32 %v2377, 0.5
    %v2379 = vadd.f32 %v2378, 0.5
    %v2380 = vmul.f32 %v2374, %v2276
    %v2381 = vmul.f32 %v2370, %v2375
    %v2382 = vadd.f32 %v2380, %v2381
    %v2383 = vtanh.pop %v2382
    %v2384 = vmul.f32 %v2379, %v2383
    %v2385 = vld [vmem:[%s850] sm:$0xff]
    %v2386 = vld [vmem:[%s850 + $0x8] sm:$0xff]
    %v2387 = vld [vmem:[%s850 + $0x10] sm:$0xff]
    %v2388 = vld [vmem:[%s850 + $0x18] sm:$0xff]
    %2389 = vmatpush.msra.mxu0 %v2067
    %2390 = vmatpush.msra.mxu0 %v2063
    %2391 = vmatpush.msra.mxu0 %v2059
    %2392 = vmatpush.msra.mxu0 %v2055
    %2393 = vmatpush.msra.mxu0 %v2051
    %2394 = vmatpush.msra.mxu0 %v2047
    %2395 = vmatpush.msra.mxu0 %v2043
    %2396 = vmatpush.msra.mxu0 %v2039
    %2397 = vmatpush.msra.mxu0 %v2035
    %2398 = vmatpush.msra.mxu0 %v2031
    %2399 = vmatpush.msra.mxu0 %v2027
    %2400 = vmatpush.msra.mxu0 %v2023
    %2401 = vmatpush.msra.mxu0 %v2019
    %2402 = vmatpush.msra.mxu0 %v2015
    %2403 = vmatpush.msra.mxu0 %v2011
    %2404 = vmatpush.msra.mxu0 %v2007
    %2405 = vmatmul.f32.gmra.mxu0 %v2384
    %v2406 = vpop.f32.mrf.mxu0
    %v2407 = vadd.f32 0.0, %v2406
    %2408 = vdwg.mxu0
    %2409 = vmatpush.msra.mxu0 %v2068
    %2410 = vmatpush.msra.mxu0 %v2064
    %2411 = vmatpush.msra.mxu0 %v2060
    %2412 = vmatpush.msra.mxu0 %v2056
    %2413 = vmatpush.msra.mxu0 %v2052
    %2414 = vmatpush.msra.mxu0 %v2048
    %2415 = vmatpush.msra.mxu0 %v2044
    %2416 = vmatpush.msra.mxu0 %v2040
    %2417 = vmatpush.msra.mxu0 %v2036
    %2418 = vmatpush.msra.mxu0 %v2032
    %2419 = vmatpush.msra.mxu0 %v2028
    %2420 = vmatpush.msra.mxu0 %v2024
    %2421 = vmatpush.msra.mxu0 %v2020
    %2422 = vmatpush.msra.mxu0 %v2016
    %2423 = vmatpush.msra.mxu0 %v2012
    %2424 = vmatpush.msra.mxu0 %v2008
    %2425 = vmatmul.f32.gmra.mxu0 %v2384
    %v2426 = vpop.f32.mrf.mxu0
    %v2427 = vadd.f32 0.0, %v2426
    %2428 = vdwg.mxu0
    %2429 = vmatpush.msra.mxu0 %v2069
    %2430 = vmatpush.msra.mxu0 %v2065
    %2431 = vmatpush.msra.mxu0 %v2061
    %2432 = vmatpush.msra.mxu0 %v2057
    %2433 = vmatpush.msra.mxu0 %v2053
    %2434 = vmatpush.msra.mxu0 %v2049
    %2435 = vmatpush.msra.mxu0 %v2045
    %2436 = vmatpush.msra.mxu0 %v2041
    %2437 = vmatpush.msra.mxu0 %v2037
    %2438 = vmatpush.msra.mxu0 %v2033
    %2439 = vmatpush.msra.mxu0 %v2029
    %2440 = vmatpush.msra.mxu0 %v2025
    %2441 = vmatpush.msra.mxu0 %v2021
    %2442 = vmatpush.msra.mxu0 %v2017
    %2443 = vmatpush.msra.mxu0 %v2013
    %2444 = vmatpush.msra.mxu0 %v2009
    %2445 = vmatmul.f32.gmra.mxu0 %v2384
    %v2446 = vpop.f32.mrf.mxu0
    %v2447 = vadd.f32 0.0, %v2446
    %2448 = vdwg.mxu0
    %2449 = vmatpush.msra.mxu0 %v2070
    %2450 = vmatpush.msra.mxu0 %v2066
    %2451 = vmatpush.msra.mxu0 %v2062
    %2452 = vmatpush.msra.mxu0 %v2058
    %2453 = vmatpush.msra.mxu0 %v2054
    %2454 = vmatpush.msra.mxu0 %v2050
    %2455 = vmatpush.msra.mxu0 %v2046
    %2456 = vmatpush.msra.mxu0 %v2042
    %2457 = vmatpush.msra.mxu0 %v2038
    %2458 = vmatpush.msra.mxu0 %v2034
    %2459 = vmatpush.msra.mxu0 %v2030
    %2460 = vmatpush.msra.mxu0 %v2026
    %2461 = vmatpush.msra.mxu0 %v2022
    %2462 = vmatpush.msra.mxu0 %v2018
    %2463 = vmatpush.msra.mxu0 %v2014
    %2464 = vmatpush.msra.mxu0 %v2010
    %2465 = vmatmul.f32.gmra.mxu0 %v2384
    %v2466 = vpop.f32.mrf.mxu0
    %v2467 = vadd.f32 0.0, %v2466
    %2468 = vdwg.mxu0
    %v2469 = vadd.f32 %v2385, %v2407
    %v2470 = vadd.f32 %v2386, %v2427
    %v2471 = vadd.f32 %v2387, %v2447
    %v2472 = vadd.f32 %v2388, %v2467
    %v2473 = vmul.f32 %v2469, 0.5
    %v2474 = vtanh.pop %v2473
    %v2475 = vmul.f32 %v2474, 0.5
    %v2476 = vadd.f32 %v2475, 0.5
    %v2477 = vmul.f32 %v2470, 0.5
    %v2478 = vtanh.pop %v2477
    %v2479 = vmul.f32 %v2478, 0.5
    %v2480 = vadd.f32 %v2479, 0.5
    %v2481 = vtanh.pop %v2471
    %v2482 = vmul.f32 %v2472, 0.5
    %v2483 = vtanh.pop %v2482
    %v2484 = vmul.f32 %v2483, 0.5
    %v2485 = vadd.f32 %v2484, 0.5
    %v2486 = vmul.f32 %v2480, %v2382
    %v2487 = vmul.f32 %v2476, %v2481
    %v2488 = vadd.f32 %v2486, %v2487
    %v2489 = vtanh.pop %v2488
    %v2490 = vmul.f32 %v2485, %v2489
    %v2491 = vld [vmem:[%s1025] sm:$0xff]
    %v2492 = vld [vmem:[%s1025 + $0x8] sm:$0xff]
    %v2493 = vld [vmem:[%s1025 + $0x10] sm:$0xff]
    %v2494 = vld [vmem:[%s1025 + $0x18] sm:$0xff]
    %2495 = vmatpush.msra.mxu0 %v2067
    %2496 = vmatpush.msra.mxu0 %v2063
    %2497 = vmatpush.msra.mxu0 %v2059
    %2498 = vmatpush.msra.mxu0 %v2055
    %2499 = vmatpush.msra.mxu0 %v2051
    %2500 = vmatpush.msra.mxu0 %v2047
    %2501 = vmatpush.msra.mxu0 %v2043
    %2502 = vmatpush.msra.mxu0 %v2039
    %2503 = vmatpush.msra.mxu0 %v2035
    %2504 = vmatpush.msra.mxu0 %v2031
    %2505 = vmatpush.msra.mxu0 %v2027
    %2506 = vmatpush.msra.mxu0 %v2023
    %2507 = vmatpush.msra.mxu0 %v2019
    %2508 = vmatpush.msra.mxu0 %v2015
    %2509 = vmatpush.msra.mxu0 %v2011
    %2510 = vmatpush.msra.mxu0 %v2007
    %2511 = vmatmul.f32.gmra.mxu0 %v2490
    %v2512 = vpop.f32.mrf.mxu0
    %v2513 = vadd.f32 0.0, %v2512
    %2514 = vdwg.mxu0
    %2515 = vmatpush.msra.mxu0 %v2068
    %2516 = vmatpush.msra.mxu0 %v2064
    %2517 = vmatpush.msra.mxu0 %v2060
    %2518 = vmatpush.msra.mxu0 %v2056
    %2519 = vmatpush.msra.mxu0 %v2052
    %2520 = vmatpush.msra.mxu0 %v2048
    %2521 = vmatpush.msra.mxu0 %v2044
    %2522 = vmatpush.msra.mxu0 %v2040
    %2523 = vmatpush.msra.mxu0 %v2036
    %2524 = vmatpush.msra.mxu0 %v2032
    %2525 = vmatpush.msra.mxu0 %v2028
    %2526 = vmatpush.msra.mxu0 %v2024
    %2527 = vmatpush.msra.mxu0 %v2020
    %2528 = vmatpush.msra.mxu0 %v2016
    %2529 = vmatpush.msra.mxu0 %v2012
    %2530 = vmatpush.msra.mxu0 %v2008
    %2531 = vmatmul.f32.gmra.mxu0 %v2490
    %v2532 = vpop.f32.mrf.mxu0
    %v2533 = vadd.f32 0.0, %v2532
    %2534 = vdwg.mxu0
    %2535 = vmatpush.msra.mxu0 %v2069
    %2536 = vmatpush.msra.mxu0 %v2065
    %2537 = vmatpush.msra.mxu0 %v2061
    %2538 = vmatpush.msra.mxu0 %v2057
    %2539 = vmatpush.msra.mxu0 %v2053
    %2540 = vmatpush.msra.mxu0 %v2049
    %2541 = vmatpush.msra.mxu0 %v2045
    %2542 = vmatpush.msra.mxu0 %v2041
    %2543 = vmatpush.msra.mxu0 %v2037
    %2544 = vmatpush.msra.mxu0 %v2033
    %2545 = vmatpush.msra.mxu0 %v2029
    %2546 = vmatpush.msra.mxu0 %v2025
    %2547 = vmatpush.msra.mxu0 %v2021
    %2548 = vmatpush.msra.mxu0 %v2017
    %2549 = vmatpush.msra.mxu0 %v2013
    %2550 = vmatpush.msra.mxu0 %v2009
    %2551 = vmatmul.f32.gmra.mxu0 %v2490
    %v2552 = vpop.f32.mrf.mxu0
    %v2553 = vadd.f32 0.0, %v2552
    %2554 = vdwg.mxu0
    %2555 = vmatpush.msra.mxu0 %v2070
    %2556 = vmatpush.msra.mxu0 %v2066
    %2557 = vmatpush.msra.mxu0 %v2062
    %2558 = vmatpush.msra.mxu0 %v2058
    %2559 = vmatpush.msra.mxu0 %v2054
    %2560 = vmatpush.msra.mxu0 %v2050
    %2561 = vmatpush.msra.mxu0 %v2046
    %2562 = vmatpush.msra.mxu0 %v2042
    %2563 = vmatpush.msra.mxu0 %v2038
    %2564 = vmatpush.msra.mxu0 %v2034
    %2565 = vmatpush.msra.mxu0 %v2030
    %2566 = vmatpush.msra.mxu0 %v2026
    %2567 = vmatpush.msra.mxu0 %v2022
    %2568 = vmatpush.msra.mxu0 %v2018
    %2569 = vmatpush.msra.mxu0 %v2014
    %2570 = vmatpush.msra.mxu0 %v2010
    %2571 = vmatmul.f32.gmra.mxu0 %v2490
    %v2572 = vpop.f32.mrf.mxu0
    %v2573 = vadd.f32 0.0, %v2572
    %2574 = vdwg.mxu0
    %v2575 = vadd.f32 %v2491, %v2513
    %v2576 = vadd.f32 %v2492, %v2533
    %v2577 = vadd.f32 %v2493, %v2553
    %v2578 = vadd.f32 %v2494, %v2573
    %v2579 = vmul.f32 %v2575, 0.5
    %v2580 = vtanh.pop %v2579
    %v2581 = vmul.f32 %v2580, 0.5
    %v2582 = vadd.f32 %v2581, 0.5
    %v2583 = vmul.f32 %v2576, 0.5
    %v2584 = vtanh.pop %v2583
    %v2585 = vmul.f32 %v2584, 0.5
    %v2586 = vadd.f32 %v2585, 0.5
    %v2587 = vtanh.pop %v2577
    %v2588 = vmul.f32 %v2578, 0.5
    %v2589 = vtanh.pop %v2588
    %v2590 = vmul.f32 %v2589, 0.5
    %v2591 = vadd.f32 %v2590, 0.5
    %v2592 = vmul.f32 %v2586, %v2488
    %v2593 = vmul.f32 %v2582, %v2587
    %v2594 = vadd.f32 %v2592, %v2593
    %v2595 = vtanh.pop %v2594
    %v2596 = vmul.f32 %v2591, %v2595
    %v2597 = vld [vmem:[%s1200] sm:$0xff]
    %v2598 = vld [vmem:[%s1200 + $0x8] sm:$0xff]
    %v2599 = vld [vmem:[%s1200 + $0x10] sm:$0xff]
    %v2600 = vld [vmem:[%s1200 + $0x18] sm:$0xff]
    %2601 = vmatpush.msra.mxu0 %v2067
    %2602 = vmatpush.msra.mxu0 %v2063
    %2603 = vmatpush.msra.mxu0 %v2059
    %2604 = vmatpush.msra.mxu0 %v2055
    %2605 = vmatpush.msra.mxu0 %v2051
    %2606 = vmatpush.msra.mxu0 %v2047
    %2607 = vmatpush.msra.mxu0 %v2043
    %2608 = vmatpush.msra.mxu0 %v2039
    %2609 = vmatpush.msra.mxu0 %v2035
    %2610 = vmatpush.msra.mxu0 %v2031
    %2611 = vmatpush.msra.mxu0 %v2027
    %2612 = vmatpush.msra.mxu0 %v2023
    %2613 = vmatpush.msra.mxu0 %v2019
    %2614 = vmatpush.msra.mxu0 %v2015
    %2615 = vmatpush.msra.mxu0 %v2011
    %2616 = vmatpush.msra.mxu0 %v2007
    %2617 = vmatmul.f32.gmra.mxu0 %v2596
    %v2618 = vpop.f32.mrf.mxu0
    %v2619 = vadd.f32 0.0, %v2618
    %2620 = vdwg.mxu0
    %2621 = vmatpush.msra.mxu0 %v2068
    %2622 = vmatpush.msra.mxu0 %v2064
    %2623 = vmatpush.msra.mxu0 %v2060
    %2624 = vmatpush.msra.mxu0 %v2056
    %2625 = vmatpush.msra.mxu0 %v2052
    %2626 = vmatpush.msra.mxu0 %v2048
    %2627 = vmatpush.msra.mxu0 %v2044
    %2628 = vmatpush.msra.mxu0 %v2040
    %2629 = vmatpush.msra.mxu0 %v2036
    %2630 = vmatpush.msra.mxu0 %v2032
    %2631 = vmatpush.msra.mxu0 %v2028
    %2632 = vmatpush.msra.mxu0 %v2024
    %2633 = vmatpush.msra.mxu0 %v2020
    %2634 = vmatpush.msra.mxu0 %v2016
    %2635 = vmatpush.msra.mxu0 %v2012
    %2636 = vmatpush.msra.mxu0 %v2008
    %2637 = vmatmul.f32.gmra.mxu0 %v2596
    %v2638 = vpop.f32.mrf.mxu0
    %v2639 = vadd.f32 0.0, %v2638
    %2640 = vdwg.mxu0
    %2641 = vmatpush.msra.mxu0 %v2069
    %2642 = vmatpush.msra.mxu0 %v2065
    %2643 = vmatpush.msra.mxu0 %v2061
    %2644 = vmatpush.msra.mxu0 %v2057
    %2645 = vmatpush.msra.mxu0 %v2053
    %2646 = vmatpush.msra.mxu0 %v2049
    %2647 = vmatpush.msra.mxu0 %v2045
    %2648 = vmatpush.msra.mxu0 %v2041
    %2649 = vmatpush.msra.mxu0 %v2037
    %2650 = vmatpush.msra.mxu0 %v2033
    %2651 = vmatpush.msra.mxu0 %v2029
    %2652 = vmatpush.msra.mxu0 %v2025
    %2653 = vmatpush.msra.mxu0 %v2021
    %2654 = vmatpush.msra.mxu0 %v2017
    %2655 = vmatpush.msra.mxu0 %v2013
    %2656 = vmatpush.msra.mxu0 %v2009
    %2657 = vmatmul.f32.gmra.mxu0 %v2596
    %v2658 = vpop.f32.mrf.mxu0
    %v2659 = vadd.f32 0.0, %v2658
    %2660 = vdwg.mxu0
    %2661 = vmatpush.msra.mxu0 %v2070
    %2662 = vmatpush.msra.mxu0 %v2066
    %2663 = vmatpush.msra.mxu0 %v2062
    %2664 = vmatpush.msra.mxu0 %v2058
    %2665 = vmatpush.msra.mxu0 %v2054
    %2666 = vmatpush.msra.mxu0 %v2050
    %2667 = vmatpush.msra.mxu0 %v2046
    %2668 = vmatpush.msra.mxu0 %v2042
    %2669 = vmatpush.msra.mxu0 %v2038
    %2670 = vmatpush.msra.mxu0 %v2034
    %2671 = vmatpush.msra.mxu0 %v2030
    %2672 = vmatpush.msra.mxu0 %v2026
    %2673 = vmatpush.msra.mxu0 %v2022
    %2674 = vmatpush.msra.mxu0 %v2018
    %2675 = vmatpush.msra.mxu0 %v2014
    %2676 = vmatpush.msra.mxu0 %v2010
    %2677 = vmatmul.f32.gmra.mxu0 %v2596
    %v2678 = vpop.f32.mrf.mxu0
    %v2679 = vadd.f32 0.0, %v2678
    %2680 = vdwg.mxu0
    %v2681 = vadd.f32 %v2597, %v2619
    %v2682 = vadd.f32 %v2598, %v2639
    %v2683 = vadd.f32 %v2599, %v2659
    %v2684 = vadd.f32 %v2600, %v2679
    %v2685 = vmul.f32 %v2681, 0.5
    %v2686 = vtanh.pop %v2685
    %v2687 = vmul.f32 %v2686, 0.5
    %v2688 = vadd.f32 %v2687, 0.5
    %v2689 = vmul.f32 %v2682, 0.5
    %v2690 = vtanh.pop %v2689
    %v2691 = vmul.f32 %v2690, 0.5
    %v2692 = vadd.f32 %v2691, 0.5
    %v2693 = vtanh.pop %v2683
    %v2694 = vmul.f32 %v2684, 0.5
    %v2695 = vtanh.pop %v2694
    %v2696 = vmul.f32 %v2695, 0.5
    %v2697 = vadd.f32 %v2696, 0.5
    %v2698 = vmul.f32 %v2692, %v2594
    %v2699 = vmul.f32 %v2688, %v2693
    %v2700 = vadd.f32 %v2698, %v2699
    %v2701 = vtanh.pop %v2700
    %v2702 = vmul.f32 %v2697, %v2701
    %v2703 = vld [vmem:[%s1375] sm:$0xff]
    %v2704 = vld [vmem:[%s1375 + $0x8] sm:$0xff]
    %v2705 = vld [vmem:[%s1375 + $0x10] sm:$0xff]
    %v2706 = vld [vmem:[%s1375 + $0x18] sm:$0xff]
    %2707 = vmatpush.msra.mxu0 %v2067
    %2708 = vmatpush.msra.mxu0 %v2063
    %2709 = vmatpush.msra.mxu0 %v2059
    %2710 = vmatpush.msra.mxu0 %v2055
    %2711 = vmatpush.msra.mxu0 %v2051
    %2712 = vmatpush.msra.mxu0 %v2047
    %2713 = vmatpush.msra.mxu0 %v2043
    %2714 = vmatpush.msra.mxu0 %v2039
    %2715 = vmatpush.msra.mxu0 %v2035
    %2716 = vmatpush.msra.mxu0 %v2031
    %2717 = vmatpush.msra.mxu0 %v2027
    %2718 = vmatpush.msra.mxu0 %v2023
    %2719 = vmatpush.msra.mxu0 %v2019
    %2720 = vmatpush.msra.mxu0 %v2015
    %2721 = vmatpush.msra.mxu0 %v2011
    %2722 = vmatpush.msra.mxu0 %v2007
    %2723 = vmatmul.f32.gmra.mxu0 %v2702
    %v2724 = vpop.f32.mrf.mxu0
    %v2725 = vadd.f32 0.0, %v2724
    %2726 = vdwg.mxu0
    %2727 = vmatpush.msra.mxu0 %v2068
    %2728 = vmatpush.msra.mxu0 %v2064
    %2729 = vmatpush.msra.mxu0 %v2060
    %2730 = vmatpush.msra.mxu0 %v2056
    %2731 = vmatpush.msra.mxu0 %v2052
    %2732 = vmatpush.msra.mxu0 %v2048
    %2733 = vmatpush.msra.mxu0 %v2044
    %2734 = vmatpush.msra.mxu0 %v2040
    %2735 = vmatpush.msra.mxu0 %v2036
    %2736 = vmatpush.msra.mxu0 %v2032
    %2737 = vmatpush.msra.mxu0 %v2028
    %2738 = vmatpush.msra.mxu0 %v2024
    %2739 = vmatpush.msra.mxu0 %v2020
    %2740 = vmatpush.msra.mxu0 %v2016
    %2741 = vmatpush.msra.mxu0 %v2012
    %2742 = vmatpush.msra.mxu0 %v2008
    %2743 = vmatmul.f32.gmra.mxu0 %v2702
    %v2744 = vpop.f32.mrf.mxu0
    %v2745 = vadd.f32 0.0, %v2744
    %2746 = vdwg.mxu0
    %2747 = vmatpush.msra.mxu0 %v2069
    %2748 = vmatpush.msra.mxu0 %v2065
    %2749 = vmatpush.msra.mxu0 %v2061
    %2750 = vmatpush.msra.mxu0 %v2057
    %2751 = vmatpush.msra.mxu0 %v2053
    %2752 = vmatpush.msra.mxu0 %v2049
    %2753 = vmatpush.msra.mxu0 %v2045
    %2754 = vmatpush.msra.mxu0 %v2041
    %2755 = vmatpush.msra.mxu0 %v2037
    %2756 = vmatpush.msra.mxu0 %v2033
    %2757 = vmatpush.msra.mxu0 %v2029
    %2758 = vmatpush.msra.mxu0 %v2025
    %2759 = vmatpush.msra.mxu0 %v2021
    %2760 = vmatpush.msra.mxu0 %v2017
    %2761 = vmatpush.msra.mxu0 %v2013
    %2762 = vmatpush.msra.mxu0 %v2009
    %2763 = vmatmul.f32.gmra.mxu0 %v2702
    %v2764 = vpop.f32.mrf.mxu0
    %v2765 = vadd.f32 0.0, %v2764
    %2766 = vdwg.mxu0
    %2767 = vmatpush.msra.mxu0 %v2070
    %2768 = vmatpush.msra.mxu0 %v2066
    %2769 = vmatpush.msra.mxu0 %v2062
    %2770 = vmatpush.msra.mxu0 %v2058
    %2771 = vmatpush.msra.mxu0 %v2054
    %2772 = vmatpush.msra.mxu0 %v2050
    %2773 = vmatpush.msra.mxu0 %v2046
    %2774 = vmatpush.msra.mxu0 %v2042
    %2775 = vmatpush.msra.mxu0 %v2038
    %2776 = vmatpush.msra.mxu0 %v2034
    %2777 = vmatpush.msra.mxu0 %v2030
    %2778 = vmatpush.msra.mxu0 %v2026
    %2779 = vmatpush.msra.mxu0 %v2022
    %2780 = vmatpush.msra.mxu0 %v2018
    %2781 = vmatpush.msra.mxu0 %v2014
    %2782 = vmatpush.msra.mxu0 %v2010
    %2783 = vmatmul.f32.gmra.mxu0 %v2702
    %v2784 = vpop.f32.mrf.mxu0
    %v2785 = vadd.f32 0.0, %v2784
    %2786 = vdwg.mxu0
    %v2787 = vadd.f32 %v2703, %v2725
    %v2788 = vadd.f32 %v2704, %v2745
    %v2789 = vadd.f32 %v2705, %v2765
    %v2790 = vadd.f32 %v2706, %v2785
    %v2791 = vmul.f32 %v2787, 0.5
    %v2792 = vtanh.pop %v2791
    %v2793 = vmul.f32 %v2792, 0.5
    %v2794 = vadd.f32 %v2793, 0.5
    %v2795 = vmul.f32 %v2788, 0.5
    %v2796 = vtanh.pop %v2795
    %v2797 = vmul.f32 %v2796, 0.5
    %v2798 = vadd.f32 %v2797, 0.5
    %v2799 = vtanh.pop %v2789
    %v2800 = vmul.f32 %v2790, 0.5
    %v2801 = vtanh.pop %v2800
    %v2802 = vmul.f32 %v2801, 0.5
    %v2803 = vadd.f32 %v2802, 0.5
    %v2804 = vmul.f32 %v2798, %v2700
    %v2805 = vmul.f32 %v2794, %v2799
    %v2806 = vadd.f32 %v2804, %v2805
    %v2807 = vtanh.pop %v2806
    %v2808 = vmul.f32 %v2803, %v2807
    %v2809 = vld [vmem:[%s1550] sm:$0xff]
    %v2810 = vld [vmem:[%s1550 + $0x8] sm:$0xff]
    %v2811 = vld [vmem:[%s1550 + $0x10] sm:$0xff]
    %v2812 = vld [vmem:[%s1550 + $0x18] sm:$0xff]
    %2813 = vmatpush.msra.mxu0 %v2067
    %2814 = vmatpush.msra.mxu0 %v2063
    %2815 = vmatpush.msra.mxu0 %v2059
    %2816 = vmatpush.msra.mxu0 %v2055
    %2817 = vmatpush.msra.mxu0 %v2051
    %2818 = vmatpush.msra.mxu0 %v2047
    %2819 = vmatpush.msra.mxu0 %v2043
    %2820 = vmatpush.msra.mxu0 %v2039
    %2821 = vmatpush.msra.mxu0 %v2035
    %2822 = vmatpush.msra.mxu0 %v2031
    %2823 = vmatpush.msra.mxu0 %v2027
    %2824 = vmatpush.msra.mxu0 %v2023
    %2825 = vmatpush.msra.mxu0 %v2019
    %2826 = vmatpush.msra.mxu0 %v2015
    %2827 = vmatpush.msra.mxu0 %v2011
    %2828 = vmatpush.msra.mxu0 %v2007
    %2829 = vmatmul.f32.gmra.mxu0 %v2808
    %v2830 = vpop.f32.mrf.mxu0
    %v2831 = vadd.f32 0.0, %v2830
    %2832 = vdwg.mxu0
    %2833 = vmatpush.msra.mxu0 %v2068
    %2834 = vmatpush.msra.mxu0 %v2064
    %2835 = vmatpush.msra.mxu0 %v2060
    %2836 = vmatpush.msra.mxu0 %v2056
    %2837 = vmatpush.msra.mxu0 %v2052
    %2838 = vmatpush.msra.mxu0 %v2048
    %2839 = vmatpush.msra.mxu0 %v2044
    %2840 = vmatpush.msra.mxu0 %v2040
    %2841 = vmatpush.msra.mxu0 %v2036
    %2842 = vmatpush.msra.mxu0 %v2032
    %2843 = vmatpush.msra.mxu0 %v2028
    %2844 = vmatpush.msra.mxu0 %v2024
    %2845 = vmatpush.msra.mxu0 %v2020
    %2846 = vmatpush.msra.mxu0 %v2016
    %2847 = vmatpush.msra.mxu0 %v2012
    %2848 = vmatpush.msra.mxu0 %v2008
    %2849 = vmatmul.f32.gmra.mxu0 %v2808
    %v2850 = vpop.f32.mrf.mxu0
    %v2851 = vadd.f32 0.0, %v2850
    %2852 = vdwg.mxu0
    %2853 = vmatpush.msra.mxu0 %v2069
    %2854 = vmatpush.msra.mxu0 %v2065
    %2855 = vmatpush.msra.mxu0 %v2061
    %2856 = vmatpush.msra.mxu0 %v2057
    %2857 = vmatpush.msra.mxu0 %v2053
    %2858 = vmatpush.msra.mxu0 %v2049
    %2859 = vmatpush.msra.mxu0 %v2045
    %2860 = vmatpush.msra.mxu0 %v2041
    %2861 = vmatpush.msra.mxu0 %v2037
    %2862 = vmatpush.msra.mxu0 %v2033
    %2863 = vmatpush.msra.mxu0 %v2029
    %2864 = vmatpush.msra.mxu0 %v2025
    %2865 = vmatpush.msra.mxu0 %v2021
    %2866 = vmatpush.msra.mxu0 %v2017
    %2867 = vmatpush.msra.mxu0 %v2013
    %2868 = vmatpush.msra.mxu0 %v2009
    %2869 = vmatmul.f32.gmra.mxu0 %v2808
    %v2870 = vpop.f32.mrf.mxu0
    %v2871 = vadd.f32 0.0, %v2870
    %2872 = vdwg.mxu0
    %2873 = vmatpush.msra.mxu0 %v2070
    %2874 = vmatpush.msra.mxu0 %v2066
    %2875 = vmatpush.msra.mxu0 %v2062
    %2876 = vmatpush.msra.mxu0 %v2058
    %2877 = vmatpush.msra.mxu0 %v2054
    %2878 = vmatpush.msra.mxu0 %v2050
    %2879 = vmatpush.msra.mxu0 %v2046
    %2880 = vmatpush.msra.mxu0 %v2042
    %2881 = vmatpush.msra.mxu0 %v2038
    %2882 = vmatpush.msra.mxu0 %v2034
    %2883 = vmatpush.msra.mxu0 %v2030
    %2884 = vmatpush.msra.mxu0 %v2026
    %2885 = vmatpush.msra.mxu0 %v2022
    %2886 = vmatpush.msra.mxu0 %v2018
    %2887 = vmatpush.msra.mxu0 %v2014
    %2888 = vmatpush.msra.mxu0 %v2010
    %2889 = vmatmul.f32.gmra.mxu0 %v2808
    %v2890 = vpop.f32.mrf.mxu0
    %v2891 = vadd.f32 0.0, %v2890
    %2892 = vdwg.mxu0
    %v2893 = vadd.f32 %v2809, %v2831
    %v2894 = vadd.f32 %v2810, %v2851
    %v2895 = vadd.f32 %v2811, %v2871
    %v2896 = vadd.f32 %v2812, %v2891
    %v2897 = vmul.f32 %v2893, 0.5
    %v2898 = vtanh.pop %v2897
    %v2899 = vmul.f32 %v2898, 0.5
    %v2900 = vadd.f32 %v2899, 0.5
    %v2901 = vmul.f32 %v2894, 0.5
    %v2902 = vtanh.pop %v2901
    %v2903 = vmul.f32 %v2902, 0.5
    %v2904 = vadd.f32 %v2903, 0.5
    %v2905 = vtanh.pop %v2895
    %v2906 = vmul.f32 %v2896, 0.5
    %v2907 = vtanh.pop %v2906
    %v2908 = vmul.f32 %v2907, 0.5
    %v2909 = vadd.f32 %v2908, 0.5
    %v2910 = vmul.f32 %v2904, %v2806
    %v2911 = vmul.f32 %v2900, %v2905
    %v2912 = vadd.f32 %v2910, %v2911
    %v2913 = vtanh.pop %v2912
    %v2914 = vmul.f32 %v2909, %v2913
    %s2915 = scalar_lea.vmem [#allocation10], 8
    %2916 = vst [vmem:[%s2915] sm:$0xff] %v2914
    %s2917 = scalar_lea.vmem [#allocation11], 8
    %2918 = vst [vmem:[%s2917] sm:$0xff] %v2912
    // Predicated region
    $region42: #{tpu_custom_call.1} parent=1 // pred_check
      _
    $region43: #{tpu_custom_call.1} parent=1 // pred_check_branch
      %2920 = sbr.rel (0) target = $region45
    $region44: #{tpu_custom_call.1} parent=1 // pred_region
      %2922 = vsyncadd [#allocation6], 0
      %s2923 = sshll.u32 [#allocation10], 4
      %s2924 = int_to_ptr.vmem [resolvable:$true] %s2923
      %s2925 = sshll.u32 %s7, 4
      %s2926 = int_to_ptr.hbm [resolvable:$true] %s2925
      %2931 = dma.vmem_to_hbm [thread:$0]  %s2924, 256, %s2926, [#allocation6], 128, 128, 8
    $region45: #{tpu_custom_call.1} parent=1 // pred_fallthru
      _
    // Predicated region
    $region46: #{tpu_custom_call.1} parent=1 // pred_check
      _
    $region47: #{tpu_custom_call.1} parent=1 // pred_check_branch
      %2933 = sbr.rel (0) target = $region49
    $region48: #{tpu_custom_call.1} parent=1 // pred_region
      %2935 = vsyncadd [#allocation12], 0
      %s2936 = sshll.u32 [#allocation11], 4
      %s2937 = int_to_ptr.vmem [resolvable:$true] %s2936
      %s2938 = sshll.u32 %s8, 4
      %s2939 = int_to_ptr.hbm [resolvable:$true] %s2938
      %2944 = dma.vmem_to_hbm [thread:$0]  %s2937, 256, %s2939, [#allocation12], 128, 128, 8
    $region49: #{tpu_custom_call.1} parent=1 // pred_fallthru
      _
    // Predicated region
    $region50: #{tpu_custom_call.1} parent=1 // pred_check
      _
    $region51: #{tpu_custom_call.1} parent=1 // pred_check_branch
      %2946 = sbr.rel (0) target = $region53
    $region52: #{tpu_custom_call.1} parent=1 // pred_region
      %2948 = dma.done [#allocation6], 256
    $region53: #{tpu_custom_call.1} parent=1 // pred_fallthru
      _
    // Predicated region
    $region54: #{tpu_custom_call.1} parent=1 // pred_check
      _
    $region55: #{tpu_custom_call.1} parent=1 // pred_check_branch
      %2950 = sbr.rel (0) target = $region57
    $region56: #{tpu_custom_call.1} parent=1 // pred_region
      %2952 = dma.done [#allocation12], 256
    $region57: #{tpu_custom_call.1} parent=1 // pred_fallthru
      _
    %2953 = vsyncpa [#allocation5], 1
    %2954 = vsyncpa [#allocation8], 1
    %2955 = vsyncpa [#allocation6], 1
    %2956 = vsyncpa [#allocation12], 1

</llo_original>
